<compile_context>
chip_gen: v6e
topology: v6e:2x2x1
jax: 0.10.0
libtpu: 0.0.40
codegen_flags: <defaults>
</compile_context>

<pallas_src>
import functools

import jax
import jax.numpy as jnp
from jax import lax
from jax.experimental import pallas as pl
from jax.experimental.pallas import tpu as pltpu

HIDDEN = 1000
HIDDEN_PAD = 1024          # next multiple of 128
CHUNK = 128                # hidden-dim chunk (sublanes) processed per loop step
NUM_CHUNKS = HIDDEN_PAD // CHUNK


def _round_up(x, m):
    return (x + m - 1) // m * m


def xor_kernel(xt_ref, w1_ref, b1_ref, w2_ref, b2_ref, o_ref, *, bf16_hidden):
    # xt:(2,TB)  w1:(H,2)  b1:(H,1)  w2:(H,1)  b2:(1,1)  o:(1,TB)   [H = 1024]
    tb = xt_ref.shape[1]
    x0 = xt_ref[0:1, :]                      # (1, TB) feature 0, batch on lanes
    x1 = xt_ref[1:2, :]                      # (1, TB) feature 1

    def chunk_body(c, acc):
        # Aligned sublane window into the resident weights/bias.
        r = pl.multiple_of(c * CHUNK, CHUNK)
        w1a = w1_ref[pl.ds(r, CHUNK), 0:1]   # (CHUNK, 1)
        w1b = w1_ref[pl.ds(r, CHUNK), 1:2]   # (CHUNK, 1)
        b1c = b1_ref[pl.ds(r, CHUNK), :]     # (CHUNK, 1)
        w2c = w2_ref[pl.ds(r, CHUNK), :]     # (CHUNK, 1)

        # fc1 for this chunk: K=2 contraction as two VPU FMAs (no MXU push).
        h = w1a * x0 + w1b * x1 + b1c        # (CHUNK, TB) f32

        # sigmoid as a single EUP op: sigmoid(h) = 0.5*tanh(0.5*h) + 0.5.
        if bf16_hidden:
            # v6e/v7x fast path: bf16 transcendental + multiply, f32 accumulate.
            hb = h.astype(jnp.bfloat16)
            hb = 0.5 * jnp.tanh(0.5 * hb) + 0.5
            p = (hb * w2c.astype(jnp.bfloat16)).astype(jnp.float32)
        else:
            hf = 0.5 * jnp.tanh(0.5 * h) + 0.5
            p = hf * w2c                      # (CHUNK, TB) f32

        # fc2 partial sum: cross-sublane reduce (XLU slot, idle otherwise).
        return acc + jnp.sum(p, axis=0, keepdims=True)   # (1, TB) f32

    acc0 = jnp.zeros((1, tb), dtype=jnp.float32)
    acc = lax.fori_loop(0, NUM_CHUNKS, chunk_body, acc0, unroll=True)

    # Output sigmoid is tiny ((1, TB)); keep plain sigmoid.
    y = acc + b2_ref[...]
    o_ref[...] = jax.nn.sigmoid(y).astype(o_ref.dtype)


def init_params(key):
    # PyTorch nn.Linear default init: U(-1/sqrt(fan_in), 1/sqrt(fan_in)),
    # PyTorch layout: W1 (1000, 2), b1 (1000,), W2 (1, 1000), b2 (1,).
    k1, k2, k3, k4 = jax.random.split(key, 4)
    bound1 = 1.0 / jnp.sqrt(2.0)
    bound2 = 1.0 / jnp.sqrt(float(HIDDEN))
    w1_pt = jax.random.uniform(k1, (HIDDEN, 2), jnp.float32, -bound1, bound1)
    b1_pt = jax.random.uniform(k2, (HIDDEN,), jnp.float32, -bound1, bound1)
    w2_pt = jax.random.uniform(k3, (1, HIDDEN), jnp.float32, -bound2, bound2)
    b2_pt = jax.random.uniform(k4, (1,), jnp.float32, -bound2, bound2)
    return w1_pt, b1_pt, w2_pt, b2_pt


def prepare_params(w1_pt, b1_pt, w2_pt, b2_pt):
    """PyTorch-layout params -> zero-padded kernel-layout params (done once)."""
    pad_h = HIDDEN_PAD - HIDDEN
    w1 = jnp.pad(w1_pt.astype(jnp.float32), ((0, pad_h), (0, 0)))        # (1024, 2)
    b1 = jnp.pad(b1_pt.astype(jnp.float32), (0, pad_h))[:, None]         # (1024, 1)
    # Padded W2 rows MUST be zero so padded hidden units (sigmoid(0)=0.5)
    # contribute nothing to the output.
    w2 = jnp.pad(w2_pt.astype(jnp.float32).T, ((0, pad_h), (0, 0)))      # (1024, 1)
    b2 = b2_pt.astype(jnp.float32).reshape(1, 1)                         # (1, 1)
    return w1, b1, w2, b2


def xor_forward(x, w1, b1, w2, b2, *, tile_b=1024, bf16_hidden=False):
    """x: (B, 2) f32.  Returns (B, 1) f32, matching the PyTorch forward."""
    B = x.shape[0]
    H = w1.shape[0]                                  # 1024

    # Lane-dim tiles must be multiples of 128 (guard caller-supplied tile_b).
    tile_b = max(128, _round_up(tile_b, 128))
    b128 = _round_up(B, 128)
    if b128 <= tile_b:
        # Batch fits a single tile: split into (up to) two tiles so the
        # "parallel" grid axis can shard across v7x's two TensorCores.
        tb = max(128, _round_up(pl.cdiv(B, 2), 128))
    else:
        tb = tile_b
    b_pad = _round_up(B, tb)
    grid = (b_pad // tb,)

    # Batch on lanes: (B, 2) -> zero-pad rows -> transpose -> (2, B_pad).
    xt = jnp.pad(x.astype(jnp.float32), ((0, b_pad - B), (0, 0))).T

    # Per-step VMEM: weights ~12 KiB resident + 2x (2,tb)+(1,tb) f32 tiles +
    # one (CHUNK, tb) chunk intermediate -> well under every gen's scoped limit,
    # including v7x's 32 MiB default, even at tile_b=2048.
    kernel = functools.partial(xor_kernel, bf16_hidden=bf16_hidden)

    out = pl.pallas_call(
        kernel,
        out_shape=jax.ShapeDtypeStruct((1, b_pad), jnp.float32),
        grid_spec=pltpu.PrefetchScalarGridSpec(
            num_scalar_prefetch=0,
            grid=grid,
            in_specs=[
                pl.BlockSpec((2, tb), lambda i: (0, i)),   # x tile (double-buffered)
                pl.BlockSpec((H, 2), lambda i: (0, 0)),    # W1 (VMEM-resident)
                pl.BlockSpec((H, 1), lambda i: (0, 0)),    # b1
                pl.BlockSpec((H, 1), lambda i: (0, 0)),    # W2 (padded rows zero)
                pl.BlockSpec((1, 1), lambda i: (0, 0)),    # b2
            ],
            out_specs=pl.BlockSpec((1, tb), lambda i: (0, i)),  # lane-dense output
        ),
        compiler_params=pltpu.CompilerParams(
            dimension_semantics=("parallel",),  # shard batch tiles across TCs (v7x)
        ),
    )(xt, w1, b1, w2, b2)

    # Back to PyTorch's (B, 1) shape; drop batch padding.
    return out[0, :B, None]


if __name__ == "__main__":
    key = jax.random.PRNGKey(0)
    pkey, xkey = jax.random.split(key)
    w1_pt, b1_pt, w2_pt, b2_pt = init_params(pkey)
    w1, b1, w2, b2 = prepare_params(w1_pt, b1_pt, w2_pt, b2_pt)

    # Small batch of 2-dimensional XOR-style inputs.
    B = 8
    x = jax.random.uniform(xkey, (B, 2), jnp.float32)

    # Pure-JAX reference of the PyTorch forward (full f32 precision).
    h_ref = jax.nn.sigmoid(
        jnp.dot(x, w1_pt.T, precision=lax.Precision.HIGHEST) + b1_pt[None, :])
    ref = jax.nn.sigmoid(
        jnp.dot(h_ref, w2_pt.T, precision=lax.Precision.HIGHEST) + b2_pt[None, :])

    # Default (f32, exact) path — portable to v5e.
    out = jax.block_until_ready(xor_forward(x, w1, b1, w2, b2))
    assert out.shape == (B, 1)
    assert jnp.allclose(out, ref, atol=1e-5), "f32 path mismatch vs reference"

    # bf16-hidden fast path (intended for v6e/v7x; still correct everywhere,
    # just with bf16 rounding on the hidden activation).
    out_bf16 = jax.block_until_ready(
        xor_forward(x, w1, b1, w2, b2, bf16_hidden=True))
    assert out_bf16.shape == (B, 1)
    assert jnp.allclose(out_bf16, ref, atol=2e-2), "bf16 path mismatch vs reference"

    print("KERNEL_OK")
</pallas_src>

<mosaic_0001>
module attributes {stable_mosaic.version = 11 : i64} {
  func.func @xor_kernel(%arg0: i32, %arg1: memref<2x128xf32, #tpu.memory_space<vmem>>, %arg2: memref<1024x2xf32, #tpu.memory_space<vmem>>, %arg3: memref<1024x1xf32, #tpu.memory_space<vmem>>, %arg4: memref<1024x1xf32, #tpu.memory_space<vmem>>, %arg5: memref<1x1xf32, #tpu.memory_space<vmem>>, %arg6: memref<1x128xf32, #tpu.memory_space<vmem>>) attributes {dimension_semantics = [#tpu.dimension_semantics<parallel>], iteration_bounds = array<i64: 1>, scalar_prefetch = 0 : i64, scratch_operands = 0 : i64, tpu.core_type = #tpu.core_type<tc>, window_params = [{transform_indices = @transform_0, window_bounds = array<i64: 2, 128>}, {pipeline_mode = #tpu.pipeline_mode<synchronous>, transform_indices = @transform_1, window_bounds = array<i64: 1024, 2>}, {pipeline_mode = #tpu.pipeline_mode<synchronous>, transform_indices = @transform_2, window_bounds = array<i64: 1024, 1>}, {pipeline_mode = #tpu.pipeline_mode<synchronous>, transform_indices = @transform_3, window_bounds = array<i64: 1024, 1>}, {pipeline_mode = #tpu.pipeline_mode<synchronous>, transform_indices = @transform_4, window_bounds = array<i64: 1, 1>}, {transform_indices = @transform_5, window_bounds = array<i64: 1, 128>}]} {
    %c0 = arith.constant 0 : index
    %c0_0 = arith.constant 0 : index
    %0 = vector.load %arg1[%c0, %c0_0] : memref<2x128xf32, #tpu.memory_space<vmem>>, vector<1x128xf32>
    %c1 = arith.constant 1 : index
    %c0_1 = arith.constant 0 : index
    %1 = vector.load %arg1[%c1, %c0_1] : memref<2x128xf32, #tpu.memory_space<vmem>>, vector<1x128xf32>
    %cst = arith.constant 0.000000e+00 : f32
    %2 = vector.broadcast %cst : f32 to vector<1x128xf32>
    %c0_i32 = arith.constant 0 : i32
    %c128_i32 = arith.constant 128 : i32
    %3 = arith.muli %c0_i32, %c128_i32 : i32
    %4 = tpu.assume_multiple %3, 128 : i32
    %5 = arith.index_cast %4 : i32 to index
    %c0_2 = arith.constant 0 : index
    %6 = vector.load %arg2[%5, %c0_2] : memref<1024x2xf32, #tpu.memory_space<vmem>>, vector<128x1xf32>
    %7 = arith.index_cast %4 : i32 to index
    %c1_3 = arith.constant 1 : index
    %8 = vector.load %arg2[%7, %c1_3] : memref<1024x2xf32, #tpu.memory_space<vmem>>, vector<128x1xf32>
    %9 = arith.index_cast %4 : i32 to index
    %c0_4 = arith.constant 0 : index
    %10 = vector.load %arg3[%9, %c0_4] : memref<1024x1xf32, #tpu.memory_space<vmem>>, vector<128x1xf32>
    %11 = arith.index_cast %4 : i32 to index
    %c0_5 = arith.constant 0 : index
    %12 = vector.load %arg4[%11, %c0_5] : memref<1024x1xf32, #tpu.memory_space<vmem>>, vector<128x1xf32>
    %13 = vector.broadcast %6 : vector<128x1xf32> to vector<128x128xf32>
    %14 = vector.broadcast %0 : vector<1x128xf32> to vector<128x128xf32>
    %15 = arith.mulf %13, %14 : vector<128x128xf32>
    %16 = vector.broadcast %8 : vector<128x1xf32> to vector<128x128xf32>
    %17 = vector.broadcast %1 : vector<1x128xf32> to vector<128x128xf32>
    %18 = arith.mulf %16, %17 : vector<128x128xf32>
    %19 = arith.addf %15, %18 : vector<128x128xf32>
    %20 = vector.broadcast %10 : vector<128x1xf32> to vector<128x128xf32>
    %21 = arith.addf %19, %20 : vector<128x128xf32>
    %cst_6 = arith.constant 5.000000e-01 : f32
    %22 = vector.broadcast %cst_6 : f32 to vector<128x128xf32>
    %23 = arith.mulf %22, %21 : vector<128x128xf32>
    %24 = math.tanh %23 : vector<128x128xf32>
    %cst_7 = arith.constant 5.000000e-01 : f32
    %25 = vector.broadcast %cst_7 : f32 to vector<128x128xf32>
    %26 = arith.mulf %25, %24 : vector<128x128xf32>
    %cst_8 = arith.constant 5.000000e-01 : f32
    %27 = vector.broadcast %cst_8 : f32 to vector<128x128xf32>
    %28 = arith.addf %26, %27 : vector<128x128xf32>
    %29 = vector.broadcast %12 : vector<128x1xf32> to vector<128x128xf32>
    %30 = arith.mulf %28, %29 : vector<128x128xf32>
    %cst_9 = arith.constant dense<0.000000e+00> : vector<128xf32>
    %31 = vector.multi_reduction <add>, %30, %cst_9 [0] : vector<128x128xf32> to vector<128xf32>
    %32 = vector.shape_cast %31 : vector<128xf32> to vector<1x128xf32>
    %33 = arith.addf %2, %32 : vector<1x128xf32>
    %c1_i32 = arith.constant 1 : i32
    %c128_i32_10 = arith.constant 128 : i32
    %34 = arith.muli %c1_i32, %c128_i32_10 : i32
    %35 = tpu.assume_multiple %34, 128 : i32
    %36 = arith.index_cast %35 : i32 to index
    %c0_11 = arith.constant 0 : index
    %37 = vector.load %arg2[%36, %c0_11] : memref<1024x2xf32, #tpu.memory_space<vmem>>, vector<128x1xf32>
    %38 = arith.index_cast %35 : i32 to index
    %c1_12 = arith.constant 1 : index
    %39 = vector.load %arg2[%38, %c1_12] : memref<1024x2xf32, #tpu.memory_space<vmem>>, vector<128x1xf32>
    %40 = arith.index_cast %35 : i32 to index
    %c0_13 = arith.constant 0 : index
    %41 = vector.load %arg3[%40, %c0_13] : memref<1024x1xf32, #tpu.memory_space<vmem>>, vector<128x1xf32>
    %42 = arith.index_cast %35 : i32 to index
    %c0_14 = arith.constant 0 : index
    %43 = vector.load %arg4[%42, %c0_14] : memref<1024x1xf32, #tpu.memory_space<vmem>>, vector<128x1xf32>
    %44 = vector.broadcast %37 : vector<128x1xf32> to vector<128x128xf32>
    %45 = vector.broadcast %0 : vector<1x128xf32> to vector<128x128xf32>
    %46 = arith.mulf %44, %45 : vector<128x128xf32>
    %47 = vector.broadcast %39 : vector<128x1xf32> to vector<128x128xf32>
    %48 = vector.broadcast %1 : vector<1x128xf32> to vector<128x128xf32>
    %49 = arith.mulf %47, %48 : vector<128x128xf32>
    %50 = arith.addf %46, %49 : vector<128x128xf32>
    %51 = vector.broadcast %41 : vector<128x1xf32> to vector<128x128xf32>
    %52 = arith.addf %50, %51 : vector<128x128xf32>
    %cst_15 = arith.constant 5.000000e-01 : f32
    %53 = vector.broadcast %cst_15 : f32 to vector<128x128xf32>
    %54 = arith.mulf %53, %52 : vector<128x128xf32>
    %55 = math.tanh %54 : vector<128x128xf32>
    %cst_16 = arith.constant 5.000000e-01 : f32
    %56 = vector.broadcast %cst_16 : f32 to vector<128x128xf32>
    %57 = arith.mulf %56, %55 : vector<128x128xf32>
    %cst_17 = arith.constant 5.000000e-01 : f32
    %58 = vector.broadcast %cst_17 : f32 to vector<128x128xf32>
    %59 = arith.addf %57, %58 : vector<128x128xf32>
    %60 = vector.broadcast %43 : vector<128x1xf32> to vector<128x128xf32>
    %61 = arith.mulf %59, %60 : vector<128x128xf32>
    %cst_18 = arith.constant dense<0.000000e+00> : vector<128xf32>
    %62 = vector.multi_reduction <add>, %61, %cst_18 [0] : vector<128x128xf32> to vector<128xf32>
    %63 = vector.shape_cast %62 : vector<128xf32> to vector<1x128xf32>
    %64 = arith.addf %33, %63 : vector<1x128xf32>
    %c2_i32 = arith.constant 2 : i32
    %c128_i32_19 = arith.constant 128 : i32
    %65 = arith.muli %c2_i32, %c128_i32_19 : i32
    %66 = tpu.assume_multiple %65, 128 : i32
    %67 = arith.index_cast %66 : i32 to index
    %c0_20 = arith.constant 0 : index
    %68 = vector.load %arg2[%67, %c0_20] : memref<1024x2xf32, #tpu.memory_space<vmem>>, vector<128x1xf32>
    %69 = arith.index_cast %66 : i32 to index
    %c1_21 = arith.constant 1 : index
    %70 = vector.load %arg2[%69, %c1_21] : memref<1024x2xf32, #tpu.memory_space<vmem>>, vector<128x1xf32>
    %71 = arith.index_cast %66 : i32 to index
    %c0_22 = arith.constant 0 : index
    %72 = vector.load %arg3[%71, %c0_22] : memref<1024x1xf32, #tpu.memory_space<vmem>>, vector<128x1xf32>
    %73 = arith.index_cast %66 : i32 to index
    %c0_23 = arith.constant 0 : index
    %74 = vector.load %arg4[%73, %c0_23] : memref<1024x1xf32, #tpu.memory_space<vmem>>, vector<128x1xf32>
    %75 = vector.broadcast %68 : vector<128x1xf32> to vector<128x128xf32>
    %76 = vector.broadcast %0 : vector<1x128xf32> to vector<128x128xf32>
    %77 = arith.mulf %75, %76 : vector<128x128xf32>
    %78 = vector.broadcast %70 : vector<128x1xf32> to vector<128x128xf32>
    %79 = vector.broadcast %1 : vector<1x128xf32> to vector<128x128xf32>
    %80 = arith.mulf %78, %79 : vector<128x128xf32>
    %81 = arith.addf %77, %80 : vector<128x128xf32>
    %82 = vector.broadcast %72 : vector<128x1xf32> to vector<128x128xf32>
    %83 = arith.addf %81, %82 : vector<128x128xf32>
    %cst_24 = arith.constant 5.000000e-01 : f32
    %84 = vector.broadcast %cst_24 : f32 to vector<128x128xf32>
    %85 = arith.mulf %84, %83 : vector<128x128xf32>
    %86 = math.tanh %85 : vector<128x128xf32>
    %cst_25 = arith.constant 5.000000e-01 : f32
    %87 = vector.broadcast %cst_25 : f32 to vector<128x128xf32>
    %88 = arith.mulf %87, %86 : vector<128x128xf32>
    %cst_26 = arith.constant 5.000000e-01 : f32
    %89 = vector.broadcast %cst_26 : f32 to vector<128x128xf32>
    %90 = arith.addf %88, %89 : vector<128x128xf32>
    %91 = vector.broadcast %74 : vector<128x1xf32> to vector<128x128xf32>
    %92 = arith.mulf %90, %91 : vector<128x128xf32>
    %cst_27 = arith.constant dense<0.000000e+00> : vector<128xf32>
    %93 = vector.multi_reduction <add>, %92, %cst_27 [0] : vector<128x128xf32> to vector<128xf32>
    %94 = vector.shape_cast %93 : vector<128xf32> to vector<1x128xf32>
    %95 = arith.addf %64, %94 : vector<1x128xf32>
    %c3_i32 = arith.constant 3 : i32
    %c128_i32_28 = arith.constant 128 : i32
    %96 = arith.muli %c3_i32, %c128_i32_28 : i32
    %97 = tpu.assume_multiple %96, 128 : i32
    %98 = arith.index_cast %97 : i32 to index
    %c0_29 = arith.constant 0 : index
    %99 = vector.load %arg2[%98, %c0_29] : memref<1024x2xf32, #tpu.memory_space<vmem>>, vector<128x1xf32>
    %100 = arith.index_cast %97 : i32 to index
    %c1_30 = arith.constant 1 : index
    %101 = vector.load %arg2[%100, %c1_30] : memref<1024x2xf32, #tpu.memory_space<vmem>>, vector<128x1xf32>
    %102 = arith.index_cast %97 : i32 to index
    %c0_31 = arith.constant 0 : index
    %103 = vector.load %arg3[%102, %c0_31] : memref<1024x1xf32, #tpu.memory_space<vmem>>, vector<128x1xf32>
    %104 = arith.index_cast %97 : i32 to index
    %c0_32 = arith.constant 0 : index
    %105 = vector.load %arg4[%104, %c0_32] : memref<1024x1xf32, #tpu.memory_space<vmem>>, vector<128x1xf32>
    %106 = vector.broadcast %99 : vector<128x1xf32> to vector<128x128xf32>
    %107 = vector.broadcast %0 : vector<1x128xf32> to vector<128x128xf32>
    %108 = arith.mulf %106, %107 : vector<128x128xf32>
    %109 = vector.broadcast %101 : vector<128x1xf32> to vector<128x128xf32>
    %110 = vector.broadcast %1 : vector<1x128xf32> to vector<128x128xf32>
    %111 = arith.mulf %109, %110 : vector<128x128xf32>
    %112 = arith.addf %108, %111 : vector<128x128xf32>
    %113 = vector.broadcast %103 : vector<128x1xf32> to vector<128x128xf32>
    %114 = arith.addf %112, %113 : vector<128x128xf32>
    %cst_33 = arith.constant 5.000000e-01 : f32
    %115 = vector.broadcast %cst_33 : f32 to vector<128x128xf32>
    %116 = arith.mulf %115, %114 : vector<128x128xf32>
    %117 = math.tanh %116 : vector<128x128xf32>
    %cst_34 = arith.constant 5.000000e-01 : f32
    %118 = vector.broadcast %cst_34 : f32 to vector<128x128xf32>
    %119 = arith.mulf %118, %117 : vector<128x128xf32>
    %cst_35 = arith.constant 5.000000e-01 : f32
    %120 = vector.broadcast %cst_35 : f32 to vector<128x128xf32>
    %121 = arith.addf %119, %120 : vector<128x128xf32>
    %122 = vector.broadcast %105 : vector<128x1xf32> to vector<128x128xf32>
    %123 = arith.mulf %121, %122 : vector<128x128xf32>
    %cst_36 = arith.constant dense<0.000000e+00> : vector<128xf32>
    %124 = vector.multi_reduction <add>, %123, %cst_36 [0] : vector<128x128xf32> to vector<128xf32>
    %125 = vector.shape_cast %124 : vector<128xf32> to vector<1x128xf32>
    %126 = arith.addf %95, %125 : vector<1x128xf32>
    %c4_i32 = arith.constant 4 : i32
    %c128_i32_37 = arith.constant 128 : i32
    %127 = arith.muli %c4_i32, %c128_i32_37 : i32
    %128 = tpu.assume_multiple %127, 128 : i32
    %129 = arith.index_cast %128 : i32 to index
    %c0_38 = arith.constant 0 : index
    %130 = vector.load %arg2[%129, %c0_38] : memref<1024x2xf32, #tpu.memory_space<vmem>>, vector<128x1xf32>
    %131 = arith.index_cast %128 : i32 to index
    %c1_39 = arith.constant 1 : index
    %132 = vector.load %arg2[%131, %c1_39] : memref<1024x2xf32, #tpu.memory_space<vmem>>, vector<128x1xf32>
    %133 = arith.index_cast %128 : i32 to index
    %c0_40 = arith.constant 0 : index
    %134 = vector.load %arg3[%133, %c0_40] : memref<1024x1xf32, #tpu.memory_space<vmem>>, vector<128x1xf32>
    %135 = arith.index_cast %128 : i32 to index
    %c0_41 = arith.constant 0 : index
    %136 = vector.load %arg4[%135, %c0_41] : memref<1024x1xf32, #tpu.memory_space<vmem>>, vector<128x1xf32>
    %137 = vector.broadcast %130 : vector<128x1xf32> to vector<128x128xf32>
    %138 = vector.broadcast %0 : vector<1x128xf32> to vector<128x128xf32>
    %139 = arith.mulf %137, %138 : vector<128x128xf32>
    %140 = vector.broadcast %132 : vector<128x1xf32> to vector<128x128xf32>
    %141 = vector.broadcast %1 : vector<1x128xf32> to vector<128x128xf32>
    %142 = arith.mulf %140, %141 : vector<128x128xf32>
    %143 = arith.addf %139, %142 : vector<128x128xf32>
    %144 = vector.broadcast %134 : vector<128x1xf32> to vector<128x128xf32>
    %145 = arith.addf %143, %144 : vector<128x128xf32>
    %cst_42 = arith.constant 5.000000e-01 : f32
    %146 = vector.broadcast %cst_42 : f32 to vector<128x128xf32>
    %147 = arith.mulf %146, %145 : vector<128x128xf32>
    %148 = math.tanh %147 : vector<128x128xf32>
    %cst_43 = arith.constant 5.000000e-01 : f32
    %149 = vector.broadcast %cst_43 : f32 to vector<128x128xf32>
    %150 = arith.mulf %149, %148 : vector<128x128xf32>
    %cst_44 = arith.constant 5.000000e-01 : f32
    %151 = vector.broadcast %cst_44 : f32 to vector<128x128xf32>
    %152 = arith.addf %150, %151 : vector<128x128xf32>
    %153 = vector.broadcast %136 : vector<128x1xf32> to vector<128x128xf32>
    %154 = arith.mulf %152, %153 : vector<128x128xf32>
    %cst_45 = arith.constant dense<0.000000e+00> : vector<128xf32>
    %155 = vector.multi_reduction <add>, %154, %cst_45 [0] : vector<128x128xf32> to vector<128xf32>
    %156 = vector.shape_cast %155 : vector<128xf32> to vector<1x128xf32>
    %157 = arith.addf %126, %156 : vector<1x128xf32>
    %c5_i32 = arith.constant 5 : i32
    %c128_i32_46 = arith.constant 128 : i32
    %158 = arith.muli %c5_i32, %c128_i32_46 : i32
    %159 = tpu.assume_multiple %158, 128 : i32
    %160 = arith.index_cast %159 : i32 to index
    %c0_47 = arith.constant 0 : index
    %161 = vector.load %arg2[%160, %c0_47] : memref<1024x2xf32, #tpu.memory_space<vmem>>, vector<128x1xf32>
    %162 = arith.index_cast %159 : i32 to index
    %c1_48 = arith.constant 1 : index
    %163 = vector.load %arg2[%162, %c1_48] : memref<1024x2xf32, #tpu.memory_space<vmem>>, vector<128x1xf32>
    %164 = arith.index_cast %159 : i32 to index
    %c0_49 = arith.constant 0 : index
    %165 = vector.load %arg3[%164, %c0_49] : memref<1024x1xf32, #tpu.memory_space<vmem>>, vector<128x1xf32>
    %166 = arith.index_cast %159 : i32 to index
    %c0_50 = arith.constant 0 : index
    %167 = vector.load %arg4[%166, %c0_50] : memref<1024x1xf32, #tpu.memory_space<vmem>>, vector<128x1xf32>
    %168 = vector.broadcast %161 : vector<128x1xf32> to vector<128x128xf32>
    %169 = vector.broadcast %0 : vector<1x128xf32> to vector<128x128xf32>
    %170 = arith.mulf %168, %169 : vector<128x128xf32>
    %171 = vector.broadcast %163 : vector<128x1xf32> to vector<128x128xf32>
    %172 = vector.broadcast %1 : vector<1x128xf32> to vector<128x128xf32>
    %173 = arith.mulf %171, %172 : vector<128x128xf32>
    %174 = arith.addf %170, %173 : vector<128x128xf32>
    %175 = vector.broadcast %165 : vector<128x1xf32> to vector<128x128xf32>
    %176 = arith.addf %174, %175 : vector<128x128xf32>
    %cst_51 = arith.constant 5.000000e-01 : f32
    %177 = vector.broadcast %cst_51 : f32 to vector<128x128xf32>
    %178 = arith.mulf %177, %176 : vector<128x128xf32>
    %179 = math.tanh %178 : vector<128x128xf32>
    %cst_52 = arith.constant 5.000000e-01 : f32
    %180 = vector.broadcast %cst_52 : f32 to vector<128x128xf32>
    %181 = arith.mulf %180, %179 : vector<128x128xf32>
    %cst_53 = arith.constant 5.000000e-01 : f32
    %182 = vector.broadcast %cst_53 : f32 to vector<128x128xf32>
    %183 = arith.addf %181, %182 : vector<128x128xf32>
    %184 = vector.broadcast %167 : vector<128x1xf32> to vector<128x128xf32>
    %185 = arith.mulf %183, %184 : vector<128x128xf32>
    %cst_54 = arith.constant dense<0.000000e+00> : vector<128xf32>
    %186 = vector.multi_reduction <add>, %185, %cst_54 [0] : vector<128x128xf32> to vector<128xf32>
    %187 = vector.shape_cast %186 : vector<128xf32> to vector<1x128xf32>
    %188 = arith.addf %157, %187 : vector<1x128xf32>
    %c6_i32 = arith.constant 6 : i32
    %c128_i32_55 = arith.constant 128 : i32
    %189 = arith.muli %c6_i32, %c128_i32_55 : i32
    %190 = tpu.assume_multiple %189, 128 : i32
    %191 = arith.index_cast %190 : i32 to index
    %c0_56 = arith.constant 0 : index
    %192 = vector.load %arg2[%191, %c0_56] : memref<1024x2xf32, #tpu.memory_space<vmem>>, vector<128x1xf32>
    %193 = arith.index_cast %190 : i32 to index
    %c1_57 = arith.constant 1 : index
    %194 = vector.load %arg2[%193, %c1_57] : memref<1024x2xf32, #tpu.memory_space<vmem>>, vector<128x1xf32>
    %195 = arith.index_cast %190 : i32 to index
    %c0_58 = arith.constant 0 : index
    %196 = vector.load %arg3[%195, %c0_58] : memref<1024x1xf32, #tpu.memory_space<vmem>>, vector<128x1xf32>
    %197 = arith.index_cast %190 : i32 to index
    %c0_59 = arith.constant 0 : index
    %198 = vector.load %arg4[%197, %c0_59] : memref<1024x1xf32, #tpu.memory_space<vmem>>, vector<128x1xf32>
    %199 = vector.broadcast %192 : vector<128x1xf32> to vector<128x128xf32>
    %200 = vector.broadcast %0 : vector<1x128xf32> to vector<128x128xf32>
    %201 = arith.mulf %199, %200 : vector<128x128xf32>
    %202 = vector.broadcast %194 : vector<128x1xf32> to vector<128x128xf32>
    %203 = vector.broadcast %1 : vector<1x128xf32> to vector<128x128xf32>
    %204 = arith.mulf %202, %203 : vector<128x128xf32>
    %205 = arith.addf %201, %204 : vector<128x128xf32>
    %206 = vector.broadcast %196 : vector<128x1xf32> to vector<128x128xf32>
    %207 = arith.addf %205, %206 : vector<128x128xf32>
    %cst_60 = arith.constant 5.000000e-01 : f32
    %208 = vector.broadcast %cst_60 : f32 to vector<128x128xf32>
    %209 = arith.mulf %208, %207 : vector<128x128xf32>
    %210 = math.tanh %209 : vector<128x128xf32>
    %cst_61 = arith.constant 5.000000e-01 : f32
    %211 = vector.broadcast %cst_61 : f32 to vector<128x128xf32>
    %212 = arith.mulf %211, %210 : vector<128x128xf32>
    %cst_62 = arith.constant 5.000000e-01 : f32
    %213 = vector.broadcast %cst_62 : f32 to vector<128x128xf32>
    %214 = arith.addf %212, %213 : vector<128x128xf32>
    %215 = vector.broadcast %198 : vector<128x1xf32> to vector<128x128xf32>
    %216 = arith.mulf %214, %215 : vector<128x128xf32>
    %cst_63 = arith.constant dense<0.000000e+00> : vector<128xf32>
    %217 = vector.multi_reduction <add>, %216, %cst_63 [0] : vector<128x128xf32> to vector<128xf32>
    %218 = vector.shape_cast %217 : vector<128xf32> to vector<1x128xf32>
    %219 = arith.addf %188, %218 : vector<1x128xf32>
    %c7_i32 = arith.constant 7 : i32
    %c128_i32_64 = arith.constant 128 : i32
    %220 = arith.muli %c7_i32, %c128_i32_64 : i32
    %221 = tpu.assume_multiple %220, 128 : i32
    %222 = arith.index_cast %221 : i32 to index
    %c0_65 = arith.constant 0 : index
    %223 = vector.load %arg2[%222, %c0_65] : memref<1024x2xf32, #tpu.memory_space<vmem>>, vector<128x1xf32>
    %224 = arith.index_cast %221 : i32 to index
    %c1_66 = arith.constant 1 : index
    %225 = vector.load %arg2[%224, %c1_66] : memref<1024x2xf32, #tpu.memory_space<vmem>>, vector<128x1xf32>
    %226 = arith.index_cast %221 : i32 to index
    %c0_67 = arith.constant 0 : index
    %227 = vector.load %arg3[%226, %c0_67] : memref<1024x1xf32, #tpu.memory_space<vmem>>, vector<128x1xf32>
    %228 = arith.index_cast %221 : i32 to index
    %c0_68 = arith.constant 0 : index
    %229 = vector.load %arg4[%228, %c0_68] : memref<1024x1xf32, #tpu.memory_space<vmem>>, vector<128x1xf32>
    %230 = vector.broadcast %223 : vector<128x1xf32> to vector<128x128xf32>
    %231 = vector.broadcast %0 : vector<1x128xf32> to vector<128x128xf32>
    %232 = arith.mulf %230, %231 : vector<128x128xf32>
    %233 = vector.broadcast %225 : vector<128x1xf32> to vector<128x128xf32>
    %234 = vector.broadcast %1 : vector<1x128xf32> to vector<128x128xf32>
    %235 = arith.mulf %233, %234 : vector<128x128xf32>
    %236 = arith.addf %232, %235 : vector<128x128xf32>
    %237 = vector.broadcast %227 : vector<128x1xf32> to vector<128x128xf32>
    %238 = arith.addf %236, %237 : vector<128x128xf32>
    %cst_69 = arith.constant 5.000000e-01 : f32
    %239 = vector.broadcast %cst_69 : f32 to vector<128x128xf32>
    %240 = arith.mulf %239, %238 : vector<128x128xf32>
    %241 = math.tanh %240 : vector<128x128xf32>
    %cst_70 = arith.constant 5.000000e-01 : f32
    %242 = vector.broadcast %cst_70 : f32 to vector<128x128xf32>
    %243 = arith.mulf %242, %241 : vector<128x128xf32>
    %cst_71 = arith.constant 5.000000e-01 : f32
    %244 = vector.broadcast %cst_71 : f32 to vector<128x128xf32>
    %245 = arith.addf %243, %244 : vector<128x128xf32>
    %246 = vector.broadcast %229 : vector<128x1xf32> to vector<128x128xf32>
    %247 = arith.mulf %245, %246 : vector<128x128xf32>
    %cst_72 = arith.constant dense<0.000000e+00> : vector<128xf32>
    %248 = vector.multi_reduction <add>, %247, %cst_72 [0] : vector<128x128xf32> to vector<128xf32>
    %249 = vector.shape_cast %248 : vector<128xf32> to vector<1x128xf32>
    %250 = arith.addf %219, %249 : vector<1x128xf32>
    %c8_i32 = arith.constant 8 : i32
    %c0_73 = arith.constant 0 : index
    %c0_74 = arith.constant 0 : index
    %251 = vector.load %arg5[%c0_73, %c0_74] : memref<1x1xf32, #tpu.memory_space<vmem>>, vector<1x1xf32>
    %252 = vector.broadcast %251 : vector<1x1xf32> to vector<1x128xf32>
    %253 = arith.addf %250, %252 : vector<1x128xf32>
    %254 = arith.negf %253 : vector<1x128xf32>
    %255 = math.exp %254 : vector<1x128xf32>
    %cst_75 = arith.constant 1.000000e+00 : f32
    %256 = vector.broadcast %cst_75 : f32 to vector<1x128xf32>
    %257 = arith.addf %256, %255 : vector<1x128xf32>
    %258 = arith.divf %256, %257 : vector<1x128xf32>
    %c0_76 = arith.constant 0 : index
    %c0_77 = arith.constant 0 : index
    %259 = vector.load %arg6[%c0_76, %c0_77] : memref<1x128xf32, #tpu.memory_space<vmem>>, vector<1x128xf32>
    tpu.vector_store %arg6[%c0_76, %c0_77], %258 {strides = array<i32>} : memref<1x128xf32, #tpu.memory_space<vmem>>, vector<1x128xf32>,
    return
  }
  func.func @transform_0(%arg0: i32) -> (i32, i32) {
    %c0_i32 = arith.constant 0 : i32
    %c0_i32_0 = arith.constant 0 : i32
    return %c0_i32, %arg0 : i32, i32
  }
  func.func @transform_1(%arg0: i32) -> (i32, i32) {
    %c0_i32 = arith.constant 0 : i32
    %c0_i32_0 = arith.constant 0 : i32
    %c0_i32_1 = arith.constant 0 : i32
    return %c0_i32, %c0_i32_0 : i32, i32
  }
  func.func @transform_2(%arg0: i32) -> (i32, i32) {
    %c0_i32 = arith.constant 0 : i32
    %c0_i32_0 = arith.constant 0 : i32
    %c0_i32_1 = arith.constant 0 : i32
    return %c0_i32, %c0_i32_0 : i32, i32
  }
  func.func @transform_3(%arg0: i32) -> (i32, i32) {
    %c0_i32 = arith.constant 0 : i32
    %c0_i32_0 = arith.constant 0 : i32
    %c0_i32_1 = arith.constant 0 : i32
    return %c0_i32, %c0_i32_0 : i32, i32
  }
  func.func @transform_4(%arg0: i32) -> (i32, i32) {
    %c0_i32 = arith.constant 0 : i32
    %c0_i32_0 = arith.constant 0 : i32
    %c0_i32_1 = arith.constant 0 : i32
    return %c0_i32, %c0_i32_0 : i32, i32
  }
  func.func @transform_5(%arg0: i32) -> (i32, i32) {
    %c0_i32 = arith.constant 0 : i32
    %c0_i32_0 = arith.constant 0 : i32
    return %c0_i32, %arg0 : i32, i32
  }
}

</mosaic_0001>

<llo_original>
// kernel: tpu_custom_call.1
$region0: #{tpu_custom_call.1}
  #allocation0 [shape = 'u32[]', space=smem, size = 0x4, offset = 0x4, fixed_abs, tag = 'smem constant byte address 0x4 - core index']
  #allocation1 [shape = 'u32[144,128]{1,0:T(1,128)}', space=vmem, size = 0x12000, scoped, tag = 'internal scratch']
  #allocation2 [shape = 'f32[1,1]{1,0:T(1,128)S(1)}', space=vmem, size = 0x200, scoped, tag = 'scoped memory for tpu_custom_call.1']
  %s0 = inlined_call_operand.vmem [shape: f32[2,128], index: 0, kind: input, shape index: {}]
  %s1 = inlined_call_operand.vmem [shape: f32[1024,2], index: 1, kind: input, shape index: {}]
  %s2 = inlined_call_operand.vmem [shape: f32[1024,1], index: 2, kind: input, shape index: {}]
  %s3 = inlined_call_operand.vmem [shape: f32[1024,1], index: 3, kind: input, shape index: {}]
  %s4 = inlined_call_operand.<no memory space> [shape: f32[1,1], index: 4, kind: input, shape index: {}]
  %s5 = inlined_call_operand.hbm [shape: f32[1,128], index: 5, kind: output, shape index: {}]
  %s6 = sld [smem:[#allocation0]]
  $region30: #{tpu_custom_call.1} parent=0
    _
  %s8 = ssub.s32 1, %s6
  %s9 = scalar_select 0, %s8, %s6
  %v10 = vstv %s4
  %11 = vst [vmem:[#allocation2] sm:$0x1] %v10
  $region1: #{tpu_custom_call.1} parent=0
    #allocation3 [shape = 'u8[512]{0}', space=vmem, size = 0x400, scoped, tag = 'output window, operand 0, single buffered']
    #allocation4 [shape = 's32[1]{0}', space=sflag, size = 0x4, scoped, tag = 'scoped memory for tpu_custom_call.1']
    %12 = vsyncpa [#allocation4], 0
    // Predicated region
    $region2: #{tpu_custom_call.1} parent=1 // pred_check
      _
    $region3: #{tpu_custom_call.1} parent=1 // pred_check_branch
      %14 = sbr.rel (0) target = $region5
    $region4: #{tpu_custom_call.1} parent=1 // pred_region
      _
    $region5: #{tpu_custom_call.1} parent=1 // pred_fallthru
      _
    // Predicated region
    $region6: #{tpu_custom_call.1} parent=1 // pred_check
      _
    $region7: #{tpu_custom_call.1} parent=1 // pred_check_branch
      %16 = sbr.rel (0) target = $region9
    $region8: #{tpu_custom_call.1} parent=1 // pred_region
      _
    $region9: #{tpu_custom_call.1} parent=1 // pred_fallthru
      _
    // Predicated region
    $region10: #{tpu_custom_call.1} parent=1 // pred_check
      _
    $region11: #{tpu_custom_call.1} parent=1 // pred_check_branch
      %18 = sbr.rel (0) target = $region13
    $region12: #{tpu_custom_call.1} parent=1 // pred_region
      _
    $region13: #{tpu_custom_call.1} parent=1 // pred_fallthru
      _
    // Predicated region
    $region14: #{tpu_custom_call.1} parent=1 // pred_check
      _
    $region15: #{tpu_custom_call.1} parent=1 // pred_check_branch
      %20 = sbr.rel (0) target = $region17
    $region16: #{tpu_custom_call.1} parent=1 // pred_region
      _
    $region17: #{tpu_custom_call.1} parent=1 // pred_fallthru
      _
    // Predicated region
    $region18: #{tpu_custom_call.1} parent=1 // pred_check
      _
    $region19: #{tpu_custom_call.1} parent=1 // pred_check_branch
      %22 = sbr.rel (0) target = $region21
    $region20: #{tpu_custom_call.1} parent=1 // pred_region
      _
    $region21: #{tpu_custom_call.1} parent=1 // pred_fallthru
      _
    %v23 = vld [vmem:[%s0] sm:$0x1]
    %v24 = vld [vmem:[%s0 + $0x1] sm:$0x1]
    %v25 = vld [vmem:[%s1] sm:$0xff]
    %v26 = vld [vmem:[%s1 + $0x8] sm:$0xff]
    %v27 = vld [vmem:[%s1 + $0x10] sm:$0xff]
    %v28 = vld [vmem:[%s1 + $0x18] sm:$0xff]
    %v29 = vld [vmem:[%s1 + $0x20] sm:$0xff]
    %v30 = vld [vmem:[%s1 + $0x28] sm:$0xff]
    %v31 = vld [vmem:[%s1 + $0x30] sm:$0xff]
    %v32 = vld [vmem:[%s1 + $0x38] sm:$0xff]
    %v33 = vld [vmem:[%s1 + $0x40] sm:$0xff]
    %v34 = vld [vmem:[%s1 + $0x48] sm:$0xff]
    %v35 = vld [vmem:[%s1 + $0x50] sm:$0xff]
    %v36 = vld [vmem:[%s1 + $0x58] sm:$0xff]
    %v37 = vld [vmem:[%s1 + $0x60] sm:$0xff]
    %v38 = vld [vmem:[%s1 + $0x68] sm:$0xff]
    %v39 = vld [vmem:[%s1 + $0x70] sm:$0xff]
    %v40 = vld [vmem:[%s1 + $0x78] sm:$0xff]
    %v41 = vld [vmem:[%s2] sm:$0xff]
    %v42 = vld [vmem:[%s2 + $0x8] sm:$0xff]
    %v43 = vld [vmem:[%s2 + $0x10] sm:$0xff]
    %v44 = vld [vmem:[%s2 + $0x18] sm:$0xff]
    %v45 = vld [vmem:[%s2 + $0x20] sm:$0xff]
    %v46 = vld [vmem:[%s2 + $0x28] sm:$0xff]
    %v47 = vld [vmem:[%s2 + $0x30] sm:$0xff]
    %v48 = vld [vmem:[%s2 + $0x38] sm:$0xff]
    %v49 = vld [vmem:[%s2 + $0x40] sm:$0xff]
    %v50 = vld [vmem:[%s2 + $0x48] sm:$0xff]
    %v51 = vld [vmem:[%s2 + $0x50] sm:$0xff]
    %v52 = vld [vmem:[%s2 + $0x58] sm:$0xff]
    %v53 = vld [vmem:[%s2 + $0x60] sm:$0xff]
    %v54 = vld [vmem:[%s2 + $0x68] sm:$0xff]
    %v55 = vld [vmem:[%s2 + $0x70] sm:$0xff]
    %v56 = vld [vmem:[%s2 + $0x78] sm:$0xff]
    %v57 = vld [vmem:[%s3] sm:$0xff]
    %v58 = vld [vmem:[%s3 + $0x8] sm:$0xff]
    %v59 = vld [vmem:[%s3 + $0x10] sm:$0xff]
    %v60 = vld [vmem:[%s3 + $0x18] sm:$0xff]
    %v61 = vld [vmem:[%s3 + $0x20] sm:$0xff]
    %v62 = vld [vmem:[%s3 + $0x28] sm:$0xff]
    %v63 = vld [vmem:[%s3 + $0x30] sm:$0xff]
    %v64 = vld [vmem:[%s3 + $0x38] sm:$0xff]
    %v65 = vld [vmem:[%s3 + $0x40] sm:$0xff]
    %v66 = vld [vmem:[%s3 + $0x48] sm:$0xff]
    %v67 = vld [vmem:[%s3 + $0x50] sm:$0xff]
    %v68 = vld [vmem:[%s3 + $0x58] sm:$0xff]
    %v69 = vld [vmem:[%s3 + $0x60] sm:$0xff]
    %v70 = vld [vmem:[%s3 + $0x68] sm:$0xff]
    %v71 = vld [vmem:[%s3 + $0x70] sm:$0xff]
    %v72 = vld [vmem:[%s3 + $0x78] sm:$0xff]
    %74 = vset.pattern.permute.xlu0 0
    %75 = vperm.xlu0 %74, %v25
    %v76 = vpop.permute.xlu0 %75
    %79 = vset.pattern.permute.xlu0 0
    %80 = vperm.xlu0 %79, %v26
    %v81 = vpop.permute.xlu0 %80
    %84 = vset.pattern.permute.xlu0 0
    %85 = vperm.xlu0 %84, %v27
    %v86 = vpop.permute.xlu0 %85
    %89 = vset.pattern.permute.xlu0 0
    %90 = vperm.xlu0 %89, %v28
    %v91 = vpop.permute.xlu0 %90
    %94 = vset.pattern.permute.xlu0 0
    %95 = vperm.xlu0 %94, %v29
    %v96 = vpop.permute.xlu0 %95
    %99 = vset.pattern.permute.xlu0 0
    %100 = vperm.xlu0 %99, %v30
    %v101 = vpop.permute.xlu0 %100
    %104 = vset.pattern.permute.xlu0 0
    %105 = vperm.xlu0 %104, %v31
    %v106 = vpop.permute.xlu0 %105
    %109 = vset.pattern.permute.xlu0 0
    %110 = vperm.xlu0 %109, %v32
    %v111 = vpop.permute.xlu0 %110
    %114 = vset.pattern.permute.xlu0 0
    %115 = vperm.xlu0 %114, %v33
    %v116 = vpop.permute.xlu0 %115
    %119 = vset.pattern.permute.xlu0 0
    %120 = vperm.xlu0 %119, %v34
    %v121 = vpop.permute.xlu0 %120
    %124 = vset.pattern.permute.xlu0 0
    %125 = vperm.xlu0 %124, %v35
    %v126 = vpop.permute.xlu0 %125
    %129 = vset.pattern.permute.xlu0 0
    %130 = vperm.xlu0 %129, %v36
    %v131 = vpop.permute.xlu0 %130
    %134 = vset.pattern.permute.xlu0 0
    %135 = vperm.xlu0 %134, %v37
    %v136 = vpop.permute.xlu0 %135
    %139 = vset.pattern.permute.xlu0 0
    %140 = vperm.xlu0 %139, %v38
    %v141 = vpop.permute.xlu0 %140
    %144 = vset.pattern.permute.xlu0 0
    %145 = vperm.xlu0 %144, %v39
    %v146 = vpop.permute.xlu0 %145
    %149 = vset.pattern.permute.xlu0 0
    %150 = vperm.xlu0 %149, %v40
    %v151 = vpop.permute.xlu0 %150
    %v153 = vlaneseq
    %v154 = vshrl.u32 %v153, 7
    %v155 = vsub.s32 0, %v154
    %v156 = vrot.slane %v23, %v155
    %v157 = vmul.f32 %v76, %v156
    %v158 = vmul.f32 %v81, %v156
    %v159 = vmul.f32 %v86, %v156
    %v160 = vmul.f32 %v91, %v156
    %v161 = vmul.f32 %v96, %v156
    %v162 = vmul.f32 %v101, %v156
    %v163 = vmul.f32 %v106, %v156
    %v164 = vmul.f32 %v111, %v156
    %v165 = vmul.f32 %v116, %v156
    %v166 = vmul.f32 %v121, %v156
    %v167 = vmul.f32 %v126, %v156
    %v168 = vmul.f32 %v131, %v156
    %v169 = vmul.f32 %v136, %v156
    %v170 = vmul.f32 %v141, %v156
    %v171 = vmul.f32 %v146, %v156
    %v172 = vmul.f32 %v151, %v156
    %173 = vset.pattern.permute.xlu0 1
    %174 = vperm.xlu0 %173, %v25
    %v175 = vpop.permute.xlu0 %174
    %177 = vset.pattern.permute.xlu0 1
    %178 = vperm.xlu0 %177, %v26
    %v179 = vpop.permute.xlu0 %178
    %181 = vset.pattern.permute.xlu0 1
    %182 = vperm.xlu0 %181, %v27
    %v183 = vpop.permute.xlu0 %182
    %185 = vset.pattern.permute.xlu0 1
    %186 = vperm.xlu0 %185, %v28
    %v187 = vpop.permute.xlu0 %186
    %189 = vset.pattern.permute.xlu0 1
    %190 = vperm.xlu0 %189, %v29
    %v191 = vpop.permute.xlu0 %190
    %193 = vset.pattern.permute.xlu0 1
    %194 = vperm.xlu0 %193, %v30
    %v195 = vpop.permute.xlu0 %194
    %197 = vset.pattern.permute.xlu0 1
    %198 = vperm.xlu0 %197, %v31
    %v199 = vpop.permute.xlu0 %198
    %201 = vset.pattern.permute.xlu0 1
    %202 = vperm.xlu0 %201, %v32
    %v203 = vpop.permute.xlu0 %202
    %205 = vset.pattern.permute.xlu0 1
    %206 = vperm.xlu0 %205, %v33
    %v207 = vpop.permute.xlu0 %206
    %209 = vset.pattern.permute.xlu0 1
    %210 = vperm.xlu0 %209, %v34
    %v211 = vpop.permute.xlu0 %210
    %213 = vset.pattern.permute.xlu0 1
    %214 = vperm.xlu0 %213, %v35
    %v215 = vpop.permute.xlu0 %214
    %217 = vset.pattern.permute.xlu0 1
    %218 = vperm.xlu0 %217, %v36
    %v219 = vpop.permute.xlu0 %218
    %221 = vset.pattern.permute.xlu0 1
    %222 = vperm.xlu0 %221, %v37
    %v223 = vpop.permute.xlu0 %222
    %225 = vset.pattern.permute.xlu0 1
    %226 = vperm.xlu0 %225, %v38
    %v227 = vpop.permute.xlu0 %226
    %229 = vset.pattern.permute.xlu0 1
    %230 = vperm.xlu0 %229, %v39
    %v231 = vpop.permute.xlu0 %230
    %233 = vset.pattern.permute.xlu0 1
    %234 = vperm.xlu0 %233, %v40
    %v235 = vpop.permute.xlu0 %234
    %v237 = vlaneseq
    %v238 = vshrl.u32 %v237, 7
    %v239 = vsub.s32 0, %v238
    %v240 = vrot.slane %v24, %v239
    %v241 = vmul.f32 %v175, %v240
    %v242 = vmul.f32 %v179, %v240
    %v243 = vmul.f32 %v183, %v240
    %v244 = vmul.f32 %v187, %v240
    %v245 = vmul.f32 %v191, %v240
    %v246 = vmul.f32 %v195, %v240
    %v247 = vmul.f32 %v199, %v240
    %v248 = vmul.f32 %v203, %v240
    %v249 = vmul.f32 %v207, %v240
    %v250 = vmul.f32 %v211, %v240
    %v251 = vmul.f32 %v215, %v240
    %v252 = vmul.f32 %v219, %v240
    %v253 = vmul.f32 %v223, %v240
    %v254 = vmul.f32 %v227, %v240
    %v255 = vmul.f32 %v231, %v240
    %v256 = vmul.f32 %v235, %v240
    %v257 = vadd.f32 %v157, %v241
    %v258 = vadd.f32 %v158, %v242
    %v259 = vadd.f32 %v159, %v243
    %v260 = vadd.f32 %v160, %v244
    %v261 = vadd.f32 %v161, %v245
    %v262 = vadd.f32 %v162, %v246
    %v263 = vadd.f32 %v163, %v247
    %v264 = vadd.f32 %v164, %v248
    %v265 = vadd.f32 %v165, %v249
    %v266 = vadd.f32 %v166, %v250
    %v267 = vadd.f32 %v167, %v251
    %v268 = vadd.f32 %v168, %v252
    %v269 = vadd.f32 %v169, %v253
    %v270 = vadd.f32 %v170, %v254
    %v271 = vadd.f32 %v171, %v255
    %v272 = vadd.f32 %v172, %v256
    %274 = vset.pattern.permute.xlu0 0
    %275 = vperm.xlu0 %274, %v41
    %v276 = vpop.permute.xlu0 %275
    %279 = vset.pattern.permute.xlu0 0
    %280 = vperm.xlu0 %279, %v42
    %v281 = vpop.permute.xlu0 %280
    %284 = vset.pattern.permute.xlu0 0
    %285 = vperm.xlu0 %284, %v43
    %v286 = vpop.permute.xlu0 %285
    %289 = vset.pattern.permute.xlu0 0
    %290 = vperm.xlu0 %289, %v44
    %v291 = vpop.permute.xlu0 %290
    %294 = vset.pattern.permute.xlu0 0
    %295 = vperm.xlu0 %294, %v45
    %v296 = vpop.permute.xlu0 %295
    %299 = vset.pattern.permute.xlu0 0
    %300 = vperm.xlu0 %299, %v46
    %v301 = vpop.permute.xlu0 %300
    %304 = vset.pattern.permute.xlu0 0
    %305 = vperm.xlu0 %304, %v47
    %v306 = vpop.permute.xlu0 %305
    %309 = vset.pattern.permute.xlu0 0
    %310 = vperm.xlu0 %309, %v48
    %v311 = vpop.permute.xlu0 %310
    %314 = vset.pattern.permute.xlu0 0
    %315 = vperm.xlu0 %314, %v49
    %v316 = vpop.permute.xlu0 %315
    %319 = vset.pattern.permute.xlu0 0
    %320 = vperm.xlu0 %319, %v50
    %v321 = vpop.permute.xlu0 %320
    %324 = vset.pattern.permute.xlu0 0
    %325 = vperm.xlu0 %324, %v51
    %v326 = vpop.permute.xlu0 %325
    %329 = vset.pattern.permute.xlu0 0
    %330 = vperm.xlu0 %329, %v52
    %v331 = vpop.permute.xlu0 %330
    %334 = vset.pattern.permute.xlu0 0
    %335 = vperm.xlu0 %334, %v53
    %v336 = vpop.permute.xlu0 %335
    %339 = vset.pattern.permute.xlu0 0
    %340 = vperm.xlu0 %339, %v54
    %v341 = vpop.permute.xlu0 %340
    %344 = vset.pattern.permute.xlu0 0
    %345 = vperm.xlu0 %344, %v55
    %v346 = vpop.permute.xlu0 %345
    %349 = vset.pattern.permute.xlu0 0
    %350 = vperm.xlu0 %349, %v56
    %v351 = vpop.permute.xlu0 %350
    %v353 = vadd.f32 %v257, %v276
    %v354 = vadd.f32 %v258, %v281
    %v355 = vadd.f32 %v259, %v286
    %v356 = vadd.f32 %v260, %v291
    %v357 = vadd.f32 %v261, %v296
    %v358 = vadd.f32 %v262, %v301
    %v359 = vadd.f32 %v263, %v306
    %v360 = vadd.f32 %v264, %v311
    %v361 = vadd.f32 %v265, %v316
    %v362 = vadd.f32 %v266, %v321
    %v363 = vadd.f32 %v267, %v326
    %v364 = vadd.f32 %v268, %v331
    %v365 = vadd.f32 %v269, %v336
    %v366 = vadd.f32 %v270, %v341
    %v367 = vadd.f32 %v271, %v346
    %v368 = vadd.f32 %v272, %v351
    %v369 = vmul.f32 %v353, 0.5
    %v370 = vmul.f32 %v354, 0.5
    %v371 = vmul.f32 %v355, 0.5
    %v372 = vmul.f32 %v356, 0.5
    %v373 = vmul.f32 %v357, 0.5
    %v374 = vmul.f32 %v358, 0.5
    %v375 = vmul.f32 %v359, 0.5
    %v376 = vmul.f32 %v360, 0.5
    %v377 = vmul.f32 %v361, 0.5
    %v378 = vmul.f32 %v362, 0.5
    %v379 = vmul.f32 %v363, 0.5
    %v380 = vmul.f32 %v364, 0.5
    %v381 = vmul.f32 %v365, 0.5
    %v382 = vmul.f32 %v366, 0.5
    %v383 = vmul.f32 %v367, 0.5
    %v384 = vmul.f32 %v368, 0.5
    %v385 = vtanh.pop %v369
    %v386 = vtanh.pop %v370
    %v387 = vtanh.pop %v371
    %v388 = vtanh.pop %v372
    %v389 = vtanh.pop %v373
    %v390 = vtanh.pop %v374
    %v391 = vtanh.pop %v375
    %v392 = vtanh.pop %v376
    %v393 = vtanh.pop %v377
    %v394 = vtanh.pop %v378
    %v395 = vtanh.pop %v379
    %v396 = vtanh.pop %v380
    %v397 = vtanh.pop %v381
    %v398 = vtanh.pop %v382
    %v399 = vtanh.pop %v383
    %v400 = vtanh.pop %v384
    %v401 = vmul.f32 %v385, 0.5
    %v402 = vmul.f32 %v386, 0.5
    %v403 = vmul.f32 %v387, 0.5
    %v404 = vmul.f32 %v388, 0.5
    %v405 = vmul.f32 %v389, 0.5
    %v406 = vmul.f32 %v390, 0.5
    %v407 = vmul.f32 %v391, 0.5
    %v408 = vmul.f32 %v392, 0.5
    %v409 = vmul.f32 %v393, 0.5
    %v410 = vmul.f32 %v394, 0.5
    %v411 = vmul.f32 %v395, 0.5
    %v412 = vmul.f32 %v396, 0.5
    %v413 = vmul.f32 %v397, 0.5
    %v414 = vmul.f32 %v398, 0.5
    %v415 = vmul.f32 %v399, 0.5
    %v416 = vmul.f32 %v400, 0.5
    %v417 = vadd.f32 %v401, 0.5
    %v418 = vadd.f32 %v402, 0.5
    %v419 = vadd.f32 %v403, 0.5
    %v420 = vadd.f32 %v404, 0.5
    %v421 = vadd.f32 %v405, 0.5
    %v422 = vadd.f32 %v406, 0.5
    %v423 = vadd.f32 %v407, 0.5
    %v424 = vadd.f32 %v408, 0.5
    %v425 = vadd.f32 %v409, 0.5
    %v426 = vadd.f32 %v410, 0.5
    %v427 = vadd.f32 %v411, 0.5
    %v428 = vadd.f32 %v412, 0.5
    %v429 = vadd.f32 %v413, 0.5
    %v430 = vadd.f32 %v414, 0.5
    %v431 = vadd.f32 %v415, 0.5
    %v432 = vadd.f32 %v416, 0.5
    %434 = vset.pattern.permute.xlu0 0
    %435 = vperm.xlu0 %434, %v57
    %v436 = vpop.permute.xlu0 %435
    %439 = vset.pattern.permute.xlu0 0
    %440 = vperm.xlu0 %439, %v58
    %v441 = vpop.permute.xlu0 %440
    %444 = vset.pattern.permute.xlu0 0
    %445 = vperm.xlu0 %444, %v59
    %v446 = vpop.permute.xlu0 %445
    %449 = vset.pattern.permute.xlu0 0
    %450 = vperm.xlu0 %449, %v60
    %v451 = vpop.permute.xlu0 %450
    %454 = vset.pattern.permute.xlu0 0
    %455 = vperm.xlu0 %454, %v61
    %v456 = vpop.permute.xlu0 %455
    %459 = vset.pattern.permute.xlu0 0
    %460 = vperm.xlu0 %459, %v62
    %v461 = vpop.permute.xlu0 %460
    %464 = vset.pattern.permute.xlu0 0
    %465 = vperm.xlu0 %464, %v63
    %v466 = vpop.permute.xlu0 %465
    %469 = vset.pattern.permute.xlu0 0
    %470 = vperm.xlu0 %469, %v64
    %v471 = vpop.permute.xlu0 %470
    %474 = vset.pattern.permute.xlu0 0
    %475 = vperm.xlu0 %474, %v65
    %v476 = vpop.permute.xlu0 %475
    %479 = vset.pattern.permute.xlu0 0
    %480 = vperm.xlu0 %479, %v66
    %v481 = vpop.permute.xlu0 %480
    %484 = vset.pattern.permute.xlu0 0
    %485 = vperm.xlu0 %484, %v67
    %v486 = vpop.permute.xlu0 %485
    %489 = vset.pattern.permute.xlu0 0
    %490 = vperm.xlu0 %489, %v68
    %v491 = vpop.permute.xlu0 %490
    %494 = vset.pattern.permute.xlu0 0
    %495 = vperm.xlu0 %494, %v69
    %v496 = vpop.permute.xlu0 %495
    %499 = vset.pattern.permute.xlu0 0
    %500 = vperm.xlu0 %499, %v70
    %v501 = vpop.permute.xlu0 %500
    %504 = vset.pattern.permute.xlu0 0
    %505 = vperm.xlu0 %504, %v71
    %v506 = vpop.permute.xlu0 %505
    %509 = vset.pattern.permute.xlu0 0
    %510 = vperm.xlu0 %509, %v72
    %v511 = vpop.permute.xlu0 %510
    %v513 = vmul.f32 %v417, %v436
    %v514 = vmul.f32 %v418, %v441
    %v515 = vmul.f32 %v419, %v446
    %v516 = vmul.f32 %v420, %v451
    %v517 = vmul.f32 %v421, %v456
    %v518 = vmul.f32 %v422, %v461
    %v519 = vmul.f32 %v423, %v466
    %v520 = vmul.f32 %v424, %v471
    %v521 = vmul.f32 %v425, %v476
    %v522 = vmul.f32 %v426, %v481
    %v523 = vmul.f32 %v427, %v486
    %v524 = vmul.f32 %v428, %v491
    %v525 = vmul.f32 %v429, %v496
    %v526 = vmul.f32 %v430, %v501
    %v527 = vmul.f32 %v431, %v506
    %v528 = vmul.f32 %v432, %v511
    %v529 = vadd.f32 %v513, %v514
    %v530 = vadd.f32 %v529, %v515
    %v531 = vadd.f32 %v530, %v516
    %v532 = vadd.f32 %v531, %v517
    %v533 = vadd.f32 %v532, %v518
    %v534 = vadd.f32 %v533, %v519
    %v535 = vadd.f32 %v534, %v520
    %v536 = vadd.f32 %v535, %v521
    %v537 = vadd.f32 %v536, %v522
    %v538 = vadd.f32 %v537, %v523
    %v539 = vadd.f32 %v538, %v524
    %v540 = vadd.f32 %v539, %v525
    %v541 = vadd.f32 %v540, %v526
    %v542 = vadd.f32 %v541, %v527
    %v543 = vadd.f32 %v542, %v528
    %v544 = vrot.slane %v543, 4
    %v545 = vadd.f32 %v543, %v544
    %v546 = vrot.slane %v545, 2
    %v547 = vadd.f32 %v545, %v546
    %v548 = vrot.slane %v547, 1
    %v549 = vadd.f32 %v547, %v548
    %v550 = vadd.f32 %v549, 0.0
    %s551 = scalar_lea.vmem %s1, 128
    %v552 = vld [vmem:[%s551] sm:$0xff]
    %v553 = vld [vmem:[%s551 + $0x8] sm:$0xff]
    %v554 = vld [vmem:[%s551 + $0x10] sm:$0xff]
    %v555 = vld [vmem:[%s551 + $0x18] sm:$0xff]
    %v556 = vld [vmem:[%s551 + $0x20] sm:$0xff]
    %v557 = vld [vmem:[%s551 + $0x28] sm:$0xff]
    %v558 = vld [vmem:[%s551 + $0x30] sm:$0xff]
    %v559 = vld [vmem:[%s551 + $0x38] sm:$0xff]
    %v560 = vld [vmem:[%s551 + $0x40] sm:$0xff]
    %v561 = vld [vmem:[%s551 + $0x48] sm:$0xff]
    %v562 = vld [vmem:[%s551 + $0x50] sm:$0xff]
    %v563 = vld [vmem:[%s551 + $0x58] sm:$0xff]
    %v564 = vld [vmem:[%s551 + $0x60] sm:$0xff]
    %v565 = vld [vmem:[%s551 + $0x68] sm:$0xff]
    %v566 = vld [vmem:[%s551 + $0x70] sm:$0xff]
    %v567 = vld [vmem:[%s551 + $0x78] sm:$0xff]
    %s568 = scalar_lea.vmem %s2, 128
    %v569 = vld [vmem:[%s568] sm:$0xff]
    %v570 = vld [vmem:[%s568 + $0x8] sm:$0xff]
    %v571 = vld [vmem:[%s568 + $0x10] sm:$0xff]
    %v572 = vld [vmem:[%s568 + $0x18] sm:$0xff]
    %v573 = vld [vmem:[%s568 + $0x20] sm:$0xff]
    %v574 = vld [vmem:[%s568 + $0x28] sm:$0xff]
    %v575 = vld [vmem:[%s568 + $0x30] sm:$0xff]
    %v576 = vld [vmem:[%s568 + $0x38] sm:$0xff]
    %v577 = vld [vmem:[%s568 + $0x40] sm:$0xff]
    %v578 = vld [vmem:[%s568 + $0x48] sm:$0xff]
    %v579 = vld [vmem:[%s568 + $0x50] sm:$0xff]
    %v580 = vld [vmem:[%s568 + $0x58] sm:$0xff]
    %v581 = vld [vmem:[%s568 + $0x60] sm:$0xff]
    %v582 = vld [vmem:[%s568 + $0x68] sm:$0xff]
    %v583 = vld [vmem:[%s568 + $0x70] sm:$0xff]
    %v584 = vld [vmem:[%s568 + $0x78] sm:$0xff]
    %s585 = scalar_lea.vmem %s3, 128
    %v586 = vld [vmem:[%s585] sm:$0xff]
    %v587 = vld [vmem:[%s585 + $0x8] sm:$0xff]
    %v588 = vld [vmem:[%s585 + $0x10] sm:$0xff]
    %v589 = vld [vmem:[%s585 + $0x18] sm:$0xff]
    %v590 = vld [vmem:[%s585 + $0x20] sm:$0xff]
    %v591 = vld [vmem:[%s585 + $0x28] sm:$0xff]
    %v592 = vld [vmem:[%s585 + $0x30] sm:$0xff]
    %v593 = vld [vmem:[%s585 + $0x38] sm:$0xff]
    %v594 = vld [vmem:[%s585 + $0x40] sm:$0xff]
    %v595 = vld [vmem:[%s585 + $0x48] sm:$0xff]
    %v596 = vld [vmem:[%s585 + $0x50] sm:$0xff]
    %v597 = vld [vmem:[%s585 + $0x58] sm:$0xff]
    %v598 = vld [vmem:[%s585 + $0x60] sm:$0xff]
    %v599 = vld [vmem:[%s585 + $0x68] sm:$0xff]
    %v600 = vld [vmem:[%s585 + $0x70] sm:$0xff]
    %v601 = vld [vmem:[%s585 + $0x78] sm:$0xff]
    %603 = vset.pattern.permute.xlu0 0
    %604 = vperm.xlu0 %603, %v552
    %v605 = vpop.permute.xlu0 %604
    %608 = vset.pattern.permute.xlu0 0
    %609 = vperm.xlu0 %608, %v553
    %v610 = vpop.permute.xlu0 %609
    %613 = vset.pattern.permute.xlu0 0
    %614 = vperm.xlu0 %613, %v554
    %v615 = vpop.permute.xlu0 %614
    %618 = vset.pattern.permute.xlu0 0
    %619 = vperm.xlu0 %618, %v555
    %v620 = vpop.permute.xlu0 %619
    %623 = vset.pattern.permute.xlu0 0
    %624 = vperm.xlu0 %623, %v556
    %v625 = vpop.permute.xlu0 %624
    %628 = vset.pattern.permute.xlu0 0
    %629 = vperm.xlu0 %628, %v557
    %v630 = vpop.permute.xlu0 %629
    %633 = vset.pattern.permute.xlu0 0
    %634 = vperm.xlu0 %633, %v558
    %v635 = vpop.permute.xlu0 %634
    %638 = vset.pattern.permute.xlu0 0
    %639 = vperm.xlu0 %638, %v559
    %v640 = vpop.permute.xlu0 %639
    %643 = vset.pattern.permute.xlu0 0
    %644 = vperm.xlu0 %643, %v560
    %v645 = vpop.permute.xlu0 %644
    %648 = vset.pattern.permute.xlu0 0
    %649 = vperm.xlu0 %648, %v561
    %v650 = vpop.permute.xlu0 %649
    %653 = vset.pattern.permute.xlu0 0
    %654 = vperm.xlu0 %653, %v562
    %v655 = vpop.permute.xlu0 %654
    %658 = vset.pattern.permute.xlu0 0
    %659 = vperm.xlu0 %658, %v563
    %v660 = vpop.permute.xlu0 %659
    %663 = vset.pattern.permute.xlu0 0
    %664 = vperm.xlu0 %663, %v564
    %v665 = vpop.permute.xlu0 %664
    %668 = vset.pattern.permute.xlu0 0
    %669 = vperm.xlu0 %668, %v565
    %v670 = vpop.permute.xlu0 %669
    %673 = vset.pattern.permute.xlu0 0
    %674 = vperm.xlu0 %673, %v566
    %v675 = vpop.permute.xlu0 %674
    %678 = vset.pattern.permute.xlu0 0
    %679 = vperm.xlu0 %678, %v567
    %v680 = vpop.permute.xlu0 %679
    %v682 = vmul.f32 %v605, %v156
    %v683 = vmul.f32 %v610, %v156
    %v684 = vmul.f32 %v615, %v156
    %v685 = vmul.f32 %v620, %v156
    %v686 = vmul.f32 %v625, %v156
    %v687 = vmul.f32 %v630, %v156
    %v688 = vmul.f32 %v635, %v156
    %v689 = vmul.f32 %v640, %v156
    %v690 = vmul.f32 %v645, %v156
    %v691 = vmul.f32 %v650, %v156
    %v692 = vmul.f32 %v655, %v156
    %v693 = vmul.f32 %v660, %v156
    %v694 = vmul.f32 %v665, %v156
    %v695 = vmul.f32 %v670, %v156
    %v696 = vmul.f32 %v675, %v156
    %v697 = vmul.f32 %v680, %v156
    %698 = vset.pattern.permute.xlu0 1
    %699 = vperm.xlu0 %698, %v552
    %v700 = vpop.permute.xlu0 %699
    %702 = vset.pattern.permute.xlu0 1
    %703 = vperm.xlu0 %702, %v553
    %v704 = vpop.permute.xlu0 %703
    %706 = vset.pattern.permute.xlu0 1
    %707 = vperm.xlu0 %706, %v554
    %v708 = vpop.permute.xlu0 %707
    %710 = vset.pattern.permute.xlu0 1
    %711 = vperm.xlu0 %710, %v555
    %v712 = vpop.permute.xlu0 %711
    %714 = vset.pattern.permute.xlu0 1
    %715 = vperm.xlu0 %714, %v556
    %v716 = vpop.permute.xlu0 %715
    %718 = vset.pattern.permute.xlu0 1
    %719 = vperm.xlu0 %718, %v557
    %v720 = vpop.permute.xlu0 %719
    %722 = vset.pattern.permute.xlu0 1
    %723 = vperm.xlu0 %722, %v558
    %v724 = vpop.permute.xlu0 %723
    %726 = vset.pattern.permute.xlu0 1
    %727 = vperm.xlu0 %726, %v559
    %v728 = vpop.permute.xlu0 %727
    %730 = vset.pattern.permute.xlu0 1
    %731 = vperm.xlu0 %730, %v560
    %v732 = vpop.permute.xlu0 %731
    %734 = vset.pattern.permute.xlu0 1
    %735 = vperm.xlu0 %734, %v561
    %v736 = vpop.permute.xlu0 %735
    %738 = vset.pattern.permute.xlu0 1
    %739 = vperm.xlu0 %738, %v562
    %v740 = vpop.permute.xlu0 %739
    %742 = vset.pattern.permute.xlu0 1
    %743 = vperm.xlu0 %742, %v563
    %v744 = vpop.permute.xlu0 %743
    %746 = vset.pattern.permute.xlu0 1
    %747 = vperm.xlu0 %746, %v564
    %v748 = vpop.permute.xlu0 %747
    %750 = vset.pattern.permute.xlu0 1
    %751 = vperm.xlu0 %750, %v565
    %v752 = vpop.permute.xlu0 %751
    %754 = vset.pattern.permute.xlu0 1
    %755 = vperm.xlu0 %754, %v566
    %v756 = vpop.permute.xlu0 %755
    %758 = vset.pattern.permute.xlu0 1
    %759 = vperm.xlu0 %758, %v567
    %v760 = vpop.permute.xlu0 %759
    %v762 = vmul.f32 %v700, %v240
    %v763 = vmul.f32 %v704, %v240
    %v764 = vmul.f32 %v708, %v240
    %v765 = vmul.f32 %v712, %v240
    %v766 = vmul.f32 %v716, %v240
    %v767 = vmul.f32 %v720, %v240
    %v768 = vmul.f32 %v724, %v240
    %v769 = vmul.f32 %v728, %v240
    %v770 = vmul.f32 %v732, %v240
    %v771 = vmul.f32 %v736, %v240
    %v772 = vmul.f32 %v740, %v240
    %v773 = vmul.f32 %v744, %v240
    %v774 = vmul.f32 %v748, %v240
    %v775 = vmul.f32 %v752, %v240
    %v776 = vmul.f32 %v756, %v240
    %v777 = vmul.f32 %v760, %v240
    %v778 = vadd.f32 %v682, %v762
    %v779 = vadd.f32 %v683, %v763
    %v780 = vadd.f32 %v684, %v764
    %v781 = vadd.f32 %v685, %v765
    %v782 = vadd.f32 %v686, %v766
    %v783 = vadd.f32 %v687, %v767
    %v784 = vadd.f32 %v688, %v768
    %v785 = vadd.f32 %v689, %v769
    %v786 = vadd.f32 %v690, %v770
    %v787 = vadd.f32 %v691, %v771
    %v788 = vadd.f32 %v692, %v772
    %v789 = vadd.f32 %v693, %v773
    %v790 = vadd.f32 %v694, %v774
    %v791 = vadd.f32 %v695, %v775
    %v792 = vadd.f32 %v696, %v776
    %v793 = vadd.f32 %v697, %v777
    %795 = vset.pattern.permute.xlu0 0
    %796 = vperm.xlu0 %795, %v569
    %v797 = vpop.permute.xlu0 %796
    %800 = vset.pattern.permute.xlu0 0
    %801 = vperm.xlu0 %800, %v570
    %v802 = vpop.permute.xlu0 %801
    %805 = vset.pattern.permute.xlu0 0
    %806 = vperm.xlu0 %805, %v571
    %v807 = vpop.permute.xlu0 %806
    %810 = vset.pattern.permute.xlu0 0
    %811 = vperm.xlu0 %810, %v572
    %v812 = vpop.permute.xlu0 %811
    %815 = vset.pattern.permute.xlu0 0
    %816 = vperm.xlu0 %815, %v573
    %v817 = vpop.permute.xlu0 %816
    %820 = vset.pattern.permute.xlu0 0
    %821 = vperm.xlu0 %820, %v574
    %v822 = vpop.permute.xlu0 %821
    %825 = vset.pattern.permute.xlu0 0
    %826 = vperm.xlu0 %825, %v575
    %v827 = vpop.permute.xlu0 %826
    %830 = vset.pattern.permute.xlu0 0
    %831 = vperm.xlu0 %830, %v576
    %v832 = vpop.permute.xlu0 %831
    %835 = vset.pattern.permute.xlu0 0
    %836 = vperm.xlu0 %835, %v577
    %v837 = vpop.permute.xlu0 %836
    %840 = vset.pattern.permute.xlu0 0
    %841 = vperm.xlu0 %840, %v578
    %v842 = vpop.permute.xlu0 %841
    %845 = vset.pattern.permute.xlu0 0
    %846 = vperm.xlu0 %845, %v579
    %v847 = vpop.permute.xlu0 %846
    %850 = vset.pattern.permute.xlu0 0
    %851 = vperm.xlu0 %850, %v580
    %v852 = vpop.permute.xlu0 %851
    %855 = vset.pattern.permute.xlu0 0
    %856 = vperm.xlu0 %855, %v581
    %v857 = vpop.permute.xlu0 %856
    %860 = vset.pattern.permute.xlu0 0
    %861 = vperm.xlu0 %860, %v582
    %v862 = vpop.permute.xlu0 %861
    %865 = vset.pattern.permute.xlu0 0
    %866 = vperm.xlu0 %865, %v583
    %v867 = vpop.permute.xlu0 %866
    %870 = vset.pattern.permute.xlu0 0
    %871 = vperm.xlu0 %870, %v584
    %v872 = vpop.permute.xlu0 %871
    %v874 = vadd.f32 %v778, %v797
    %v875 = vadd.f32 %v779, %v802
    %v876 = vadd.f32 %v780, %v807
    %v877 = vadd.f32 %v781, %v812
    %v878 = vadd.f32 %v782, %v817
    %v879 = vadd.f32 %v783, %v822
    %v880 = vadd.f32 %v784, %v827
    %v881 = vadd.f32 %v785, %v832
    %v882 = vadd.f32 %v786, %v837
    %v883 = vadd.f32 %v787, %v842
    %v884 = vadd.f32 %v788, %v847
    %v885 = vadd.f32 %v789, %v852
    %v886 = vadd.f32 %v790, %v857
    %v887 = vadd.f32 %v791, %v862
    %v888 = vadd.f32 %v792, %v867
    %v889 = vadd.f32 %v793, %v872
    %v890 = vmul.f32 %v874, 0.5
    %v891 = vmul.f32 %v875, 0.5
    %v892 = vmul.f32 %v876, 0.5
    %v893 = vmul.f32 %v877, 0.5
    %v894 = vmul.f32 %v878, 0.5
    %v895 = vmul.f32 %v879, 0.5
    %v896 = vmul.f32 %v880, 0.5
    %v897 = vmul.f32 %v881, 0.5
    %v898 = vmul.f32 %v882, 0.5
    %v899 = vmul.f32 %v883, 0.5
    %v900 = vmul.f32 %v884, 0.5
    %v901 = vmul.f32 %v885, 0.5
    %v902 = vmul.f32 %v886, 0.5
    %v903 = vmul.f32 %v887, 0.5
    %v904 = vmul.f32 %v888, 0.5
    %v905 = vmul.f32 %v889, 0.5
    %v906 = vtanh.pop %v890
    %v907 = vtanh.pop %v891
    %v908 = vtanh.pop %v892
    %v909 = vtanh.pop %v893
    %v910 = vtanh.pop %v894
    %v911 = vtanh.pop %v895
    %v912 = vtanh.pop %v896
    %v913 = vtanh.pop %v897
    %v914 = vtanh.pop %v898
    %v915 = vtanh.pop %v899
    %v916 = vtanh.pop %v900
    %v917 = vtanh.pop %v901
    %v918 = vtanh.pop %v902
    %v919 = vtanh.pop %v903
    %v920 = vtanh.pop %v904
    %v921 = vtanh.pop %v905
    %v922 = vmul.f32 %v906, 0.5
    %v923 = vmul.f32 %v907, 0.5
    %v924 = vmul.f32 %v908, 0.5
    %v925 = vmul.f32 %v909, 0.5
    %v926 = vmul.f32 %v910, 0.5
    %v927 = vmul.f32 %v911, 0.5
    %v928 = vmul.f32 %v912, 0.5
    %v929 = vmul.f32 %v913, 0.5
    %v930 = vmul.f32 %v914, 0.5
    %v931 = vmul.f32 %v915, 0.5
    %v932 = vmul.f32 %v916, 0.5
    %v933 = vmul.f32 %v917, 0.5
    %v934 = vmul.f32 %v918, 0.5
    %v935 = vmul.f32 %v919, 0.5
    %v936 = vmul.f32 %v920, 0.5
    %v937 = vmul.f32 %v921, 0.5
    %v938 = vadd.f32 %v922, 0.5
    %v939 = vadd.f32 %v923, 0.5
    %v940 = vadd.f32 %v924, 0.5
    %v941 = vadd.f32 %v925, 0.5
    %v942 = vadd.f32 %v926, 0.5
    %v943 = vadd.f32 %v927, 0.5
    %v944 = vadd.f32 %v928, 0.5
    %v945 = vadd.f32 %v929, 0.5
    %v946 = vadd.f32 %v930, 0.5
    %v947 = vadd.f32 %v931, 0.5
    %v948 = vadd.f32 %v932, 0.5
    %v949 = vadd.f32 %v933, 0.5
    %v950 = vadd.f32 %v934, 0.5
    %v951 = vadd.f32 %v935, 0.5
    %v952 = vadd.f32 %v936, 0.5
    %v953 = vadd.f32 %v937, 0.5
    %955 = vset.pattern.permute.xlu0 0
    %956 = vperm.xlu0 %955, %v586
    %v957 = vpop.permute.xlu0 %956
    %960 = vset.pattern.permute.xlu0 0
    %961 = vperm.xlu0 %960, %v587
    %v962 = vpop.permute.xlu0 %961
    %965 = vset.pattern.permute.xlu0 0
    %966 = vperm.xlu0 %965, %v588
    %v967 = vpop.permute.xlu0 %966
    %970 = vset.pattern.permute.xlu0 0
    %971 = vperm.xlu0 %970, %v589
    %v972 = vpop.permute.xlu0 %971
    %975 = vset.pattern.permute.xlu0 0
    %976 = vperm.xlu0 %975, %v590
    %v977 = vpop.permute.xlu0 %976
    %980 = vset.pattern.permute.xlu0 0
    %981 = vperm.xlu0 %980, %v591
    %v982 = vpop.permute.xlu0 %981
    %985 = vset.pattern.permute.xlu0 0
    %986 = vperm.xlu0 %985, %v592
    %v987 = vpop.permute.xlu0 %986
    %990 = vset.pattern.permute.xlu0 0
    %991 = vperm.xlu0 %990, %v593
    %v992 = vpop.permute.xlu0 %991
    %995 = vset.pattern.permute.xlu0 0
    %996 = vperm.xlu0 %995, %v594
    %v997 = vpop.permute.xlu0 %996
    %1000 = vset.pattern.permute.xlu0 0
    %1001 = vperm.xlu0 %1000, %v595
    %v1002 = vpop.permute.xlu0 %1001
    %1005 = vset.pattern.permute.xlu0 0
    %1006 = vperm.xlu0 %1005, %v596
    %v1007 = vpop.permute.xlu0 %1006
    %1010 = vset.pattern.permute.xlu0 0
    %1011 = vperm.xlu0 %1010, %v597
    %v1012 = vpop.permute.xlu0 %1011
    %1015 = vset.pattern.permute.xlu0 0
    %1016 = vperm.xlu0 %1015, %v598
    %v1017 = vpop.permute.xlu0 %1016
    %1020 = vset.pattern.permute.xlu0 0
    %1021 = vperm.xlu0 %1020, %v599
    %v1022 = vpop.permute.xlu0 %1021
    %1025 = vset.pattern.permute.xlu0 0
    %1026 = vperm.xlu0 %1025, %v600
    %v1027 = vpop.permute.xlu0 %1026
    %1030 = vset.pattern.permute.xlu0 0
    %1031 = vperm.xlu0 %1030, %v601
    %v1032 = vpop.permute.xlu0 %1031
    %v1034 = vmul.f32 %v938, %v957
    %v1035 = vmul.f32 %v939, %v962
    %v1036 = vmul.f32 %v940, %v967
    %v1037 = vmul.f32 %v941, %v972
    %v1038 = vmul.f32 %v942, %v977
    %v1039 = vmul.f32 %v943, %v982
    %v1040 = vmul.f32 %v944, %v987
    %v1041 = vmul.f32 %v945, %v992
    %v1042 = vmul.f32 %v946, %v997
    %v1043 = vmul.f32 %v947, %v1002
    %v1044 = vmul.f32 %v948, %v1007
    %v1045 = vmul.f32 %v949, %v1012
    %v1046 = vmul.f32 %v950, %v1017
    %v1047 = vmul.f32 %v951, %v1022
    %v1048 = vmul.f32 %v952, %v1027
    %v1049 = vmul.f32 %v953, %v1032
    %v1050 = vadd.f32 %v1034, %v1035
    %v1051 = vadd.f32 %v1050, %v1036
    %v1052 = vadd.f32 %v1051, %v1037
    %v1053 = vadd.f32 %v1052, %v1038
    %v1054 = vadd.f32 %v1053, %v1039
    %v1055 = vadd.f32 %v1054, %v1040
    %v1056 = vadd.f32 %v1055, %v1041
    %v1057 = vadd.f32 %v1056, %v1042
    %v1058 = vadd.f32 %v1057, %v1043
    %v1059 = vadd.f32 %v1058, %v1044
    %v1060 = vadd.f32 %v1059, %v1045
    %v1061 = vadd.f32 %v1060, %v1046
    %v1062 = vadd.f32 %v1061, %v1047
    %v1063 = vadd.f32 %v1062, %v1048
    %v1064 = vadd.f32 %v1063, %v1049
    %v1065 = vrot.slane %v1064, 4
    %v1066 = vadd.f32 %v1064, %v1065
    %v1067 = vrot.slane %v1066, 2
    %v1068 = vadd.f32 %v1066, %v1067
    %v1069 = vrot.slane %v1068, 1
    %v1070 = vadd.f32 %v1068, %v1069
    %v1071 = vadd.f32 %v550, %v1070
    %s1072 = scalar_lea.vmem %s1, 256
    %v1073 = vld [vmem:[%s1072] sm:$0xff]
    %v1074 = vld [vmem:[%s1072 + $0x8] sm:$0xff]
    %v1075 = vld [vmem:[%s1072 + $0x10] sm:$0xff]
    %v1076 = vld [vmem:[%s1072 + $0x18] sm:$0xff]
    %v1077 = vld [vmem:[%s1072 + $0x20] sm:$0xff]
    %v1078 = vld [vmem:[%s1072 + $0x28] sm:$0xff]
    %v1079 = vld [vmem:[%s1072 + $0x30] sm:$0xff]
    %v1080 = vld [vmem:[%s1072 + $0x38] sm:$0xff]
    %v1081 = vld [vmem:[%s1072 + $0x40] sm:$0xff]
    %v1082 = vld [vmem:[%s1072 + $0x48] sm:$0xff]
    %v1083 = vld [vmem:[%s1072 + $0x50] sm:$0xff]
    %v1084 = vld [vmem:[%s1072 + $0x58] sm:$0xff]
    %v1085 = vld [vmem:[%s1072 + $0x60] sm:$0xff]
    %v1086 = vld [vmem:[%s1072 + $0x68] sm:$0xff]
    %v1087 = vld [vmem:[%s1072 + $0x70] sm:$0xff]
    %v1088 = vld [vmem:[%s1072 + $0x78] sm:$0xff]
    %s1089 = scalar_lea.vmem %s2, 256
    %v1090 = vld [vmem:[%s1089] sm:$0xff]
    %v1091 = vld [vmem:[%s1089 + $0x8] sm:$0xff]
    %v1092 = vld [vmem:[%s1089 + $0x10] sm:$0xff]
    %v1093 = vld [vmem:[%s1089 + $0x18] sm:$0xff]
    %v1094 = vld [vmem:[%s1089 + $0x20] sm:$0xff]
    %v1095 = vld [vmem:[%s1089 + $0x28] sm:$0xff]
    %v1096 = vld [vmem:[%s1089 + $0x30] sm:$0xff]
    %v1097 = vld [vmem:[%s1089 + $0x38] sm:$0xff]
    %v1098 = vld [vmem:[%s1089 + $0x40] sm:$0xff]
    %v1099 = vld [vmem:[%s1089 + $0x48] sm:$0xff]
    %v1100 = vld [vmem:[%s1089 + $0x50] sm:$0xff]
    %v1101 = vld [vmem:[%s1089 + $0x58] sm:$0xff]
    %v1102 = vld [vmem:[%s1089 + $0x60] sm:$0xff]
    %v1103 = vld [vmem:[%s1089 + $0x68] sm:$0xff]
    %v1104 = vld [vmem:[%s1089 + $0x70] sm:$0xff]
    %v1105 = vld [vmem:[%s1089 + $0x78] sm:$0xff]
    %s1106 = scalar_lea.vmem %s3, 256
    %v1107 = vld [vmem:[%s1106] sm:$0xff]
    %v1108 = vld [vmem:[%s1106 + $0x8] sm:$0xff]
    %v1109 = vld [vmem:[%s1106 + $0x10] sm:$0xff]
    %v1110 = vld [vmem:[%s1106 + $0x18] sm:$0xff]
    %v1111 = vld [vmem:[%s1106 + $0x20] sm:$0xff]
    %v1112 = vld [vmem:[%s1106 + $0x28] sm:$0xff]
    %v1113 = vld [vmem:[%s1106 + $0x30] sm:$0xff]
    %v1114 = vld [vmem:[%s1106 + $0x38] sm:$0xff]
    %v1115 = vld [vmem:[%s1106 + $0x40] sm:$0xff]
    %v1116 = vld [vmem:[%s1106 + $0x48] sm:$0xff]
    %v1117 = vld [vmem:[%s1106 + $0x50] sm:$0xff]
    %v1118 = vld [vmem:[%s1106 + $0x58] sm:$0xff]
    %v1119 = vld [vmem:[%s1106 + $0x60] sm:$0xff]
    %v1120 = vld [vmem:[%s1106 + $0x68] sm:$0xff]
    %v1121 = vld [vmem:[%s1106 + $0x70] sm:$0xff]
    %v1122 = vld [vmem:[%s1106 + $0x78] sm:$0xff]
    %1124 = vset.pattern.permute.xlu0 0
    %1125 = vperm.xlu0 %1124, %v1073
    %v1126 = vpop.permute.xlu0 %1125
    %1129 = vset.pattern.permute.xlu0 0
    %1130 = vperm.xlu0 %1129, %v1074
    %v1131 = vpop.permute.xlu0 %1130
    %1134 = vset.pattern.permute.xlu0 0
    %1135 = vperm.xlu0 %1134, %v1075
    %v1136 = vpop.permute.xlu0 %1135
    %1139 = vset.pattern.permute.xlu0 0
    %1140 = vperm.xlu0 %1139, %v1076
    %v1141 = vpop.permute.xlu0 %1140
    %1144 = vset.pattern.permute.xlu0 0
    %1145 = vperm.xlu0 %1144, %v1077
    %v1146 = vpop.permute.xlu0 %1145
    %1149 = vset.pattern.permute.xlu0 0
    %1150 = vperm.xlu0 %1149, %v1078
    %v1151 = vpop.permute.xlu0 %1150
    %1154 = vset.pattern.permute.xlu0 0
    %1155 = vperm.xlu0 %1154, %v1079
    %v1156 = vpop.permute.xlu0 %1155
    %1159 = vset.pattern.permute.xlu0 0
    %1160 = vperm.xlu0 %1159, %v1080
    %v1161 = vpop.permute.xlu0 %1160
    %1164 = vset.pattern.permute.xlu0 0
    %1165 = vperm.xlu0 %1164, %v1081
    %v1166 = vpop.permute.xlu0 %1165
    %1169 = vset.pattern.permute.xlu0 0
    %1170 = vperm.xlu0 %1169, %v1082
    %v1171 = vpop.permute.xlu0 %1170
    %1174 = vset.pattern.permute.xlu0 0
    %1175 = vperm.xlu0 %1174, %v1083
    %v1176 = vpop.permute.xlu0 %1175
    %1179 = vset.pattern.permute.xlu0 0
    %1180 = vperm.xlu0 %1179, %v1084
    %v1181 = vpop.permute.xlu0 %1180
    %1184 = vset.pattern.permute.xlu0 0
    %1185 = vperm.xlu0 %1184, %v1085
    %v1186 = vpop.permute.xlu0 %1185
    %1189 = vset.pattern.permute.xlu0 0
    %1190 = vperm.xlu0 %1189, %v1086
    %v1191 = vpop.permute.xlu0 %1190
    %1194 = vset.pattern.permute.xlu0 0
    %1195 = vperm.xlu0 %1194, %v1087
    %v1196 = vpop.permute.xlu0 %1195
    %1199 = vset.pattern.permute.xlu0 0
    %1200 = vperm.xlu0 %1199, %v1088
    %v1201 = vpop.permute.xlu0 %1200
    %v1203 = vmul.f32 %v1126, %v156
    %v1204 = vmul.f32 %v1131, %v156
    %v1205 = vmul.f32 %v1136, %v156
    %v1206 = vmul.f32 %v1141, %v156
    %v1207 = vmul.f32 %v1146, %v156
    %v1208 = vmul.f32 %v1151, %v156
    %v1209 = vmul.f32 %v1156, %v156
    %v1210 = vmul.f32 %v1161, %v156
    %v1211 = vmul.f32 %v1166, %v156
    %v1212 = vmul.f32 %v1171, %v156
    %v1213 = vmul.f32 %v1176, %v156
    %v1214 = vmul.f32 %v1181, %v156
    %v1215 = vmul.f32 %v1186, %v156
    %v1216 = vmul.f32 %v1191, %v156
    %v1217 = vmul.f32 %v1196, %v156
    %v1218 = vmul.f32 %v1201, %v156
    %1219 = vset.pattern.permute.xlu0 1
    %1220 = vperm.xlu0 %1219, %v1073
    %v1221 = vpop.permute.xlu0 %1220
    %1223 = vset.pattern.permute.xlu0 1
    %1224 = vperm.xlu0 %1223, %v1074
    %v1225 = vpop.permute.xlu0 %1224
    %1227 = vset.pattern.permute.xlu0 1
    %1228 = vperm.xlu0 %1227, %v1075
    %v1229 = vpop.permute.xlu0 %1228
    %1231 = vset.pattern.permute.xlu0 1
    %1232 = vperm.xlu0 %1231, %v1076
    %v1233 = vpop.permute.xlu0 %1232
    %1235 = vset.pattern.permute.xlu0 1
    %1236 = vperm.xlu0 %1235, %v1077
    %v1237 = vpop.permute.xlu0 %1236
    %1239 = vset.pattern.permute.xlu0 1
    %1240 = vperm.xlu0 %1239, %v1078
    %v1241 = vpop.permute.xlu0 %1240
    %1243 = vset.pattern.permute.xlu0 1
    %1244 = vperm.xlu0 %1243, %v1079
    %v1245 = vpop.permute.xlu0 %1244
    %1247 = vset.pattern.permute.xlu0 1
    %1248 = vperm.xlu0 %1247, %v1080
    %v1249 = vpop.permute.xlu0 %1248
    %1251 = vset.pattern.permute.xlu0 1
    %1252 = vperm.xlu0 %1251, %v1081
    %v1253 = vpop.permute.xlu0 %1252
    %1255 = vset.pattern.permute.xlu0 1
    %1256 = vperm.xlu0 %1255, %v1082
    %v1257 = vpop.permute.xlu0 %1256
    %1259 = vset.pattern.permute.xlu0 1
    %1260 = vperm.xlu0 %1259, %v1083
    %v1261 = vpop.permute.xlu0 %1260
    %1263 = vset.pattern.permute.xlu0 1
    %1264 = vperm.xlu0 %1263, %v1084
    %v1265 = vpop.permute.xlu0 %1264
    %1267 = vset.pattern.permute.xlu0 1
    %1268 = vperm.xlu0 %1267, %v1085
    %v1269 = vpop.permute.xlu0 %1268
    %1271 = vset.pattern.permute.xlu0 1
    %1272 = vperm.xlu0 %1271, %v1086
    %v1273 = vpop.permute.xlu0 %1272
    %1275 = vset.pattern.permute.xlu0 1
    %1276 = vperm.xlu0 %1275, %v1087
    %v1277 = vpop.permute.xlu0 %1276
    %1279 = vset.pattern.permute.xlu0 1
    %1280 = vperm.xlu0 %1279, %v1088
    %v1281 = vpop.permute.xlu0 %1280
    %v1283 = vmul.f32 %v1221, %v240
    %v1284 = vmul.f32 %v1225, %v240
    %v1285 = vmul.f32 %v1229, %v240
    %v1286 = vmul.f32 %v1233, %v240
    %v1287 = vmul.f32 %v1237, %v240
    %v1288 = vmul.f32 %v1241, %v240
    %v1289 = vmul.f32 %v1245, %v240
    %v1290 = vmul.f32 %v1249, %v240
    %v1291 = vmul.f32 %v1253, %v240
    %v1292 = vmul.f32 %v1257, %v240
    %v1293 = vmul.f32 %v1261, %v240
    %v1294 = vmul.f32 %v1265, %v240
    %v1295 = vmul.f32 %v1269, %v240
    %v1296 = vmul.f32 %v1273, %v240
    %v1297 = vmul.f32 %v1277, %v240
    %v1298 = vmul.f32 %v1281, %v240
    %v1299 = vadd.f32 %v1203, %v1283
    %v1300 = vadd.f32 %v1204, %v1284
    %v1301 = vadd.f32 %v1205, %v1285
    %v1302 = vadd.f32 %v1206, %v1286
    %v1303 = vadd.f32 %v1207, %v1287
    %v1304 = vadd.f32 %v1208, %v1288
    %v1305 = vadd.f32 %v1209, %v1289
    %v1306 = vadd.f32 %v1210, %v1290
    %v1307 = vadd.f32 %v1211, %v1291
    %v1308 = vadd.f32 %v1212, %v1292
    %v1309 = vadd.f32 %v1213, %v1293
    %v1310 = vadd.f32 %v1214, %v1294
    %v1311 = vadd.f32 %v1215, %v1295
    %v1312 = vadd.f32 %v1216, %v1296
    %v1313 = vadd.f32 %v1217, %v1297
    %v1314 = vadd.f32 %v1218, %v1298
    %1316 = vset.pattern.permute.xlu0 0
    %1317 = vperm.xlu0 %1316, %v1090
    %v1318 = vpop.permute.xlu0 %1317
    %1321 = vset.pattern.permute.xlu0 0
    %1322 = vperm.xlu0 %1321, %v1091
    %v1323 = vpop.permute.xlu0 %1322
    %1326 = vset.pattern.permute.xlu0 0
    %1327 = vperm.xlu0 %1326, %v1092
    %v1328 = vpop.permute.xlu0 %1327
    %1331 = vset.pattern.permute.xlu0 0
    %1332 = vperm.xlu0 %1331, %v1093
    %v1333 = vpop.permute.xlu0 %1332
    %1336 = vset.pattern.permute.xlu0 0
    %1337 = vperm.xlu0 %1336, %v1094
    %v1338 = vpop.permute.xlu0 %1337
    %1341 = vset.pattern.permute.xlu0 0
    %1342 = vperm.xlu0 %1341, %v1095
    %v1343 = vpop.permute.xlu0 %1342
    %1346 = vset.pattern.permute.xlu0 0
    %1347 = vperm.xlu0 %1346, %v1096
    %v1348 = vpop.permute.xlu0 %1347
    %1351 = vset.pattern.permute.xlu0 0
    %1352 = vperm.xlu0 %1351, %v1097
    %v1353 = vpop.permute.xlu0 %1352
    %1356 = vset.pattern.permute.xlu0 0
    %1357 = vperm.xlu0 %1356, %v1098
    %v1358 = vpop.permute.xlu0 %1357
    %1361 = vset.pattern.permute.xlu0 0
    %1362 = vperm.xlu0 %1361, %v1099
    %v1363 = vpop.permute.xlu0 %1362
    %1366 = vset.pattern.permute.xlu0 0
    %1367 = vperm.xlu0 %1366, %v1100
    %v1368 = vpop.permute.xlu0 %1367
    %1371 = vset.pattern.permute.xlu0 0
    %1372 = vperm.xlu0 %1371, %v1101
    %v1373 = vpop.permute.xlu0 %1372
    %1376 = vset.pattern.permute.xlu0 0
    %1377 = vperm.xlu0 %1376, %v1102
    %v1378 = vpop.permute.xlu0 %1377
    %1381 = vset.pattern.permute.xlu0 0
    %1382 = vperm.xlu0 %1381, %v1103
    %v1383 = vpop.permute.xlu0 %1382
    %1386 = vset.pattern.permute.xlu0 0
    %1387 = vperm.xlu0 %1386, %v1104
    %v1388 = vpop.permute.xlu0 %1387
    %1391 = vset.pattern.permute.xlu0 0
    %1392 = vperm.xlu0 %1391, %v1105
    %v1393 = vpop.permute.xlu0 %1392
    %v1395 = vadd.f32 %v1299, %v1318
    %v1396 = vadd.f32 %v1300, %v1323
    %v1397 = vadd.f32 %v1301, %v1328
    %v1398 = vadd.f32 %v1302, %v1333
    %v1399 = vadd.f32 %v1303, %v1338
    %v1400 = vadd.f32 %v1304, %v1343
    %v1401 = vadd.f32 %v1305, %v1348
    %v1402 = vadd.f32 %v1306, %v1353
    %v1403 = vadd.f32 %v1307, %v1358
    %v1404 = vadd.f32 %v1308, %v1363
    %v1405 = vadd.f32 %v1309, %v1368
    %v1406 = vadd.f32 %v1310, %v1373
    %v1407 = vadd.f32 %v1311, %v1378
    %v1408 = vadd.f32 %v1312, %v1383
    %v1409 = vadd.f32 %v1313, %v1388
    %v1410 = vadd.f32 %v1314, %v1393
    %v1411 = vmul.f32 %v1395, 0.5
    %v1412 = vmul.f32 %v1396, 0.5
    %v1413 = vmul.f32 %v1397, 0.5
    %v1414 = vmul.f32 %v1398, 0.5
    %v1415 = vmul.f32 %v1399, 0.5
    %v1416 = vmul.f32 %v1400, 0.5
    %v1417 = vmul.f32 %v1401, 0.5
    %v1418 = vmul.f32 %v1402, 0.5
    %v1419 = vmul.f32 %v1403, 0.5
    %v1420 = vmul.f32 %v1404, 0.5
    %v1421 = vmul.f32 %v1405, 0.5
    %v1422 = vmul.f32 %v1406, 0.5
    %v1423 = vmul.f32 %v1407, 0.5
    %v1424 = vmul.f32 %v1408, 0.5
    %v1425 = vmul.f32 %v1409, 0.5
    %v1426 = vmul.f32 %v1410, 0.5
    %v1427 = vtanh.pop %v1411
    %v1428 = vtanh.pop %v1412
    %v1429 = vtanh.pop %v1413
    %v1430 = vtanh.pop %v1414
    %v1431 = vtanh.pop %v1415
    %v1432 = vtanh.pop %v1416
    %v1433 = vtanh.pop %v1417
    %v1434 = vtanh.pop %v1418
    %v1435 = vtanh.pop %v1419
    %v1436 = vtanh.pop %v1420
    %v1437 = vtanh.pop %v1421
    %v1438 = vtanh.pop %v1422
    %v1439 = vtanh.pop %v1423
    %v1440 = vtanh.pop %v1424
    %v1441 = vtanh.pop %v1425
    %v1442 = vtanh.pop %v1426
    %v1443 = vmul.f32 %v1427, 0.5
    %v1444 = vmul.f32 %v1428, 0.5
    %v1445 = vmul.f32 %v1429, 0.5
    %v1446 = vmul.f32 %v1430, 0.5
    %v1447 = vmul.f32 %v1431, 0.5
    %v1448 = vmul.f32 %v1432, 0.5
    %v1449 = vmul.f32 %v1433, 0.5
    %v1450 = vmul.f32 %v1434, 0.5
    %v1451 = vmul.f32 %v1435, 0.5
    %v1452 = vmul.f32 %v1436, 0.5
    %v1453 = vmul.f32 %v1437, 0.5
    %v1454 = vmul.f32 %v1438, 0.5
    %v1455 = vmul.f32 %v1439, 0.5
    %v1456 = vmul.f32 %v1440, 0.5
    %v1457 = vmul.f32 %v1441, 0.5
    %v1458 = vmul.f32 %v1442, 0.5
    %v1459 = vadd.f32 %v1443, 0.5
    %v1460 = vadd.f32 %v1444, 0.5
    %v1461 = vadd.f32 %v1445, 0.5
    %v1462 = vadd.f32 %v1446, 0.5
    %v1463 = vadd.f32 %v1447, 0.5
    %v1464 = vadd.f32 %v1448, 0.5
    %v1465 = vadd.f32 %v1449, 0.5
    %v1466 = vadd.f32 %v1450, 0.5
    %v1467 = vadd.f32 %v1451, 0.5
    %v1468 = vadd.f32 %v1452, 0.5
    %v1469 = vadd.f32 %v1453, 0.5
    %v1470 = vadd.f32 %v1454, 0.5
    %v1471 = vadd.f32 %v1455, 0.5
    %v1472 = vadd.f32 %v1456, 0.5
    %v1473 = vadd.f32 %v1457, 0.5
    %v1474 = vadd.f32 %v1458, 0.5
    %1476 = vset.pattern.permute.xlu0 0
    %1477 = vperm.xlu0 %1476, %v1107
    %v1478 = vpop.permute.xlu0 %1477
    %1481 = vset.pattern.permute.xlu0 0
    %1482 = vperm.xlu0 %1481, %v1108
    %v1483 = vpop.permute.xlu0 %1482
    %1486 = vset.pattern.permute.xlu0 0
    %1487 = vperm.xlu0 %1486, %v1109
    %v1488 = vpop.permute.xlu0 %1487
    %1491 = vset.pattern.permute.xlu0 0
    %1492 = vperm.xlu0 %1491, %v1110
    %v1493 = vpop.permute.xlu0 %1492
    %1496 = vset.pattern.permute.xlu0 0
    %1497 = vperm.xlu0 %1496, %v1111
    %v1498 = vpop.permute.xlu0 %1497
    %1501 = vset.pattern.permute.xlu0 0
    %1502 = vperm.xlu0 %1501, %v1112
    %v1503 = vpop.permute.xlu0 %1502
    %1506 = vset.pattern.permute.xlu0 0
    %1507 = vperm.xlu0 %1506, %v1113
    %v1508 = vpop.permute.xlu0 %1507
    %1511 = vset.pattern.permute.xlu0 0
    %1512 = vperm.xlu0 %1511, %v1114
    %v1513 = vpop.permute.xlu0 %1512
    %1516 = vset.pattern.permute.xlu0 0
    %1517 = vperm.xlu0 %1516, %v1115
    %v1518 = vpop.permute.xlu0 %1517
    %1521 = vset.pattern.permute.xlu0 0
    %1522 = vperm.xlu0 %1521, %v1116
    %v1523 = vpop.permute.xlu0 %1522
    %1526 = vset.pattern.permute.xlu0 0
    %1527 = vperm.xlu0 %1526, %v1117
    %v1528 = vpop.permute.xlu0 %1527
    %1531 = vset.pattern.permute.xlu0 0
    %1532 = vperm.xlu0 %1531, %v1118
    %v1533 = vpop.permute.xlu0 %1532
    %1536 = vset.pattern.permute.xlu0 0
    %1537 = vperm.xlu0 %1536, %v1119
    %v1538 = vpop.permute.xlu0 %1537
    %1541 = vset.pattern.permute.xlu0 0
    %1542 = vperm.xlu0 %1541, %v1120
    %v1543 = vpop.permute.xlu0 %1542
    %1546 = vset.pattern.permute.xlu0 0
    %1547 = vperm.xlu0 %1546, %v1121
    %v1548 = vpop.permute.xlu0 %1547
    %1551 = vset.pattern.permute.xlu0 0
    %1552 = vperm.xlu0 %1551, %v1122
    %v1553 = vpop.permute.xlu0 %1552
    %v1555 = vmul.f32 %v1459, %v1478
    %v1556 = vmul.f32 %v1460, %v1483
    %v1557 = vmul.f32 %v1461, %v1488
    %v1558 = vmul.f32 %v1462, %v1493
    %v1559 = vmul.f32 %v1463, %v1498
    %v1560 = vmul.f32 %v1464, %v1503
    %v1561 = vmul.f32 %v1465, %v1508
    %v1562 = vmul.f32 %v1466, %v1513
    %v1563 = vmul.f32 %v1467, %v1518
    %v1564 = vmul.f32 %v1468, %v1523
    %v1565 = vmul.f32 %v1469, %v1528
    %v1566 = vmul.f32 %v1470, %v1533
    %v1567 = vmul.f32 %v1471, %v1538
    %v1568 = vmul.f32 %v1472, %v1543
    %v1569 = vmul.f32 %v1473, %v1548
    %v1570 = vmul.f32 %v1474, %v1553
    %v1571 = vadd.f32 %v1555, %v1556
    %v1572 = vadd.f32 %v1571, %v1557
    %v1573 = vadd.f32 %v1572, %v1558
    %v1574 = vadd.f32 %v1573, %v1559
    %v1575 = vadd.f32 %v1574, %v1560
    %v1576 = vadd.f32 %v1575, %v1561
    %v1577 = vadd.f32 %v1576, %v1562
    %v1578 = vadd.f32 %v1577, %v1563
    %v1579 = vadd.f32 %v1578, %v1564
    %v1580 = vadd.f32 %v1579, %v1565
    %v1581 = vadd.f32 %v1580, %v1566
    %v1582 = vadd.f32 %v1581, %v1567
    %v1583 = vadd.f32 %v1582, %v1568
    %v1584 = vadd.f32 %v1583, %v1569
    %v1585 = vadd.f32 %v1584, %v1570
    %v1586 = vrot.slane %v1585, 4
    %v1587 = vadd.f32 %v1585, %v1586
    %v1588 = vrot.slane %v1587, 2
    %v1589 = vadd.f32 %v1587, %v1588
    %v1590 = vrot.slane %v1589, 1
    %v1591 = vadd.f32 %v1589, %v1590
    %v1592 = vadd.f32 %v1071, %v1591
    %s1593 = scalar_lea.vmem %s1, 384
    %v1594 = vld [vmem:[%s1593] sm:$0xff]
    %v1595 = vld [vmem:[%s1593 + $0x8] sm:$0xff]
    %v1596 = vld [vmem:[%s1593 + $0x10] sm:$0xff]
    %v1597 = vld [vmem:[%s1593 + $0x18] sm:$0xff]
    %v1598 = vld [vmem:[%s1593 + $0x20] sm:$0xff]
    %v1599 = vld [vmem:[%s1593 + $0x28] sm:$0xff]
    %v1600 = vld [vmem:[%s1593 + $0x30] sm:$0xff]
    %v1601 = vld [vmem:[%s1593 + $0x38] sm:$0xff]
    %v1602 = vld [vmem:[%s1593 + $0x40] sm:$0xff]
    %v1603 = vld [vmem:[%s1593 + $0x48] sm:$0xff]
    %v1604 = vld [vmem:[%s1593 + $0x50] sm:$0xff]
    %v1605 = vld [vmem:[%s1593 + $0x58] sm:$0xff]
    %v1606 = vld [vmem:[%s1593 + $0x60] sm:$0xff]
    %v1607 = vld [vmem:[%s1593 + $0x68] sm:$0xff]
    %v1608 = vld [vmem:[%s1593 + $0x70] sm:$0xff]
    %v1609 = vld [vmem:[%s1593 + $0x78] sm:$0xff]
    %s1610 = scalar_lea.vmem %s2, 384
    %v1611 = vld [vmem:[%s1610] sm:$0xff]
    %v1612 = vld [vmem:[%s1610 + $0x8] sm:$0xff]
    %v1613 = vld [vmem:[%s1610 + $0x10] sm:$0xff]
    %v1614 = vld [vmem:[%s1610 + $0x18] sm:$0xff]
    %v1615 = vld [vmem:[%s1610 + $0x20] sm:$0xff]
    %v1616 = vld [vmem:[%s1610 + $0x28] sm:$0xff]
    %v1617 = vld [vmem:[%s1610 + $0x30] sm:$0xff]
    %v1618 = vld [vmem:[%s1610 + $0x38] sm:$0xff]
    %v1619 = vld [vmem:[%s1610 + $0x40] sm:$0xff]
    %v1620 = vld [vmem:[%s1610 + $0x48] sm:$0xff]
    %v1621 = vld [vmem:[%s1610 + $0x50] sm:$0xff]
    %v1622 = vld [vmem:[%s1610 + $0x58] sm:$0xff]
    %v1623 = vld [vmem:[%s1610 + $0x60] sm:$0xff]
    %v1624 = vld [vmem:[%s1610 + $0x68] sm:$0xff]
    %v1625 = vld [vmem:[%s1610 + $0x70] sm:$0xff]
    %v1626 = vld [vmem:[%s1610 + $0x78] sm:$0xff]
    %s1627 = scalar_lea.vmem %s3, 384
    %v1628 = vld [vmem:[%s1627] sm:$0xff]
    %v1629 = vld [vmem:[%s1627 + $0x8] sm:$0xff]
    %v1630 = vld [vmem:[%s1627 + $0x10] sm:$0xff]
    %v1631 = vld [vmem:[%s1627 + $0x18] sm:$0xff]
    %v1632 = vld [vmem:[%s1627 + $0x20] sm:$0xff]
    %v1633 = vld [vmem:[%s1627 + $0x28] sm:$0xff]
    %v1634 = vld [vmem:[%s1627 + $0x30] sm:$0xff]
    %v1635 = vld [vmem:[%s1627 + $0x38] sm:$0xff]
    %v1636 = vld [vmem:[%s1627 + $0x40] sm:$0xff]
    %v1637 = vld [vmem:[%s1627 + $0x48] sm:$0xff]
    %v1638 = vld [vmem:[%s1627 + $0x50] sm:$0xff]
    %v1639 = vld [vmem:[%s1627 + $0x58] sm:$0xff]
    %v1640 = vld [vmem:[%s1627 + $0x60] sm:$0xff]
    %v1641 = vld [vmem:[%s1627 + $0x68] sm:$0xff]
    %v1642 = vld [vmem:[%s1627 + $0x70] sm:$0xff]
    %v1643 = vld [vmem:[%s1627 + $0x78] sm:$0xff]
    %1645 = vset.pattern.permute.xlu0 0
    %1646 = vperm.xlu0 %1645, %v1594
    %v1647 = vpop.permute.xlu0 %1646
    %1650 = vset.pattern.permute.xlu0 0
    %1651 = vperm.xlu0 %1650, %v1595
    %v1652 = vpop.permute.xlu0 %1651
    %1655 = vset.pattern.permute.xlu0 0
    %1656 = vperm.xlu0 %1655, %v1596
    %v1657 = vpop.permute.xlu0 %1656
    %1660 = vset.pattern.permute.xlu0 0
    %1661 = vperm.xlu0 %1660, %v1597
    %v1662 = vpop.permute.xlu0 %1661
    %1665 = vset.pattern.permute.xlu0 0
    %1666 = vperm.xlu0 %1665, %v1598
    %v1667 = vpop.permute.xlu0 %1666
    %1670 = vset.pattern.permute.xlu0 0
    %1671 = vperm.xlu0 %1670, %v1599
    %v1672 = vpop.permute.xlu0 %1671
    %1675 = vset.pattern.permute.xlu0 0
    %1676 = vperm.xlu0 %1675, %v1600
    %v1677 = vpop.permute.xlu0 %1676
    %1680 = vset.pattern.permute.xlu0 0
    %1681 = vperm.xlu0 %1680, %v1601
    %v1682 = vpop.permute.xlu0 %1681
    %1685 = vset.pattern.permute.xlu0 0
    %1686 = vperm.xlu0 %1685, %v1602
    %v1687 = vpop.permute.xlu0 %1686
    %1690 = vset.pattern.permute.xlu0 0
    %1691 = vperm.xlu0 %1690, %v1603
    %v1692 = vpop.permute.xlu0 %1691
    %1695 = vset.pattern.permute.xlu0 0
    %1696 = vperm.xlu0 %1695, %v1604
    %v1697 = vpop.permute.xlu0 %1696
    %1700 = vset.pattern.permute.xlu0 0
    %1701 = vperm.xlu0 %1700, %v1605
    %v1702 = vpop.permute.xlu0 %1701
    %1705 = vset.pattern.permute.xlu0 0
    %1706 = vperm.xlu0 %1705, %v1606
    %v1707 = vpop.permute.xlu0 %1706
    %1710 = vset.pattern.permute.xlu0 0
    %1711 = vperm.xlu0 %1710, %v1607
    %v1712 = vpop.permute.xlu0 %1711
    %1715 = vset.pattern.permute.xlu0 0
    %1716 = vperm.xlu0 %1715, %v1608
    %v1717 = vpop.permute.xlu0 %1716
    %1720 = vset.pattern.permute.xlu0 0
    %1721 = vperm.xlu0 %1720, %v1609
    %v1722 = vpop.permute.xlu0 %1721
    %v1724 = vmul.f32 %v1647, %v156
    %v1725 = vmul.f32 %v1652, %v156
    %v1726 = vmul.f32 %v1657, %v156
    %v1727 = vmul.f32 %v1662, %v156
    %v1728 = vmul.f32 %v1667, %v156
    %v1729 = vmul.f32 %v1672, %v156
    %v1730 = vmul.f32 %v1677, %v156
    %v1731 = vmul.f32 %v1682, %v156
    %v1732 = vmul.f32 %v1687, %v156
    %v1733 = vmul.f32 %v1692, %v156
    %v1734 = vmul.f32 %v1697, %v156
    %v1735 = vmul.f32 %v1702, %v156
    %v1736 = vmul.f32 %v1707, %v156
    %v1737 = vmul.f32 %v1712, %v156
    %v1738 = vmul.f32 %v1717, %v156
    %v1739 = vmul.f32 %v1722, %v156
    %1740 = vset.pattern.permute.xlu0 1
    %1741 = vperm.xlu0 %1740, %v1594
    %v1742 = vpop.permute.xlu0 %1741
    %1744 = vset.pattern.permute.xlu0 1
    %1745 = vperm.xlu0 %1744, %v1595
    %v1746 = vpop.permute.xlu0 %1745
    %1748 = vset.pattern.permute.xlu0 1
    %1749 = vperm.xlu0 %1748, %v1596
    %v1750 = vpop.permute.xlu0 %1749
    %1752 = vset.pattern.permute.xlu0 1
    %1753 = vperm.xlu0 %1752, %v1597
    %v1754 = vpop.permute.xlu0 %1753
    %1756 = vset.pattern.permute.xlu0 1
    %1757 = vperm.xlu0 %1756, %v1598
    %v1758 = vpop.permute.xlu0 %1757
    %1760 = vset.pattern.permute.xlu0 1
    %1761 = vperm.xlu0 %1760, %v1599
    %v1762 = vpop.permute.xlu0 %1761
    %1764 = vset.pattern.permute.xlu0 1
    %1765 = vperm.xlu0 %1764, %v1600
    %v1766 = vpop.permute.xlu0 %1765
    %1768 = vset.pattern.permute.xlu0 1
    %1769 = vperm.xlu0 %1768, %v1601
    %v1770 = vpop.permute.xlu0 %1769
    %1772 = vset.pattern.permute.xlu0 1
    %1773 = vperm.xlu0 %1772, %v1602
    %v1774 = vpop.permute.xlu0 %1773
    %1776 = vset.pattern.permute.xlu0 1
    %1777 = vperm.xlu0 %1776, %v1603
    %v1778 = vpop.permute.xlu0 %1777
    %1780 = vset.pattern.permute.xlu0 1
    %1781 = vperm.xlu0 %1780, %v1604
    %v1782 = vpop.permute.xlu0 %1781
    %1784 = vset.pattern.permute.xlu0 1
    %1785 = vperm.xlu0 %1784, %v1605
    %v1786 = vpop.permute.xlu0 %1785
    %1788 = vset.pattern.permute.xlu0 1
    %1789 = vperm.xlu0 %1788, %v1606
    %v1790 = vpop.permute.xlu0 %1789
    %1792 = vset.pattern.permute.xlu0 1
    %1793 = vperm.xlu0 %1792, %v1607
    %v1794 = vpop.permute.xlu0 %1793
    %1796 = vset.pattern.permute.xlu0 1
    %1797 = vperm.xlu0 %1796, %v1608
    %v1798 = vpop.permute.xlu0 %1797
    %1800 = vset.pattern.permute.xlu0 1
    %1801 = vperm.xlu0 %1800, %v1609
    %v1802 = vpop.permute.xlu0 %1801
    %v1804 = vmul.f32 %v1742, %v240
    %v1805 = vmul.f32 %v1746, %v240
    %v1806 = vmul.f32 %v1750, %v240
    %v1807 = vmul.f32 %v1754, %v240
    %v1808 = vmul.f32 %v1758, %v240
    %v1809 = vmul.f32 %v1762, %v240
    %v1810 = vmul.f32 %v1766, %v240
    %v1811 = vmul.f32 %v1770, %v240
    %v1812 = vmul.f32 %v1774, %v240
    %v1813 = vmul.f32 %v1778, %v240
    %v1814 = vmul.f32 %v1782, %v240
    %v1815 = vmul.f32 %v1786, %v240
    %v1816 = vmul.f32 %v1790, %v240
    %v1817 = vmul.f32 %v1794, %v240
    %v1818 = vmul.f32 %v1798, %v240
    %v1819 = vmul.f32 %v1802, %v240
    %v1820 = vadd.f32 %v1724, %v1804
    %v1821 = vadd.f32 %v1725, %v1805
    %v1822 = vadd.f32 %v1726, %v1806
    %v1823 = vadd.f32 %v1727, %v1807
    %v1824 = vadd.f32 %v1728, %v1808
    %v1825 = vadd.f32 %v1729, %v1809
    %v1826 = vadd.f32 %v1730, %v1810
    %v1827 = vadd.f32 %v1731, %v1811
    %v1828 = vadd.f32 %v1732, %v1812
    %v1829 = vadd.f32 %v1733, %v1813
    %v1830 = vadd.f32 %v1734, %v1814
    %v1831 = vadd.f32 %v1735, %v1815
    %v1832 = vadd.f32 %v1736, %v1816
    %v1833 = vadd.f32 %v1737, %v1817
    %v1834 = vadd.f32 %v1738, %v1818
    %v1835 = vadd.f32 %v1739, %v1819
    %1837 = vset.pattern.permute.xlu0 0
    %1838 = vperm.xlu0 %1837, %v1611
    %v1839 = vpop.permute.xlu0 %1838
    %1842 = vset.pattern.permute.xlu0 0
    %1843 = vperm.xlu0 %1842, %v1612
    %v1844 = vpop.permute.xlu0 %1843
    %1847 = vset.pattern.permute.xlu0 0
    %1848 = vperm.xlu0 %1847, %v1613
    %v1849 = vpop.permute.xlu0 %1848
    %1852 = vset.pattern.permute.xlu0 0
    %1853 = vperm.xlu0 %1852, %v1614
    %v1854 = vpop.permute.xlu0 %1853
    %1857 = vset.pattern.permute.xlu0 0
    %1858 = vperm.xlu0 %1857, %v1615
    %v1859 = vpop.permute.xlu0 %1858
    %1862 = vset.pattern.permute.xlu0 0
    %1863 = vperm.xlu0 %1862, %v1616
    %v1864 = vpop.permute.xlu0 %1863
    %1867 = vset.pattern.permute.xlu0 0
    %1868 = vperm.xlu0 %1867, %v1617
    %v1869 = vpop.permute.xlu0 %1868
    %1872 = vset.pattern.permute.xlu0 0
    %1873 = vperm.xlu0 %1872, %v1618
    %v1874 = vpop.permute.xlu0 %1873
    %1877 = vset.pattern.permute.xlu0 0
    %1878 = vperm.xlu0 %1877, %v1619
    %v1879 = vpop.permute.xlu0 %1878
    %1882 = vset.pattern.permute.xlu0 0
    %1883 = vperm.xlu0 %1882, %v1620
    %v1884 = vpop.permute.xlu0 %1883
    %1887 = vset.pattern.permute.xlu0 0
    %1888 = vperm.xlu0 %1887, %v1621
    %v1889 = vpop.permute.xlu0 %1888
    %1892 = vset.pattern.permute.xlu0 0
    %1893 = vperm.xlu0 %1892, %v1622
    %v1894 = vpop.permute.xlu0 %1893
    %1897 = vset.pattern.permute.xlu0 0
    %1898 = vperm.xlu0 %1897, %v1623
    %v1899 = vpop.permute.xlu0 %1898
    %1902 = vset.pattern.permute.xlu0 0
    %1903 = vperm.xlu0 %1902, %v1624
    %v1904 = vpop.permute.xlu0 %1903
    %1907 = vset.pattern.permute.xlu0 0
    %1908 = vperm.xlu0 %1907, %v1625
    %v1909 = vpop.permute.xlu0 %1908
    %1912 = vset.pattern.permute.xlu0 0
    %1913 = vperm.xlu0 %1912, %v1626
    %v1914 = vpop.permute.xlu0 %1913
    %v1916 = vadd.f32 %v1820, %v1839
    %v1917 = vadd.f32 %v1821, %v1844
    %v1918 = vadd.f32 %v1822, %v1849
    %v1919 = vadd.f32 %v1823, %v1854
    %v1920 = vadd.f32 %v1824, %v1859
    %v1921 = vadd.f32 %v1825, %v1864
    %v1922 = vadd.f32 %v1826, %v1869
    %v1923 = vadd.f32 %v1827, %v1874
    %v1924 = vadd.f32 %v1828, %v1879
    %v1925 = vadd.f32 %v1829, %v1884
    %v1926 = vadd.f32 %v1830, %v1889
    %v1927 = vadd.f32 %v1831, %v1894
    %v1928 = vadd.f32 %v1832, %v1899
    %v1929 = vadd.f32 %v1833, %v1904
    %v1930 = vadd.f32 %v1834, %v1909
    %v1931 = vadd.f32 %v1835, %v1914
    %v1932 = vmul.f32 %v1916, 0.5
    %v1933 = vmul.f32 %v1917, 0.5
    %v1934 = vmul.f32 %v1918, 0.5
    %v1935 = vmul.f32 %v1919, 0.5
    %v1936 = vmul.f32 %v1920, 0.5
    %v1937 = vmul.f32 %v1921, 0.5
    %v1938 = vmul.f32 %v1922, 0.5
    %v1939 = vmul.f32 %v1923, 0.5
    %v1940 = vmul.f32 %v1924, 0.5
    %v1941 = vmul.f32 %v1925, 0.5
    %v1942 = vmul.f32 %v1926, 0.5
    %v1943 = vmul.f32 %v1927, 0.5
    %v1944 = vmul.f32 %v1928, 0.5
    %v1945 = vmul.f32 %v1929, 0.5
    %v1946 = vmul.f32 %v1930, 0.5
    %v1947 = vmul.f32 %v1931, 0.5
    %v1948 = vtanh.pop %v1932
    %v1949 = vtanh.pop %v1933
    %v1950 = vtanh.pop %v1934
    %v1951 = vtanh.pop %v1935
    %v1952 = vtanh.pop %v1936
    %v1953 = vtanh.pop %v1937
    %v1954 = vtanh.pop %v1938
    %v1955 = vtanh.pop %v1939
    %v1956 = vtanh.pop %v1940
    %v1957 = vtanh.pop %v1941
    %v1958 = vtanh.pop %v1942
    %v1959 = vtanh.pop %v1943
    %v1960 = vtanh.pop %v1944
    %v1961 = vtanh.pop %v1945
    %v1962 = vtanh.pop %v1946
    %v1963 = vtanh.pop %v1947
    %v1964 = vmul.f32 %v1948, 0.5
    %v1965 = vmul.f32 %v1949, 0.5
    %v1966 = vmul.f32 %v1950, 0.5
    %v1967 = vmul.f32 %v1951, 0.5
    %v1968 = vmul.f32 %v1952, 0.5
    %v1969 = vmul.f32 %v1953, 0.5
    %v1970 = vmul.f32 %v1954, 0.5
    %v1971 = vmul.f32 %v1955, 0.5
    %v1972 = vmul.f32 %v1956, 0.5
    %v1973 = vmul.f32 %v1957, 0.5
    %v1974 = vmul.f32 %v1958, 0.5
    %v1975 = vmul.f32 %v1959, 0.5
    %v1976 = vmul.f32 %v1960, 0.5
    %v1977 = vmul.f32 %v1961, 0.5
    %v1978 = vmul.f32 %v1962, 0.5
    %v1979 = vmul.f32 %v1963, 0.5
    %v1980 = vadd.f32 %v1964, 0.5
    %v1981 = vadd.f32 %v1965, 0.5
    %v1982 = vadd.f32 %v1966, 0.5
    %v1983 = vadd.f32 %v1967, 0.5
    %v1984 = vadd.f32 %v1968, 0.5
    %v1985 = vadd.f32 %v1969, 0.5
    %v1986 = vadd.f32 %v1970, 0.5
    %v1987 = vadd.f32 %v1971, 0.5
    %v1988 = vadd.f32 %v1972, 0.5
    %v1989 = vadd.f32 %v1973, 0.5
    %v1990 = vadd.f32 %v1974, 0.5
    %v1991 = vadd.f32 %v1975, 0.5
    %v1992 = vadd.f32 %v1976, 0.5
    %v1993 = vadd.f32 %v1977, 0.5
    %v1994 = vadd.f32 %v1978, 0.5
    %v1995 = vadd.f32 %v1979, 0.5
    %1997 = vset.pattern.permute.xlu0 0
    %1998 = vperm.xlu0 %1997, %v1628
    %v1999 = vpop.permute.xlu0 %1998
    %2002 = vset.pattern.permute.xlu0 0
    %2003 = vperm.xlu0 %2002, %v1629
    %v2004 = vpop.permute.xlu0 %2003
    %2007 = vset.pattern.permute.xlu0 0
    %2008 = vperm.xlu0 %2007, %v1630
    %v2009 = vpop.permute.xlu0 %2008
    %2012 = vset.pattern.permute.xlu0 0
    %2013 = vperm.xlu0 %2012, %v1631
    %v2014 = vpop.permute.xlu0 %2013
    %2017 = vset.pattern.permute.xlu0 0
    %2018 = vperm.xlu0 %2017, %v1632
    %v2019 = vpop.permute.xlu0 %2018
    %2022 = vset.pattern.permute.xlu0 0
    %2023 = vperm.xlu0 %2022, %v1633
    %v2024 = vpop.permute.xlu0 %2023
    %2027 = vset.pattern.permute.xlu0 0
    %2028 = vperm.xlu0 %2027, %v1634
    %v2029 = vpop.permute.xlu0 %2028
    %2032 = vset.pattern.permute.xlu0 0
    %2033 = vperm.xlu0 %2032, %v1635
    %v2034 = vpop.permute.xlu0 %2033
    %2037 = vset.pattern.permute.xlu0 0
    %2038 = vperm.xlu0 %2037, %v1636
    %v2039 = vpop.permute.xlu0 %2038
    %2042 = vset.pattern.permute.xlu0 0
    %2043 = vperm.xlu0 %2042, %v1637
    %v2044 = vpop.permute.xlu0 %2043
    %2047 = vset.pattern.permute.xlu0 0
    %2048 = vperm.xlu0 %2047, %v1638
    %v2049 = vpop.permute.xlu0 %2048
    %2052 = vset.pattern.permute.xlu0 0
    %2053 = vperm.xlu0 %2052, %v1639
    %v2054 = vpop.permute.xlu0 %2053
    %2057 = vset.pattern.permute.xlu0 0
    %2058 = vperm.xlu0 %2057, %v1640
    %v2059 = vpop.permute.xlu0 %2058
    %2062 = vset.pattern.permute.xlu0 0
    %2063 = vperm.xlu0 %2062, %v1641
    %v2064 = vpop.permute.xlu0 %2063
    %2067 = vset.pattern.permute.xlu0 0
    %2068 = vperm.xlu0 %2067, %v1642
    %v2069 = vpop.permute.xlu0 %2068
    %2072 = vset.pattern.permute.xlu0 0
    %2073 = vperm.xlu0 %2072, %v1643
    %v2074 = vpop.permute.xlu0 %2073
    %v2076 = vmul.f32 %v1980, %v1999
    %v2077 = vmul.f32 %v1981, %v2004
    %v2078 = vmul.f32 %v1982, %v2009
    %v2079 = vmul.f32 %v1983, %v2014
    %v2080 = vmul.f32 %v1984, %v2019
    %v2081 = vmul.f32 %v1985, %v2024
    %v2082 = vmul.f32 %v1986, %v2029
    %v2083 = vmul.f32 %v1987, %v2034
    %v2084 = vmul.f32 %v1988, %v2039
    %v2085 = vmul.f32 %v1989, %v2044
    %v2086 = vmul.f32 %v1990, %v2049
    %v2087 = vmul.f32 %v1991, %v2054
    %v2088 = vmul.f32 %v1992, %v2059
    %v2089 = vmul.f32 %v1993, %v2064
    %v2090 = vmul.f32 %v1994, %v2069
    %v2091 = vmul.f32 %v1995, %v2074
    %v2092 = vadd.f32 %v2076, %v2077
    %v2093 = vadd.f32 %v2092, %v2078
    %v2094 = vadd.f32 %v2093, %v2079
    %v2095 = vadd.f32 %v2094, %v2080
    %v2096 = vadd.f32 %v2095, %v2081
    %v2097 = vadd.f32 %v2096, %v2082
    %v2098 = vadd.f32 %v2097, %v2083
    %v2099 = vadd.f32 %v2098, %v2084
    %v2100 = vadd.f32 %v2099, %v2085
    %v2101 = vadd.f32 %v2100, %v2086
    %v2102 = vadd.f32 %v2101, %v2087
    %v2103 = vadd.f32 %v2102, %v2088
    %v2104 = vadd.f32 %v2103, %v2089
    %v2105 = vadd.f32 %v2104, %v2090
    %v2106 = vadd.f32 %v2105, %v2091
    %v2107 = vrot.slane %v2106, 4
    %v2108 = vadd.f32 %v2106, %v2107
    %v2109 = vrot.slane %v2108, 2
    %v2110 = vadd.f32 %v2108, %v2109
    %v2111 = vrot.slane %v2110, 1
    %v2112 = vadd.f32 %v2110, %v2111
    %v2113 = vadd.f32 %v1592, %v2112
    %s2114 = scalar_lea.vmem %s1, 512
    %v2115 = vld [vmem:[%s2114] sm:$0xff]
    %v2116 = vld [vmem:[%s2114 + $0x8] sm:$0xff]
    %v2117 = vld [vmem:[%s2114 + $0x10] sm:$0xff]
    %v2118 = vld [vmem:[%s2114 + $0x18] sm:$0xff]
    %v2119 = vld [vmem:[%s2114 + $0x20] sm:$0xff]
    %v2120 = vld [vmem:[%s2114 + $0x28] sm:$0xff]
    %v2121 = vld [vmem:[%s2114 + $0x30] sm:$0xff]
    %v2122 = vld [vmem:[%s2114 + $0x38] sm:$0xff]
    %v2123 = vld [vmem:[%s2114 + $0x40] sm:$0xff]
    %v2124 = vld [vmem:[%s2114 + $0x48] sm:$0xff]
    %v2125 = vld [vmem:[%s2114 + $0x50] sm:$0xff]
    %v2126 = vld [vmem:[%s2114 + $0x58] sm:$0xff]
    %v2127 = vld [vmem:[%s2114 + $0x60] sm:$0xff]
    %v2128 = vld [vmem:[%s2114 + $0x68] sm:$0xff]
    %v2129 = vld [vmem:[%s2114 + $0x70] sm:$0xff]
    %v2130 = vld [vmem:[%s2114 + $0x78] sm:$0xff]
    %s2131 = scalar_lea.vmem %s2, 512
    %v2132 = vld [vmem:[%s2131] sm:$0xff]
    %v2133 = vld [vmem:[%s2131 + $0x8] sm:$0xff]
    %v2134 = vld [vmem:[%s2131 + $0x10] sm:$0xff]
    %v2135 = vld [vmem:[%s2131 + $0x18] sm:$0xff]
    %v2136 = vld [vmem:[%s2131 + $0x20] sm:$0xff]
    %v2137 = vld [vmem:[%s2131 + $0x28] sm:$0xff]
    %v2138 = vld [vmem:[%s2131 + $0x30] sm:$0xff]
    %v2139 = vld [vmem:[%s2131 + $0x38] sm:$0xff]
    %v2140 = vld [vmem:[%s2131 + $0x40] sm:$0xff]
    %v2141 = vld [vmem:[%s2131 + $0x48] sm:$0xff]
    %v2142 = vld [vmem:[%s2131 + $0x50] sm:$0xff]
    %v2143 = vld [vmem:[%s2131 + $0x58] sm:$0xff]
    %v2144 = vld [vmem:[%s2131 + $0x60] sm:$0xff]
    %v2145 = vld [vmem:[%s2131 + $0x68] sm:$0xff]
    %v2146 = vld [vmem:[%s2131 + $0x70] sm:$0xff]
    %v2147 = vld [vmem:[%s2131 + $0x78] sm:$0xff]
    %s2148 = scalar_lea.vmem %s3, 512
    %v2149 = vld [vmem:[%s2148] sm:$0xff]
    %v2150 = vld [vmem:[%s2148 + $0x8] sm:$0xff]
    %v2151 = vld [vmem:[%s2148 + $0x10] sm:$0xff]
    %v2152 = vld [vmem:[%s2148 + $0x18] sm:$0xff]
    %v2153 = vld [vmem:[%s2148 + $0x20] sm:$0xff]
    %v2154 = vld [vmem:[%s2148 + $0x28] sm:$0xff]
    %v2155 = vld [vmem:[%s2148 + $0x30] sm:$0xff]
    %v2156 = vld [vmem:[%s2148 + $0x38] sm:$0xff]
    %v2157 = vld [vmem:[%s2148 + $0x40] sm:$0xff]
    %v2158 = vld [vmem:[%s2148 + $0x48] sm:$0xff]
    %v2159 = vld [vmem:[%s2148 + $0x50] sm:$0xff]
    %v2160 = vld [vmem:[%s2148 + $0x58] sm:$0xff]
    %v2161 = vld [vmem:[%s2148 + $0x60] sm:$0xff]
    %v2162 = vld [vmem:[%s2148 + $0x68] sm:$0xff]
    %v2163 = vld [vmem:[%s2148 + $0x70] sm:$0xff]
    %v2164 = vld [vmem:[%s2148 + $0x78] sm:$0xff]
    %2166 = vset.pattern.permute.xlu0 0
    %2167 = vperm.xlu0 %2166, %v2115
    %v2168 = vpop.permute.xlu0 %2167
    %2171 = vset.pattern.permute.xlu0 0
    %2172 = vperm.xlu0 %2171, %v2116
    %v2173 = vpop.permute.xlu0 %2172
    %2176 = vset.pattern.permute.xlu0 0
    %2177 = vperm.xlu0 %2176, %v2117
    %v2178 = vpop.permute.xlu0 %2177
    %2181 = vset.pattern.permute.xlu0 0
    %2182 = vperm.xlu0 %2181, %v2118
    %v2183 = vpop.permute.xlu0 %2182
    %2186 = vset.pattern.permute.xlu0 0
    %2187 = vperm.xlu0 %2186, %v2119
    %v2188 = vpop.permute.xlu0 %2187
    %2191 = vset.pattern.permute.xlu0 0
    %2192 = vperm.xlu0 %2191, %v2120
    %v2193 = vpop.permute.xlu0 %2192
    %2196 = vset.pattern.permute.xlu0 0
    %2197 = vperm.xlu0 %2196, %v2121
    %v2198 = vpop.permute.xlu0 %2197
    %2201 = vset.pattern.permute.xlu0 0
    %2202 = vperm.xlu0 %2201, %v2122
    %v2203 = vpop.permute.xlu0 %2202
    %2206 = vset.pattern.permute.xlu0 0
    %2207 = vperm.xlu0 %2206, %v2123
    %v2208 = vpop.permute.xlu0 %2207
    %2211 = vset.pattern.permute.xlu0 0
    %2212 = vperm.xlu0 %2211, %v2124
    %v2213 = vpop.permute.xlu0 %2212
    %2216 = vset.pattern.permute.xlu0 0
    %2217 = vperm.xlu0 %2216, %v2125
    %v2218 = vpop.permute.xlu0 %2217
    %2221 = vset.pattern.permute.xlu0 0
    %2222 = vperm.xlu0 %2221, %v2126
    %v2223 = vpop.permute.xlu0 %2222
    %2226 = vset.pattern.permute.xlu0 0
    %2227 = vperm.xlu0 %2226, %v2127
    %v2228 = vpop.permute.xlu0 %2227
    %2231 = vset.pattern.permute.xlu0 0
    %2232 = vperm.xlu0 %2231, %v2128
    %v2233 = vpop.permute.xlu0 %2232
    %2236 = vset.pattern.permute.xlu0 0
    %2237 = vperm.xlu0 %2236, %v2129
    %v2238 = vpop.permute.xlu0 %2237
    %2241 = vset.pattern.permute.xlu0 0
    %2242 = vperm.xlu0 %2241, %v2130
    %v2243 = vpop.permute.xlu0 %2242
    %v2245 = vmul.f32 %v2168, %v156
    %v2246 = vmul.f32 %v2173, %v156
    %v2247 = vmul.f32 %v2178, %v156
    %v2248 = vmul.f32 %v2183, %v156
    %v2249 = vmul.f32 %v2188, %v156
    %v2250 = vmul.f32 %v2193, %v156
    %v2251 = vmul.f32 %v2198, %v156
    %v2252 = vmul.f32 %v2203, %v156
    %v2253 = vmul.f32 %v2208, %v156
    %v2254 = vmul.f32 %v2213, %v156
    %v2255 = vmul.f32 %v2218, %v156
    %v2256 = vmul.f32 %v2223, %v156
    %v2257 = vmul.f32 %v2228, %v156
    %v2258 = vmul.f32 %v2233, %v156
    %v2259 = vmul.f32 %v2238, %v156
    %v2260 = vmul.f32 %v2243, %v156
    %2261 = vset.pattern.permute.xlu0 1
    %2262 = vperm.xlu0 %2261, %v2115
    %v2263 = vpop.permute.xlu0 %2262
    %2265 = vset.pattern.permute.xlu0 1
    %2266 = vperm.xlu0 %2265, %v2116
    %v2267 = vpop.permute.xlu0 %2266
    %2269 = vset.pattern.permute.xlu0 1
    %2270 = vperm.xlu0 %2269, %v2117
    %v2271 = vpop.permute.xlu0 %2270
    %2273 = vset.pattern.permute.xlu0 1
    %2274 = vperm.xlu0 %2273, %v2118
    %v2275 = vpop.permute.xlu0 %2274
    %2277 = vset.pattern.permute.xlu0 1
    %2278 = vperm.xlu0 %2277, %v2119
    %v2279 = vpop.permute.xlu0 %2278
    %2281 = vset.pattern.permute.xlu0 1
    %2282 = vperm.xlu0 %2281, %v2120
    %v2283 = vpop.permute.xlu0 %2282
    %2285 = vset.pattern.permute.xlu0 1
    %2286 = vperm.xlu0 %2285, %v2121
    %v2287 = vpop.permute.xlu0 %2286
    %2289 = vset.pattern.permute.xlu0 1
    %2290 = vperm.xlu0 %2289, %v2122
    %v2291 = vpop.permute.xlu0 %2290
    %2293 = vset.pattern.permute.xlu0 1
    %2294 = vperm.xlu0 %2293, %v2123
    %v2295 = vpop.permute.xlu0 %2294
    %2297 = vset.pattern.permute.xlu0 1
    %2298 = vperm.xlu0 %2297, %v2124
    %v2299 = vpop.permute.xlu0 %2298
    %2301 = vset.pattern.permute.xlu0 1
    %2302 = vperm.xlu0 %2301, %v2125
    %v2303 = vpop.permute.xlu0 %2302
    %2305 = vset.pattern.permute.xlu0 1
    %2306 = vperm.xlu0 %2305, %v2126
    %v2307 = vpop.permute.xlu0 %2306
    %2309 = vset.pattern.permute.xlu0 1
    %2310 = vperm.xlu0 %2309, %v2127
    %v2311 = vpop.permute.xlu0 %2310
    %2313 = vset.pattern.permute.xlu0 1
    %2314 = vperm.xlu0 %2313, %v2128
    %v2315 = vpop.permute.xlu0 %2314
    %2317 = vset.pattern.permute.xlu0 1
    %2318 = vperm.xlu0 %2317, %v2129
    %v2319 = vpop.permute.xlu0 %2318
    %2321 = vset.pattern.permute.xlu0 1
    %2322 = vperm.xlu0 %2321, %v2130
    %v2323 = vpop.permute.xlu0 %2322
    %v2325 = vmul.f32 %v2263, %v240
    %v2326 = vmul.f32 %v2267, %v240
    %v2327 = vmul.f32 %v2271, %v240
    %v2328 = vmul.f32 %v2275, %v240
    %v2329 = vmul.f32 %v2279, %v240
    %v2330 = vmul.f32 %v2283, %v240
    %v2331 = vmul.f32 %v2287, %v240
    %v2332 = vmul.f32 %v2291, %v240
    %v2333 = vmul.f32 %v2295, %v240
    %v2334 = vmul.f32 %v2299, %v240
    %v2335 = vmul.f32 %v2303, %v240
    %v2336 = vmul.f32 %v2307, %v240
    %v2337 = vmul.f32 %v2311, %v240
    %v2338 = vmul.f32 %v2315, %v240
    %v2339 = vmul.f32 %v2319, %v240
    %v2340 = vmul.f32 %v2323, %v240
    %v2341 = vadd.f32 %v2245, %v2325
    %v2342 = vadd.f32 %v2246, %v2326
    %v2343 = vadd.f32 %v2247, %v2327
    %v2344 = vadd.f32 %v2248, %v2328
    %v2345 = vadd.f32 %v2249, %v2329
    %v2346 = vadd.f32 %v2250, %v2330
    %v2347 = vadd.f32 %v2251, %v2331
    %v2348 = vadd.f32 %v2252, %v2332
    %v2349 = vadd.f32 %v2253, %v2333
    %v2350 = vadd.f32 %v2254, %v2334
    %v2351 = vadd.f32 %v2255, %v2335
    %v2352 = vadd.f32 %v2256, %v2336
    %v2353 = vadd.f32 %v2257, %v2337
    %v2354 = vadd.f32 %v2258, %v2338
    %v2355 = vadd.f32 %v2259, %v2339
    %v2356 = vadd.f32 %v2260, %v2340
    %2358 = vset.pattern.permute.xlu0 0
    %2359 = vperm.xlu0 %2358, %v2132
    %v2360 = vpop.permute.xlu0 %2359
    %2363 = vset.pattern.permute.xlu0 0
    %2364 = vperm.xlu0 %2363, %v2133
    %v2365 = vpop.permute.xlu0 %2364
    %2368 = vset.pattern.permute.xlu0 0
    %2369 = vperm.xlu0 %2368, %v2134
    %v2370 = vpop.permute.xlu0 %2369
    %2373 = vset.pattern.permute.xlu0 0
    %2374 = vperm.xlu0 %2373, %v2135
    %v2375 = vpop.permute.xlu0 %2374
    %2378 = vset.pattern.permute.xlu0 0
    %2379 = vperm.xlu0 %2378, %v2136
    %v2380 = vpop.permute.xlu0 %2379
    %2383 = vset.pattern.permute.xlu0 0
    %2384 = vperm.xlu0 %2383, %v2137
    %v2385 = vpop.permute.xlu0 %2384
    %2388 = vset.pattern.permute.xlu0 0
    %2389 = vperm.xlu0 %2388, %v2138
    %v2390 = vpop.permute.xlu0 %2389
    %2393 = vset.pattern.permute.xlu0 0
    %2394 = vperm.xlu0 %2393, %v2139
    %v2395 = vpop.permute.xlu0 %2394
    %2398 = vset.pattern.permute.xlu0 0
    %2399 = vperm.xlu0 %2398, %v2140
    %v2400 = vpop.permute.xlu0 %2399
    %2403 = vset.pattern.permute.xlu0 0
    %2404 = vperm.xlu0 %2403, %v2141
    %v2405 = vpop.permute.xlu0 %2404
    %2408 = vset.pattern.permute.xlu0 0
    %2409 = vperm.xlu0 %2408, %v2142
    %v2410 = vpop.permute.xlu0 %2409
    %2413 = vset.pattern.permute.xlu0 0
    %2414 = vperm.xlu0 %2413, %v2143
    %v2415 = vpop.permute.xlu0 %2414
    %2418 = vset.pattern.permute.xlu0 0
    %2419 = vperm.xlu0 %2418, %v2144
    %v2420 = vpop.permute.xlu0 %2419
    %2423 = vset.pattern.permute.xlu0 0
    %2424 = vperm.xlu0 %2423, %v2145
    %v2425 = vpop.permute.xlu0 %2424
    %2428 = vset.pattern.permute.xlu0 0
    %2429 = vperm.xlu0 %2428, %v2146
    %v2430 = vpop.permute.xlu0 %2429
    %2433 = vset.pattern.permute.xlu0 0
    %2434 = vperm.xlu0 %2433, %v2147
    %v2435 = vpop.permute.xlu0 %2434
    %v2437 = vadd.f32 %v2341, %v2360
    %v2438 = vadd.f32 %v2342, %v2365
    %v2439 = vadd.f32 %v2343, %v2370
    %v2440 = vadd.f32 %v2344, %v2375
    %v2441 = vadd.f32 %v2345, %v2380
    %v2442 = vadd.f32 %v2346, %v2385
    %v2443 = vadd.f32 %v2347, %v2390
    %v2444 = vadd.f32 %v2348, %v2395
    %v2445 = vadd.f32 %v2349, %v2400
    %v2446 = vadd.f32 %v2350, %v2405
    %v2447 = vadd.f32 %v2351, %v2410
    %v2448 = vadd.f32 %v2352, %v2415
    %v2449 = vadd.f32 %v2353, %v2420
    %v2450 = vadd.f32 %v2354, %v2425
    %v2451 = vadd.f32 %v2355, %v2430
    %v2452 = vadd.f32 %v2356, %v2435
    %v2453 = vmul.f32 %v2437, 0.5
    %v2454 = vmul.f32 %v2438, 0.5
    %v2455 = vmul.f32 %v2439, 0.5
    %v2456 = vmul.f32 %v2440, 0.5
    %v2457 = vmul.f32 %v2441, 0.5
    %v2458 = vmul.f32 %v2442, 0.5
    %v2459 = vmul.f32 %v2443, 0.5
    %v2460 = vmul.f32 %v2444, 0.5
    %v2461 = vmul.f32 %v2445, 0.5
    %v2462 = vmul.f32 %v2446, 0.5
    %v2463 = vmul.f32 %v2447, 0.5
    %v2464 = vmul.f32 %v2448, 0.5
    %v2465 = vmul.f32 %v2449, 0.5
    %v2466 = vmul.f32 %v2450, 0.5
    %v2467 = vmul.f32 %v2451, 0.5
    %v2468 = vmul.f32 %v2452, 0.5
    %v2469 = vtanh.pop %v2453
    %v2470 = vtanh.pop %v2454
    %v2471 = vtanh.pop %v2455
    %v2472 = vtanh.pop %v2456
    %v2473 = vtanh.pop %v2457
    %v2474 = vtanh.pop %v2458
    %v2475 = vtanh.pop %v2459
    %v2476 = vtanh.pop %v2460
    %v2477 = vtanh.pop %v2461
    %v2478 = vtanh.pop %v2462
    %v2479 = vtanh.pop %v2463
    %v2480 = vtanh.pop %v2464
    %v2481 = vtanh.pop %v2465
    %v2482 = vtanh.pop %v2466
    %v2483 = vtanh.pop %v2467
    %v2484 = vtanh.pop %v2468
    %v2485 = vmul.f32 %v2469, 0.5
    %v2486 = vmul.f32 %v2470, 0.5
    %v2487 = vmul.f32 %v2471, 0.5
    %v2488 = vmul.f32 %v2472, 0.5
    %v2489 = vmul.f32 %v2473, 0.5
    %v2490 = vmul.f32 %v2474, 0.5
    %v2491 = vmul.f32 %v2475, 0.5
    %v2492 = vmul.f32 %v2476, 0.5
    %v2493 = vmul.f32 %v2477, 0.5
    %v2494 = vmul.f32 %v2478, 0.5
    %v2495 = vmul.f32 %v2479, 0.5
    %v2496 = vmul.f32 %v2480, 0.5
    %v2497 = vmul.f32 %v2481, 0.5
    %v2498 = vmul.f32 %v2482, 0.5
    %v2499 = vmul.f32 %v2483, 0.5
    %v2500 = vmul.f32 %v2484, 0.5
    %v2501 = vadd.f32 %v2485, 0.5
    %v2502 = vadd.f32 %v2486, 0.5
    %v2503 = vadd.f32 %v2487, 0.5
    %v2504 = vadd.f32 %v2488, 0.5
    %v2505 = vadd.f32 %v2489, 0.5
    %v2506 = vadd.f32 %v2490, 0.5
    %v2507 = vadd.f32 %v2491, 0.5
    %v2508 = vadd.f32 %v2492, 0.5
    %v2509 = vadd.f32 %v2493, 0.5
    %v2510 = vadd.f32 %v2494, 0.5
    %v2511 = vadd.f32 %v2495, 0.5
    %v2512 = vadd.f32 %v2496, 0.5
    %v2513 = vadd.f32 %v2497, 0.5
    %v2514 = vadd.f32 %v2498, 0.5
    %v2515 = vadd.f32 %v2499, 0.5
    %v2516 = vadd.f32 %v2500, 0.5
    %2518 = vset.pattern.permute.xlu0 0
    %2519 = vperm.xlu0 %2518, %v2149
    %v2520 = vpop.permute.xlu0 %2519
    %2523 = vset.pattern.permute.xlu0 0
    %2524 = vperm.xlu0 %2523, %v2150
    %v2525 = vpop.permute.xlu0 %2524
    %2528 = vset.pattern.permute.xlu0 0
    %2529 = vperm.xlu0 %2528, %v2151
    %v2530 = vpop.permute.xlu0 %2529
    %2533 = vset.pattern.permute.xlu0 0
    %2534 = vperm.xlu0 %2533, %v2152
    %v2535 = vpop.permute.xlu0 %2534
    %2538 = vset.pattern.permute.xlu0 0
    %2539 = vperm.xlu0 %2538, %v2153
    %v2540 = vpop.permute.xlu0 %2539
    %2543 = vset.pattern.permute.xlu0 0
    %2544 = vperm.xlu0 %2543, %v2154
    %v2545 = vpop.permute.xlu0 %2544
    %2548 = vset.pattern.permute.xlu0 0
    %2549 = vperm.xlu0 %2548, %v2155
    %v2550 = vpop.permute.xlu0 %2549
    %2553 = vset.pattern.permute.xlu0 0
    %2554 = vperm.xlu0 %2553, %v2156
    %v2555 = vpop.permute.xlu0 %2554
    %2558 = vset.pattern.permute.xlu0 0
    %2559 = vperm.xlu0 %2558, %v2157
    %v2560 = vpop.permute.xlu0 %2559
    %2563 = vset.pattern.permute.xlu0 0
    %2564 = vperm.xlu0 %2563, %v2158
    %v2565 = vpop.permute.xlu0 %2564
    %2568 = vset.pattern.permute.xlu0 0
    %2569 = vperm.xlu0 %2568, %v2159
    %v2570 = vpop.permute.xlu0 %2569
    %2573 = vset.pattern.permute.xlu0 0
    %2574 = vperm.xlu0 %2573, %v2160
    %v2575 = vpop.permute.xlu0 %2574
    %2578 = vset.pattern.permute.xlu0 0
    %2579 = vperm.xlu0 %2578, %v2161
    %v2580 = vpop.permute.xlu0 %2579
    %2583 = vset.pattern.permute.xlu0 0
    %2584 = vperm.xlu0 %2583, %v2162
    %v2585 = vpop.permute.xlu0 %2584
    %2588 = vset.pattern.permute.xlu0 0
    %2589 = vperm.xlu0 %2588, %v2163
    %v2590 = vpop.permute.xlu0 %2589
    %2593 = vset.pattern.permute.xlu0 0
    %2594 = vperm.xlu0 %2593, %v2164
    %v2595 = vpop.permute.xlu0 %2594
    %v2597 = vmul.f32 %v2501, %v2520
    %v2598 = vmul.f32 %v2502, %v2525
    %v2599 = vmul.f32 %v2503, %v2530
    %v2600 = vmul.f32 %v2504, %v2535
    %v2601 = vmul.f32 %v2505, %v2540
    %v2602 = vmul.f32 %v2506, %v2545
    %v2603 = vmul.f32 %v2507, %v2550
    %v2604 = vmul.f32 %v2508, %v2555
    %v2605 = vmul.f32 %v2509, %v2560
    %v2606 = vmul.f32 %v2510, %v2565
    %v2607 = vmul.f32 %v2511, %v2570
    %v2608 = vmul.f32 %v2512, %v2575
    %v2609 = vmul.f32 %v2513, %v2580
    %v2610 = vmul.f32 %v2514, %v2585
    %v2611 = vmul.f32 %v2515, %v2590
    %v2612 = vmul.f32 %v2516, %v2595
    %v2613 = vadd.f32 %v2597, %v2598
    %v2614 = vadd.f32 %v2613, %v2599
    %v2615 = vadd.f32 %v2614, %v2600
    %v2616 = vadd.f32 %v2615, %v2601
    %v2617 = vadd.f32 %v2616, %v2602
    %v2618 = vadd.f32 %v2617, %v2603
    %v2619 = vadd.f32 %v2618, %v2604
    %v2620 = vadd.f32 %v2619, %v2605
    %v2621 = vadd.f32 %v2620, %v2606
    %v2622 = vadd.f32 %v2621, %v2607
    %v2623 = vadd.f32 %v2622, %v2608
    %v2624 = vadd.f32 %v2623, %v2609
    %v2625 = vadd.f32 %v2624, %v2610
    %v2626 = vadd.f32 %v2625, %v2611
    %v2627 = vadd.f32 %v2626, %v2612
    %v2628 = vrot.slane %v2627, 4
    %v2629 = vadd.f32 %v2627, %v2628
    %v2630 = vrot.slane %v2629, 2
    %v2631 = vadd.f32 %v2629, %v2630
    %v2632 = vrot.slane %v2631, 1
    %v2633 = vadd.f32 %v2631, %v2632
    %v2634 = vadd.f32 %v2113, %v2633
    %s2635 = scalar_lea.vmem %s1, 640
    %v2636 = vld [vmem:[%s2635] sm:$0xff]
    %v2637 = vld [vmem:[%s2635 + $0x8] sm:$0xff]
    %v2638 = vld [vmem:[%s2635 + $0x10] sm:$0xff]
    %v2639 = vld [vmem:[%s2635 + $0x18] sm:$0xff]
    %v2640 = vld [vmem:[%s2635 + $0x20] sm:$0xff]
    %v2641 = vld [vmem:[%s2635 + $0x28] sm:$0xff]
    %v2642 = vld [vmem:[%s2635 + $0x30] sm:$0xff]
    %v2643 = vld [vmem:[%s2635 + $0x38] sm:$0xff]
    %v2644 = vld [vmem:[%s2635 + $0x40] sm:$0xff]
    %v2645 = vld [vmem:[%s2635 + $0x48] sm:$0xff]
    %v2646 = vld [vmem:[%s2635 + $0x50] sm:$0xff]
    %v2647 = vld [vmem:[%s2635 + $0x58] sm:$0xff]
    %v2648 = vld [vmem:[%s2635 + $0x60] sm:$0xff]
    %v2649 = vld [vmem:[%s2635 + $0x68] sm:$0xff]
    %v2650 = vld [vmem:[%s2635 + $0x70] sm:$0xff]
    %v2651 = vld [vmem:[%s2635 + $0x78] sm:$0xff]
    %s2652 = scalar_lea.vmem %s2, 640
    %v2653 = vld [vmem:[%s2652] sm:$0xff]
    %v2654 = vld [vmem:[%s2652 + $0x8] sm:$0xff]
    %v2655 = vld [vmem:[%s2652 + $0x10] sm:$0xff]
    %v2656 = vld [vmem:[%s2652 + $0x18] sm:$0xff]
    %v2657 = vld [vmem:[%s2652 + $0x20] sm:$0xff]
    %v2658 = vld [vmem:[%s2652 + $0x28] sm:$0xff]
    %v2659 = vld [vmem:[%s2652 + $0x30] sm:$0xff]
    %v2660 = vld [vmem:[%s2652 + $0x38] sm:$0xff]
    %v2661 = vld [vmem:[%s2652 + $0x40] sm:$0xff]
    %v2662 = vld [vmem:[%s2652 + $0x48] sm:$0xff]
    %v2663 = vld [vmem:[%s2652 + $0x50] sm:$0xff]
    %v2664 = vld [vmem:[%s2652 + $0x58] sm:$0xff]
    %v2665 = vld [vmem:[%s2652 + $0x60] sm:$0xff]
    %v2666 = vld [vmem:[%s2652 + $0x68] sm:$0xff]
    %v2667 = vld [vmem:[%s2652 + $0x70] sm:$0xff]
    %v2668 = vld [vmem:[%s2652 + $0x78] sm:$0xff]
    %s2669 = scalar_lea.vmem %s3, 640
    %v2670 = vld [vmem:[%s2669] sm:$0xff]
    %v2671 = vld [vmem:[%s2669 + $0x8] sm:$0xff]
    %v2672 = vld [vmem:[%s2669 + $0x10] sm:$0xff]
    %v2673 = vld [vmem:[%s2669 + $0x18] sm:$0xff]
    %v2674 = vld [vmem:[%s2669 + $0x20] sm:$0xff]
    %v2675 = vld [vmem:[%s2669 + $0x28] sm:$0xff]
    %v2676 = vld [vmem:[%s2669 + $0x30] sm:$0xff]
    %v2677 = vld [vmem:[%s2669 + $0x38] sm:$0xff]
    %v2678 = vld [vmem:[%s2669 + $0x40] sm:$0xff]
    %v2679 = vld [vmem:[%s2669 + $0x48] sm:$0xff]
    %v2680 = vld [vmem:[%s2669 + $0x50] sm:$0xff]
    %v2681 = vld [vmem:[%s2669 + $0x58] sm:$0xff]
    %v2682 = vld [vmem:[%s2669 + $0x60] sm:$0xff]
    %v2683 = vld [vmem:[%s2669 + $0x68] sm:$0xff]
    %v2684 = vld [vmem:[%s2669 + $0x70] sm:$0xff]
    %v2685 = vld [vmem:[%s2669 + $0x78] sm:$0xff]
    %2687 = vset.pattern.permute.xlu0 0
    %2688 = vperm.xlu0 %2687, %v2636
    %v2689 = vpop.permute.xlu0 %2688
    %2692 = vset.pattern.permute.xlu0 0
    %2693 = vperm.xlu0 %2692, %v2637
    %v2694 = vpop.permute.xlu0 %2693
    %2697 = vset.pattern.permute.xlu0 0
    %2698 = vperm.xlu0 %2697, %v2638
    %v2699 = vpop.permute.xlu0 %2698
    %2702 = vset.pattern.permute.xlu0 0
    %2703 = vperm.xlu0 %2702, %v2639
    %v2704 = vpop.permute.xlu0 %2703
    %2707 = vset.pattern.permute.xlu0 0
    %2708 = vperm.xlu0 %2707, %v2640
    %v2709 = vpop.permute.xlu0 %2708
    %2712 = vset.pattern.permute.xlu0 0
    %2713 = vperm.xlu0 %2712, %v2641
    %v2714 = vpop.permute.xlu0 %2713
    %2717 = vset.pattern.permute.xlu0 0
    %2718 = vperm.xlu0 %2717, %v2642
    %v2719 = vpop.permute.xlu0 %2718
    %2722 = vset.pattern.permute.xlu0 0
    %2723 = vperm.xlu0 %2722, %v2643
    %v2724 = vpop.permute.xlu0 %2723
    %2727 = vset.pattern.permute.xlu0 0
    %2728 = vperm.xlu0 %2727, %v2644
    %v2729 = vpop.permute.xlu0 %2728
    %2732 = vset.pattern.permute.xlu0 0
    %2733 = vperm.xlu0 %2732, %v2645
    %v2734 = vpop.permute.xlu0 %2733
    %2737 = vset.pattern.permute.xlu0 0
    %2738 = vperm.xlu0 %2737, %v2646
    %v2739 = vpop.permute.xlu0 %2738
    %2742 = vset.pattern.permute.xlu0 0
    %2743 = vperm.xlu0 %2742, %v2647
    %v2744 = vpop.permute.xlu0 %2743
    %2747 = vset.pattern.permute.xlu0 0
    %2748 = vperm.xlu0 %2747, %v2648
    %v2749 = vpop.permute.xlu0 %2748
    %2752 = vset.pattern.permute.xlu0 0
    %2753 = vperm.xlu0 %2752, %v2649
    %v2754 = vpop.permute.xlu0 %2753
    %2757 = vset.pattern.permute.xlu0 0
    %2758 = vperm.xlu0 %2757, %v2650
    %v2759 = vpop.permute.xlu0 %2758
    %2762 = vset.pattern.permute.xlu0 0
    %2763 = vperm.xlu0 %2762, %v2651
    %v2764 = vpop.permute.xlu0 %2763
    %v2766 = vmul.f32 %v2689, %v156
    %v2767 = vmul.f32 %v2694, %v156
    %v2768 = vmul.f32 %v2699, %v156
    %v2769 = vmul.f32 %v2704, %v156
    %v2770 = vmul.f32 %v2709, %v156
    %v2771 = vmul.f32 %v2714, %v156
    %v2772 = vmul.f32 %v2719, %v156
    %v2773 = vmul.f32 %v2724, %v156
    %v2774 = vmul.f32 %v2729, %v156
    %v2775 = vmul.f32 %v2734, %v156
    %v2776 = vmul.f32 %v2739, %v156
    %v2777 = vmul.f32 %v2744, %v156
    %v2778 = vmul.f32 %v2749, %v156
    %v2779 = vmul.f32 %v2754, %v156
    %v2780 = vmul.f32 %v2759, %v156
    %v2781 = vmul.f32 %v2764, %v156
    %2782 = vset.pattern.permute.xlu0 1
    %2783 = vperm.xlu0 %2782, %v2636
    %v2784 = vpop.permute.xlu0 %2783
    %2786 = vset.pattern.permute.xlu0 1
    %2787 = vperm.xlu0 %2786, %v2637
    %v2788 = vpop.permute.xlu0 %2787
    %2790 = vset.pattern.permute.xlu0 1
    %2791 = vperm.xlu0 %2790, %v2638
    %v2792 = vpop.permute.xlu0 %2791
    %2794 = vset.pattern.permute.xlu0 1
    %2795 = vperm.xlu0 %2794, %v2639
    %v2796 = vpop.permute.xlu0 %2795
    %2798 = vset.pattern.permute.xlu0 1
    %2799 = vperm.xlu0 %2798, %v2640
    %v2800 = vpop.permute.xlu0 %2799
    %2802 = vset.pattern.permute.xlu0 1
    %2803 = vperm.xlu0 %2802, %v2641
    %v2804 = vpop.permute.xlu0 %2803
    %2806 = vset.pattern.permute.xlu0 1
    %2807 = vperm.xlu0 %2806, %v2642
    %v2808 = vpop.permute.xlu0 %2807
    %2810 = vset.pattern.permute.xlu0 1
    %2811 = vperm.xlu0 %2810, %v2643
    %v2812 = vpop.permute.xlu0 %2811
    %2814 = vset.pattern.permute.xlu0 1
    %2815 = vperm.xlu0 %2814, %v2644
    %v2816 = vpop.permute.xlu0 %2815
    %2818 = vset.pattern.permute.xlu0 1
    %2819 = vperm.xlu0 %2818, %v2645
    %v2820 = vpop.permute.xlu0 %2819
    %2822 = vset.pattern.permute.xlu0 1
    %2823 = vperm.xlu0 %2822, %v2646
    %v2824 = vpop.permute.xlu0 %2823
    %2826 = vset.pattern.permute.xlu0 1
    %2827 = vperm.xlu0 %2826, %v2647
    %v2828 = vpop.permute.xlu0 %2827
    %2830 = vset.pattern.permute.xlu0 1
    %2831 = vperm.xlu0 %2830, %v2648
    %v2832 = vpop.permute.xlu0 %2831
    %2834 = vset.pattern.permute.xlu0 1
    %2835 = vperm.xlu0 %2834, %v2649
    %v2836 = vpop.permute.xlu0 %2835
    %2838 = vset.pattern.permute.xlu0 1
    %2839 = vperm.xlu0 %2838, %v2650
    %v2840 = vpop.permute.xlu0 %2839
    %2842 = vset.pattern.permute.xlu0 1
    %2843 = vperm.xlu0 %2842, %v2651
    %v2844 = vpop.permute.xlu0 %2843
    %v2846 = vmul.f32 %v2784, %v240
    %v2847 = vmul.f32 %v2788, %v240
    %v2848 = vmul.f32 %v2792, %v240
    %v2849 = vmul.f32 %v2796, %v240
    %v2850 = vmul.f32 %v2800, %v240
    %v2851 = vmul.f32 %v2804, %v240
    %v2852 = vmul.f32 %v2808, %v240
    %v2853 = vmul.f32 %v2812, %v240
    %v2854 = vmul.f32 %v2816, %v240
    %v2855 = vmul.f32 %v2820, %v240
    %v2856 = vmul.f32 %v2824, %v240
    %v2857 = vmul.f32 %v2828, %v240
    %v2858 = vmul.f32 %v2832, %v240
    %v2859 = vmul.f32 %v2836, %v240
    %v2860 = vmul.f32 %v2840, %v240
    %v2861 = vmul.f32 %v2844, %v240
    %v2862 = vadd.f32 %v2766, %v2846
    %v2863 = vadd.f32 %v2767, %v2847
    %v2864 = vadd.f32 %v2768, %v2848
    %v2865 = vadd.f32 %v2769, %v2849
    %v2866 = vadd.f32 %v2770, %v2850
    %v2867 = vadd.f32 %v2771, %v2851
    %v2868 = vadd.f32 %v2772, %v2852
    %v2869 = vadd.f32 %v2773, %v2853
    %v2870 = vadd.f32 %v2774, %v2854
    %v2871 = vadd.f32 %v2775, %v2855
    %v2872 = vadd.f32 %v2776, %v2856
    %v2873 = vadd.f32 %v2777, %v2857
    %v2874 = vadd.f32 %v2778, %v2858
    %v2875 = vadd.f32 %v2779, %v2859
    %v2876 = vadd.f32 %v2780, %v2860
    %v2877 = vadd.f32 %v2781, %v2861
    %2879 = vset.pattern.permute.xlu0 0
    %2880 = vperm.xlu0 %2879, %v2653
    %v2881 = vpop.permute.xlu0 %2880
    %2884 = vset.pattern.permute.xlu0 0
    %2885 = vperm.xlu0 %2884, %v2654
    %v2886 = vpop.permute.xlu0 %2885
    %2889 = vset.pattern.permute.xlu0 0
    %2890 = vperm.xlu0 %2889, %v2655
    %v2891 = vpop.permute.xlu0 %2890
    %2894 = vset.pattern.permute.xlu0 0
    %2895 = vperm.xlu0 %2894, %v2656
    %v2896 = vpop.permute.xlu0 %2895
    %2899 = vset.pattern.permute.xlu0 0
    %2900 = vperm.xlu0 %2899, %v2657
    %v2901 = vpop.permute.xlu0 %2900
    %2904 = vset.pattern.permute.xlu0 0
    %2905 = vperm.xlu0 %2904, %v2658
    %v2906 = vpop.permute.xlu0 %2905
    %2909 = vset.pattern.permute.xlu0 0
    %2910 = vperm.xlu0 %2909, %v2659
    %v2911 = vpop.permute.xlu0 %2910
    %2914 = vset.pattern.permute.xlu0 0
    %2915 = vperm.xlu0 %2914, %v2660
    %v2916 = vpop.permute.xlu0 %2915
    %2919 = vset.pattern.permute.xlu0 0
    %2920 = vperm.xlu0 %2919, %v2661
    %v2921 = vpop.permute.xlu0 %2920
    %2924 = vset.pattern.permute.xlu0 0
    %2925 = vperm.xlu0 %2924, %v2662
    %v2926 = vpop.permute.xlu0 %2925
    %2929 = vset.pattern.permute.xlu0 0
    %2930 = vperm.xlu0 %2929, %v2663
    %v2931 = vpop.permute.xlu0 %2930
    %2934 = vset.pattern.permute.xlu0 0
    %2935 = vperm.xlu0 %2934, %v2664
    %v2936 = vpop.permute.xlu0 %2935
    %2939 = vset.pattern.permute.xlu0 0
    %2940 = vperm.xlu0 %2939, %v2665
    %v2941 = vpop.permute.xlu0 %2940
    %2944 = vset.pattern.permute.xlu0 0
    %2945 = vperm.xlu0 %2944, %v2666
    %v2946 = vpop.permute.xlu0 %2945
    %2949 = vset.pattern.permute.xlu0 0
    %2950 = vperm.xlu0 %2949, %v2667
    %v2951 = vpop.permute.xlu0 %2950
    %2954 = vset.pattern.permute.xlu0 0
    %2955 = vperm.xlu0 %2954, %v2668
    %v2956 = vpop.permute.xlu0 %2955
    %v2958 = vadd.f32 %v2862, %v2881
    %v2959 = vadd.f32 %v2863, %v2886
    %v2960 = vadd.f32 %v2864, %v2891
    %v2961 = vadd.f32 %v2865, %v2896
    %v2962 = vadd.f32 %v2866, %v2901
    %v2963 = vadd.f32 %v2867, %v2906
    %v2964 = vadd.f32 %v2868, %v2911
    %v2965 = vadd.f32 %v2869, %v2916
    %v2966 = vadd.f32 %v2870, %v2921
    %v2967 = vadd.f32 %v2871, %v2926
    %v2968 = vadd.f32 %v2872, %v2931
    %v2969 = vadd.f32 %v2873, %v2936
    %v2970 = vadd.f32 %v2874, %v2941
    %v2971 = vadd.f32 %v2875, %v2946
    %v2972 = vadd.f32 %v2876, %v2951
    %v2973 = vadd.f32 %v2877, %v2956
    %v2974 = vmul.f32 %v2958, 0.5
    %v2975 = vmul.f32 %v2959, 0.5
    %v2976 = vmul.f32 %v2960, 0.5
    %v2977 = vmul.f32 %v2961, 0.5
    %v2978 = vmul.f32 %v2962, 0.5
    %v2979 = vmul.f32 %v2963, 0.5
    %v2980 = vmul.f32 %v2964, 0.5
    %v2981 = vmul.f32 %v2965, 0.5
    %v2982 = vmul.f32 %v2966, 0.5
    %v2983 = vmul.f32 %v2967, 0.5
    %v2984 = vmul.f32 %v2968, 0.5
    %v2985 = vmul.f32 %v2969, 0.5
    %v2986 = vmul.f32 %v2970, 0.5
    %v2987 = vmul.f32 %v2971, 0.5
    %v2988 = vmul.f32 %v2972, 0.5
    %v2989 = vmul.f32 %v2973, 0.5
    %v2990 = vtanh.pop %v2974
    %v2991 = vtanh.pop %v2975
    %v2992 = vtanh.pop %v2976
    %v2993 = vtanh.pop %v2977
    %v2994 = vtanh.pop %v2978
    %v2995 = vtanh.pop %v2979
    %v2996 = vtanh.pop %v2980
    %v2997 = vtanh.pop %v2981
    %v2998 = vtanh.pop %v2982
    %v2999 = vtanh.pop %v2983
    %v3000 = vtanh.pop %v2984
    %v3001 = vtanh.pop %v2985
    %v3002 = vtanh.pop %v2986
    %v3003 = vtanh.pop %v2987
    %v3004 = vtanh.pop %v2988
    %v3005 = vtanh.pop %v2989
    %v3006 = vmul.f32 %v2990, 0.5
    %v3007 = vmul.f32 %v2991, 0.5
    %v3008 = vmul.f32 %v2992, 0.5
    %v3009 = vmul.f32 %v2993, 0.5
    %v3010 = vmul.f32 %v2994, 0.5
    %v3011 = vmul.f32 %v2995, 0.5
    %v3012 = vmul.f32 %v2996, 0.5
    %v3013 = vmul.f32 %v2997, 0.5
    %v3014 = vmul.f32 %v2998, 0.5
    %v3015 = vmul.f32 %v2999, 0.5
    %v3016 = vmul.f32 %v3000, 0.5
    %v3017 = vmul.f32 %v3001, 0.5
    %v3018 = vmul.f32 %v3002, 0.5
    %v3019 = vmul.f32 %v3003, 0.5
    %v3020 = vmul.f32 %v3004, 0.5
    %v3021 = vmul.f32 %v3005, 0.5
    %v3022 = vadd.f32 %v3006, 0.5
    %v3023 = vadd.f32 %v3007, 0.5
    %v3024 = vadd.f32 %v3008, 0.5
    %v3025 = vadd.f32 %v3009, 0.5
    %v3026 = vadd.f32 %v3010, 0.5
    %v3027 = vadd.f32 %v3011, 0.5
    %v3028 = vadd.f32 %v3012, 0.5
    %v3029 = vadd.f32 %v3013, 0.5
    %v3030 = vadd.f32 %v3014, 0.5
    %v3031 = vadd.f32 %v3015, 0.5
    %v3032 = vadd.f32 %v3016, 0.5
    %v3033 = vadd.f32 %v3017, 0.5
    %v3034 = vadd.f32 %v3018, 0.5
    %v3035 = vadd.f32 %v3019, 0.5
    %v3036 = vadd.f32 %v3020, 0.5
    %v3037 = vadd.f32 %v3021, 0.5
    %3039 = vset.pattern.permute.xlu0 0
    %3040 = vperm.xlu0 %3039, %v2670
    %v3041 = vpop.permute.xlu0 %3040
    %3044 = vset.pattern.permute.xlu0 0
    %3045 = vperm.xlu0 %3044, %v2671
    %v3046 = vpop.permute.xlu0 %3045
    %3049 = vset.pattern.permute.xlu0 0
    %3050 = vperm.xlu0 %3049, %v2672
    %v3051 = vpop.permute.xlu0 %3050
    %3054 = vset.pattern.permute.xlu0 0
    %3055 = vperm.xlu0 %3054, %v2673
    %v3056 = vpop.permute.xlu0 %3055
    %3059 = vset.pattern.permute.xlu0 0
    %3060 = vperm.xlu0 %3059, %v2674
    %v3061 = vpop.permute.xlu0 %3060
    %3064 = vset.pattern.permute.xlu0 0
    %3065 = vperm.xlu0 %3064, %v2675
    %v3066 = vpop.permute.xlu0 %3065
    %3069 = vset.pattern.permute.xlu0 0
    %3070 = vperm.xlu0 %3069, %v2676
    %v3071 = vpop.permute.xlu0 %3070
    %3074 = vset.pattern.permute.xlu0 0
    %3075 = vperm.xlu0 %3074, %v2677
    %v3076 = vpop.permute.xlu0 %3075
    %3079 = vset.pattern.permute.xlu0 0
    %3080 = vperm.xlu0 %3079, %v2678
    %v3081 = vpop.permute.xlu0 %3080
    %3084 = vset.pattern.permute.xlu0 0
    %3085 = vperm.xlu0 %3084, %v2679
    %v3086 = vpop.permute.xlu0 %3085
    %3089 = vset.pattern.permute.xlu0 0
    %3090 = vperm.xlu0 %3089, %v2680
    %v3091 = vpop.permute.xlu0 %3090
    %3094 = vset.pattern.permute.xlu0 0
    %3095 = vperm.xlu0 %3094, %v2681
    %v3096 = vpop.permute.xlu0 %3095
    %3099 = vset.pattern.permute.xlu0 0
    %3100 = vperm.xlu0 %3099, %v2682
    %v3101 = vpop.permute.xlu0 %3100
    %3104 = vset.pattern.permute.xlu0 0
    %3105 = vperm.xlu0 %3104, %v2683
    %v3106 = vpop.permute.xlu0 %3105
    %3109 = vset.pattern.permute.xlu0 0
    %3110 = vperm.xlu0 %3109, %v2684
    %v3111 = vpop.permute.xlu0 %3110
    %3114 = vset.pattern.permute.xlu0 0
    %3115 = vperm.xlu0 %3114, %v2685
    %v3116 = vpop.permute.xlu0 %3115
    %v3118 = vmul.f32 %v3022, %v3041
    %v3119 = vmul.f32 %v3023, %v3046
    %v3120 = vmul.f32 %v3024, %v3051
    %v3121 = vmul.f32 %v3025, %v3056
    %v3122 = vmul.f32 %v3026, %v3061
    %v3123 = vmul.f32 %v3027, %v3066
    %v3124 = vmul.f32 %v3028, %v3071
    %v3125 = vmul.f32 %v3029, %v3076
    %v3126 = vmul.f32 %v3030, %v3081
    %v3127 = vmul.f32 %v3031, %v3086
    %v3128 = vmul.f32 %v3032, %v3091
    %v3129 = vmul.f32 %v3033, %v3096
    %v3130 = vmul.f32 %v3034, %v3101
    %v3131 = vmul.f32 %v3035, %v3106
    %v3132 = vmul.f32 %v3036, %v3111
    %v3133 = vmul.f32 %v3037, %v3116
    %v3134 = vadd.f32 %v3118, %v3119
    %v3135 = vadd.f32 %v3134, %v3120
    %v3136 = vadd.f32 %v3135, %v3121
    %v3137 = vadd.f32 %v3136, %v3122
    %v3138 = vadd.f32 %v3137, %v3123
    %v3139 = vadd.f32 %v3138, %v3124
    %v3140 = vadd.f32 %v3139, %v3125
    %v3141 = vadd.f32 %v3140, %v3126
    %v3142 = vadd.f32 %v3141, %v3127
    %v3143 = vadd.f32 %v3142, %v3128
    %v3144 = vadd.f32 %v3143, %v3129
    %v3145 = vadd.f32 %v3144, %v3130
    %v3146 = vadd.f32 %v3145, %v3131
    %v3147 = vadd.f32 %v3146, %v3132
    %v3148 = vadd.f32 %v3147, %v3133
    %v3149 = vrot.slane %v3148, 4
    %v3150 = vadd.f32 %v3148, %v3149
    %v3151 = vrot.slane %v3150, 2
    %v3152 = vadd.f32 %v3150, %v3151
    %v3153 = vrot.slane %v3152, 1
    %v3154 = vadd.f32 %v3152, %v3153
    %v3155 = vadd.f32 %v2634, %v3154
    %s3156 = scalar_lea.vmem %s1, 768
    %v3157 = vld [vmem:[%s3156] sm:$0xff]
    %v3158 = vld [vmem:[%s3156 + $0x8] sm:$0xff]
    %v3159 = vld [vmem:[%s3156 + $0x10] sm:$0xff]
    %v3160 = vld [vmem:[%s3156 + $0x18] sm:$0xff]
    %v3161 = vld [vmem:[%s3156 + $0x20] sm:$0xff]
    %v3162 = vld [vmem:[%s3156 + $0x28] sm:$0xff]
    %v3163 = vld [vmem:[%s3156 + $0x30] sm:$0xff]
    %v3164 = vld [vmem:[%s3156 + $0x38] sm:$0xff]
    %v3165 = vld [vmem:[%s3156 + $0x40] sm:$0xff]
    %v3166 = vld [vmem:[%s3156 + $0x48] sm:$0xff]
    %v3167 = vld [vmem:[%s3156 + $0x50] sm:$0xff]
    %v3168 = vld [vmem:[%s3156 + $0x58] sm:$0xff]
    %v3169 = vld [vmem:[%s3156 + $0x60] sm:$0xff]
    %v3170 = vld [vmem:[%s3156 + $0x68] sm:$0xff]
    %v3171 = vld [vmem:[%s3156 + $0x70] sm:$0xff]
    %v3172 = vld [vmem:[%s3156 + $0x78] sm:$0xff]
    %s3173 = scalar_lea.vmem %s2, 768
    %v3174 = vld [vmem:[%s3173] sm:$0xff]
    %v3175 = vld [vmem:[%s3173 + $0x8] sm:$0xff]
    %v3176 = vld [vmem:[%s3173 + $0x10] sm:$0xff]
    %v3177 = vld [vmem:[%s3173 + $0x18] sm:$0xff]
    %v3178 = vld [vmem:[%s3173 + $0x20] sm:$0xff]
    %v3179 = vld [vmem:[%s3173 + $0x28] sm:$0xff]
    %v3180 = vld [vmem:[%s3173 + $0x30] sm:$0xff]
    %v3181 = vld [vmem:[%s3173 + $0x38] sm:$0xff]
    %v3182 = vld [vmem:[%s3173 + $0x40] sm:$0xff]
    %v3183 = vld [vmem:[%s3173 + $0x48] sm:$0xff]
    %v3184 = vld [vmem:[%s3173 + $0x50] sm:$0xff]
    %v3185 = vld [vmem:[%s3173 + $0x58] sm:$0xff]
    %v3186 = vld [vmem:[%s3173 + $0x60] sm:$0xff]
    %v3187 = vld [vmem:[%s3173 + $0x68] sm:$0xff]
    %v3188 = vld [vmem:[%s3173 + $0x70] sm:$0xff]
    %v3189 = vld [vmem:[%s3173 + $0x78] sm:$0xff]
    %s3190 = scalar_lea.vmem %s3, 768
    %v3191 = vld [vmem:[%s3190] sm:$0xff]
    %v3192 = vld [vmem:[%s3190 + $0x8] sm:$0xff]
    %v3193 = vld [vmem:[%s3190 + $0x10] sm:$0xff]
    %v3194 = vld [vmem:[%s3190 + $0x18] sm:$0xff]
    %v3195 = vld [vmem:[%s3190 + $0x20] sm:$0xff]
    %v3196 = vld [vmem:[%s3190 + $0x28] sm:$0xff]
    %v3197 = vld [vmem:[%s3190 + $0x30] sm:$0xff]
    %v3198 = vld [vmem:[%s3190 + $0x38] sm:$0xff]
    %v3199 = vld [vmem:[%s3190 + $0x40] sm:$0xff]
    %v3200 = vld [vmem:[%s3190 + $0x48] sm:$0xff]
    %v3201 = vld [vmem:[%s3190 + $0x50] sm:$0xff]
    %v3202 = vld [vmem:[%s3190 + $0x58] sm:$0xff]
    %v3203 = vld [vmem:[%s3190 + $0x60] sm:$0xff]
    %v3204 = vld [vmem:[%s3190 + $0x68] sm:$0xff]
    %v3205 = vld [vmem:[%s3190 + $0x70] sm:$0xff]
    %v3206 = vld [vmem:[%s3190 + $0x78] sm:$0xff]
    %3208 = vset.pattern.permute.xlu0 0
    %3209 = vperm.xlu0 %3208, %v3157
    %v3210 = vpop.permute.xlu0 %3209
    %3213 = vset.pattern.permute.xlu0 0
    %3214 = vperm.xlu0 %3213, %v3158
    %v3215 = vpop.permute.xlu0 %3214
    %3218 = vset.pattern.permute.xlu0 0
    %3219 = vperm.xlu0 %3218, %v3159
    %v3220 = vpop.permute.xlu0 %3219
    %3223 = vset.pattern.permute.xlu0 0
    %3224 = vperm.xlu0 %3223, %v3160
    %v3225 = vpop.permute.xlu0 %3224
    %3228 = vset.pattern.permute.xlu0 0
    %3229 = vperm.xlu0 %3228, %v3161
    %v3230 = vpop.permute.xlu0 %3229
    %3233 = vset.pattern.permute.xlu0 0
    %3234 = vperm.xlu0 %3233, %v3162
    %v3235 = vpop.permute.xlu0 %3234
    %3238 = vset.pattern.permute.xlu0 0
    %3239 = vperm.xlu0 %3238, %v3163
    %v3240 = vpop.permute.xlu0 %3239
    %3243 = vset.pattern.permute.xlu0 0
    %3244 = vperm.xlu0 %3243, %v3164
    %v3245 = vpop.permute.xlu0 %3244
    %3248 = vset.pattern.permute.xlu0 0
    %3249 = vperm.xlu0 %3248, %v3165
    %v3250 = vpop.permute.xlu0 %3249
    %3253 = vset.pattern.permute.xlu0 0
    %3254 = vperm.xlu0 %3253, %v3166
    %v3255 = vpop.permute.xlu0 %3254
    %3258 = vset.pattern.permute.xlu0 0
    %3259 = vperm.xlu0 %3258, %v3167
    %v3260 = vpop.permute.xlu0 %3259
    %3263 = vset.pattern.permute.xlu0 0
    %3264 = vperm.xlu0 %3263, %v3168
    %v3265 = vpop.permute.xlu0 %3264
    %3268 = vset.pattern.permute.xlu0 0
    %3269 = vperm.xlu0 %3268, %v3169
    %v3270 = vpop.permute.xlu0 %3269
    %3273 = vset.pattern.permute.xlu0 0
    %3274 = vperm.xlu0 %3273, %v3170
    %v3275 = vpop.permute.xlu0 %3274
    %3278 = vset.pattern.permute.xlu0 0
    %3279 = vperm.xlu0 %3278, %v3171
    %v3280 = vpop.permute.xlu0 %3279
    %3283 = vset.pattern.permute.xlu0 0
    %3284 = vperm.xlu0 %3283, %v3172
    %v3285 = vpop.permute.xlu0 %3284
    %v3287 = vmul.f32 %v3210, %v156
    %v3288 = vmul.f32 %v3215, %v156
    %v3289 = vmul.f32 %v3220, %v156
    %v3290 = vmul.f32 %v3225, %v156
    %v3291 = vmul.f32 %v3230, %v156
    %v3292 = vmul.f32 %v3235, %v156
    %v3293 = vmul.f32 %v3240, %v156
    %v3294 = vmul.f32 %v3245, %v156
    %v3295 = vmul.f32 %v3250, %v156
    %v3296 = vmul.f32 %v3255, %v156
    %v3297 = vmul.f32 %v3260, %v156
    %v3298 = vmul.f32 %v3265, %v156
    %v3299 = vmul.f32 %v3270, %v156
    %v3300 = vmul.f32 %v3275, %v156
    %v3301 = vmul.f32 %v3280, %v156
    %v3302 = vmul.f32 %v3285, %v156
    %3303 = vset.pattern.permute.xlu0 1
    %3304 = vperm.xlu0 %3303, %v3157
    %v3305 = vpop.permute.xlu0 %3304
    %3307 = vset.pattern.permute.xlu0 1
    %3308 = vperm.xlu0 %3307, %v3158
    %v3309 = vpop.permute.xlu0 %3308
    %3311 = vset.pattern.permute.xlu0 1
    %3312 = vperm.xlu0 %3311, %v3159
    %v3313 = vpop.permute.xlu0 %3312
    %3315 = vset.pattern.permute.xlu0 1
    %3316 = vperm.xlu0 %3315, %v3160
    %v3317 = vpop.permute.xlu0 %3316
    %3319 = vset.pattern.permute.xlu0 1
    %3320 = vperm.xlu0 %3319, %v3161
    %v3321 = vpop.permute.xlu0 %3320
    %3323 = vset.pattern.permute.xlu0 1
    %3324 = vperm.xlu0 %3323, %v3162
    %v3325 = vpop.permute.xlu0 %3324
    %3327 = vset.pattern.permute.xlu0 1
    %3328 = vperm.xlu0 %3327, %v3163
    %v3329 = vpop.permute.xlu0 %3328
    %3331 = vset.pattern.permute.xlu0 1
    %3332 = vperm.xlu0 %3331, %v3164
    %v3333 = vpop.permute.xlu0 %3332
    %3335 = vset.pattern.permute.xlu0 1
    %3336 = vperm.xlu0 %3335, %v3165
    %v3337 = vpop.permute.xlu0 %3336
    %3339 = vset.pattern.permute.xlu0 1
    %3340 = vperm.xlu0 %3339, %v3166
    %v3341 = vpop.permute.xlu0 %3340
    %3343 = vset.pattern.permute.xlu0 1
    %3344 = vperm.xlu0 %3343, %v3167
    %v3345 = vpop.permute.xlu0 %3344
    %3347 = vset.pattern.permute.xlu0 1
    %3348 = vperm.xlu0 %3347, %v3168
    %v3349 = vpop.permute.xlu0 %3348
    %3351 = vset.pattern.permute.xlu0 1
    %3352 = vperm.xlu0 %3351, %v3169
    %v3353 = vpop.permute.xlu0 %3352
    %3355 = vset.pattern.permute.xlu0 1
    %3356 = vperm.xlu0 %3355, %v3170
    %v3357 = vpop.permute.xlu0 %3356
    %3359 = vset.pattern.permute.xlu0 1
    %3360 = vperm.xlu0 %3359, %v3171
    %v3361 = vpop.permute.xlu0 %3360
    %3363 = vset.pattern.permute.xlu0 1
    %3364 = vperm.xlu0 %3363, %v3172
    %v3365 = vpop.permute.xlu0 %3364
    %v3367 = vmul.f32 %v3305, %v240
    %v3368 = vmul.f32 %v3309, %v240
    %v3369 = vmul.f32 %v3313, %v240
    %v3370 = vmul.f32 %v3317, %v240
    %v3371 = vmul.f32 %v3321, %v240
    %v3372 = vmul.f32 %v3325, %v240
    %v3373 = vmul.f32 %v3329, %v240
    %v3374 = vmul.f32 %v3333, %v240
    %v3375 = vmul.f32 %v3337, %v240
    %v3376 = vmul.f32 %v3341, %v240
    %v3377 = vmul.f32 %v3345, %v240
    %v3378 = vmul.f32 %v3349, %v240
    %v3379 = vmul.f32 %v3353, %v240
    %v3380 = vmul.f32 %v3357, %v240
    %v3381 = vmul.f32 %v3361, %v240
    %v3382 = vmul.f32 %v3365, %v240
    %v3383 = vadd.f32 %v3287, %v3367
    %v3384 = vadd.f32 %v3288, %v3368
    %v3385 = vadd.f32 %v3289, %v3369
    %v3386 = vadd.f32 %v3290, %v3370
    %v3387 = vadd.f32 %v3291, %v3371
    %v3388 = vadd.f32 %v3292, %v3372
    %v3389 = vadd.f32 %v3293, %v3373
    %v3390 = vadd.f32 %v3294, %v3374
    %v3391 = vadd.f32 %v3295, %v3375
    %v3392 = vadd.f32 %v3296, %v3376
    %v3393 = vadd.f32 %v3297, %v3377
    %v3394 = vadd.f32 %v3298, %v3378
    %v3395 = vadd.f32 %v3299, %v3379
    %v3396 = vadd.f32 %v3300, %v3380
    %v3397 = vadd.f32 %v3301, %v3381
    %v3398 = vadd.f32 %v3302, %v3382
    %3400 = vset.pattern.permute.xlu0 0
    %3401 = vperm.xlu0 %3400, %v3174
    %v3402 = vpop.permute.xlu0 %3401
    %3405 = vset.pattern.permute.xlu0 0
    %3406 = vperm.xlu0 %3405, %v3175
    %v3407 = vpop.permute.xlu0 %3406
    %3410 = vset.pattern.permute.xlu0 0
    %3411 = vperm.xlu0 %3410, %v3176
    %v3412 = vpop.permute.xlu0 %3411
    %3415 = vset.pattern.permute.xlu0 0
    %3416 = vperm.xlu0 %3415, %v3177
    %v3417 = vpop.permute.xlu0 %3416
    %3420 = vset.pattern.permute.xlu0 0
    %3421 = vperm.xlu0 %3420, %v3178
    %v3422 = vpop.permute.xlu0 %3421
    %3425 = vset.pattern.permute.xlu0 0
    %3426 = vperm.xlu0 %3425, %v3179
    %v3427 = vpop.permute.xlu0 %3426
    %3430 = vset.pattern.permute.xlu0 0
    %3431 = vperm.xlu0 %3430, %v3180
    %v3432 = vpop.permute.xlu0 %3431
    %3435 = vset.pattern.permute.xlu0 0
    %3436 = vperm.xlu0 %3435, %v3181
    %v3437 = vpop.permute.xlu0 %3436
    %3440 = vset.pattern.permute.xlu0 0
    %3441 = vperm.xlu0 %3440, %v3182
    %v3442 = vpop.permute.xlu0 %3441
    %3445 = vset.pattern.permute.xlu0 0
    %3446 = vperm.xlu0 %3445, %v3183
    %v3447 = vpop.permute.xlu0 %3446
    %3450 = vset.pattern.permute.xlu0 0
    %3451 = vperm.xlu0 %3450, %v3184
    %v3452 = vpop.permute.xlu0 %3451
    %3455 = vset.pattern.permute.xlu0 0
    %3456 = vperm.xlu0 %3455, %v3185
    %v3457 = vpop.permute.xlu0 %3456
    %3460 = vset.pattern.permute.xlu0 0
    %3461 = vperm.xlu0 %3460, %v3186
    %v3462 = vpop.permute.xlu0 %3461
    %3465 = vset.pattern.permute.xlu0 0
    %3466 = vperm.xlu0 %3465, %v3187
    %v3467 = vpop.permute.xlu0 %3466
    %3470 = vset.pattern.permute.xlu0 0
    %3471 = vperm.xlu0 %3470, %v3188
    %v3472 = vpop.permute.xlu0 %3471
    %3475 = vset.pattern.permute.xlu0 0
    %3476 = vperm.xlu0 %3475, %v3189
    %v3477 = vpop.permute.xlu0 %3476
    %v3479 = vadd.f32 %v3383, %v3402
    %v3480 = vadd.f32 %v3384, %v3407
    %v3481 = vadd.f32 %v3385, %v3412
    %v3482 = vadd.f32 %v3386, %v3417
    %v3483 = vadd.f32 %v3387, %v3422
    %v3484 = vadd.f32 %v3388, %v3427
    %v3485 = vadd.f32 %v3389, %v3432
    %v3486 = vadd.f32 %v3390, %v3437
    %v3487 = vadd.f32 %v3391, %v3442
    %v3488 = vadd.f32 %v3392, %v3447
    %v3489 = vadd.f32 %v3393, %v3452
    %v3490 = vadd.f32 %v3394, %v3457
    %v3491 = vadd.f32 %v3395, %v3462
    %v3492 = vadd.f32 %v3396, %v3467
    %v3493 = vadd.f32 %v3397, %v3472
    %v3494 = vadd.f32 %v3398, %v3477
    %v3495 = vmul.f32 %v3479, 0.5
    %v3496 = vmul.f32 %v3480, 0.5
    %v3497 = vmul.f32 %v3481, 0.5
    %v3498 = vmul.f32 %v3482, 0.5
    %v3499 = vmul.f32 %v3483, 0.5
    %v3500 = vmul.f32 %v3484, 0.5
    %v3501 = vmul.f32 %v3485, 0.5
    %v3502 = vmul.f32 %v3486, 0.5
    %v3503 = vmul.f32 %v3487, 0.5
    %v3504 = vmul.f32 %v3488, 0.5
    %v3505 = vmul.f32 %v3489, 0.5
    %v3506 = vmul.f32 %v3490, 0.5
    %v3507 = vmul.f32 %v3491, 0.5
    %v3508 = vmul.f32 %v3492, 0.5
    %v3509 = vmul.f32 %v3493, 0.5
    %v3510 = vmul.f32 %v3494, 0.5
    %v3511 = vtanh.pop %v3495
    %v3512 = vtanh.pop %v3496
    %v3513 = vtanh.pop %v3497
    %v3514 = vtanh.pop %v3498
    %v3515 = vtanh.pop %v3499
    %v3516 = vtanh.pop %v3500
    %v3517 = vtanh.pop %v3501
    %v3518 = vtanh.pop %v3502
    %v3519 = vtanh.pop %v3503
    %v3520 = vtanh.pop %v3504
    %v3521 = vtanh.pop %v3505
    %v3522 = vtanh.pop %v3506
    %v3523 = vtanh.pop %v3507
    %v3524 = vtanh.pop %v3508
    %v3525 = vtanh.pop %v3509
    %v3526 = vtanh.pop %v3510
    %v3527 = vmul.f32 %v3511, 0.5
    %v3528 = vmul.f32 %v3512, 0.5
    %v3529 = vmul.f32 %v3513, 0.5
    %v3530 = vmul.f32 %v3514, 0.5
    %v3531 = vmul.f32 %v3515, 0.5
    %v3532 = vmul.f32 %v3516, 0.5
    %v3533 = vmul.f32 %v3517, 0.5
    %v3534 = vmul.f32 %v3518, 0.5
    %v3535 = vmul.f32 %v3519, 0.5
    %v3536 = vmul.f32 %v3520, 0.5
    %v3537 = vmul.f32 %v3521, 0.5
    %v3538 = vmul.f32 %v3522, 0.5
    %v3539 = vmul.f32 %v3523, 0.5
    %v3540 = vmul.f32 %v3524, 0.5
    %v3541 = vmul.f32 %v3525, 0.5
    %v3542 = vmul.f32 %v3526, 0.5
    %v3543 = vadd.f32 %v3527, 0.5
    %v3544 = vadd.f32 %v3528, 0.5
    %v3545 = vadd.f32 %v3529, 0.5
    %v3546 = vadd.f32 %v3530, 0.5
    %v3547 = vadd.f32 %v3531, 0.5
    %v3548 = vadd.f32 %v3532, 0.5
    %v3549 = vadd.f32 %v3533, 0.5
    %v3550 = vadd.f32 %v3534, 0.5
    %v3551 = vadd.f32 %v3535, 0.5
    %v3552 = vadd.f32 %v3536, 0.5
    %v3553 = vadd.f32 %v3537, 0.5
    %v3554 = vadd.f32 %v3538, 0.5
    %v3555 = vadd.f32 %v3539, 0.5
    %v3556 = vadd.f32 %v3540, 0.5
    %v3557 = vadd.f32 %v3541, 0.5
    %v3558 = vadd.f32 %v3542, 0.5
    %3560 = vset.pattern.permute.xlu0 0
    %3561 = vperm.xlu0 %3560, %v3191
    %v3562 = vpop.permute.xlu0 %3561
    %3565 = vset.pattern.permute.xlu0 0
    %3566 = vperm.xlu0 %3565, %v3192
    %v3567 = vpop.permute.xlu0 %3566
    %3570 = vset.pattern.permute.xlu0 0
    %3571 = vperm.xlu0 %3570, %v3193
    %v3572 = vpop.permute.xlu0 %3571
    %3575 = vset.pattern.permute.xlu0 0
    %3576 = vperm.xlu0 %3575, %v3194
    %v3577 = vpop.permute.xlu0 %3576
    %3580 = vset.pattern.permute.xlu0 0
    %3581 = vperm.xlu0 %3580, %v3195
    %v3582 = vpop.permute.xlu0 %3581
    %3585 = vset.pattern.permute.xlu0 0
    %3586 = vperm.xlu0 %3585, %v3196
    %v3587 = vpop.permute.xlu0 %3586
    %3590 = vset.pattern.permute.xlu0 0
    %3591 = vperm.xlu0 %3590, %v3197
    %v3592 = vpop.permute.xlu0 %3591
    %3595 = vset.pattern.permute.xlu0 0
    %3596 = vperm.xlu0 %3595, %v3198
    %v3597 = vpop.permute.xlu0 %3596
    %3600 = vset.pattern.permute.xlu0 0
    %3601 = vperm.xlu0 %3600, %v3199
    %v3602 = vpop.permute.xlu0 %3601
    %3605 = vset.pattern.permute.xlu0 0
    %3606 = vperm.xlu0 %3605, %v3200
    %v3607 = vpop.permute.xlu0 %3606
    %3610 = vset.pattern.permute.xlu0 0
    %3611 = vperm.xlu0 %3610, %v3201
    %v3612 = vpop.permute.xlu0 %3611
    %3615 = vset.pattern.permute.xlu0 0
    %3616 = vperm.xlu0 %3615, %v3202
    %v3617 = vpop.permute.xlu0 %3616
    %3620 = vset.pattern.permute.xlu0 0
    %3621 = vperm.xlu0 %3620, %v3203
    %v3622 = vpop.permute.xlu0 %3621
    %3625 = vset.pattern.permute.xlu0 0
    %3626 = vperm.xlu0 %3625, %v3204
    %v3627 = vpop.permute.xlu0 %3626
    %3630 = vset.pattern.permute.xlu0 0
    %3631 = vperm.xlu0 %3630, %v3205
    %v3632 = vpop.permute.xlu0 %3631
    %3635 = vset.pattern.permute.xlu0 0
    %3636 = vperm.xlu0 %3635, %v3206
    %v3637 = vpop.permute.xlu0 %3636
    %v3639 = vmul.f32 %v3543, %v3562
    %v3640 = vmul.f32 %v3544, %v3567
    %v3641 = vmul.f32 %v3545, %v3572
    %v3642 = vmul.f32 %v3546, %v3577
    %v3643 = vmul.f32 %v3547, %v3582
    %v3644 = vmul.f32 %v3548, %v3587
    %v3645 = vmul.f32 %v3549, %v3592
    %v3646 = vmul.f32 %v3550, %v3597
    %v3647 = vmul.f32 %v3551, %v3602
    %v3648 = vmul.f32 %v3552, %v3607
    %v3649 = vmul.f32 %v3553, %v3612
    %v3650 = vmul.f32 %v3554, %v3617
    %v3651 = vmul.f32 %v3555, %v3622
    %v3652 = vmul.f32 %v3556, %v3627
    %v3653 = vmul.f32 %v3557, %v3632
    %v3654 = vmul.f32 %v3558, %v3637
    %v3655 = vadd.f32 %v3639, %v3640
    %v3656 = vadd.f32 %v3655, %v3641
    %v3657 = vadd.f32 %v3656, %v3642
    %v3658 = vadd.f32 %v3657, %v3643
    %v3659 = vadd.f32 %v3658, %v3644
    %v3660 = vadd.f32 %v3659, %v3645
    %v3661 = vadd.f32 %v3660, %v3646
    %v3662 = vadd.f32 %v3661, %v3647
    %v3663 = vadd.f32 %v3662, %v3648
    %v3664 = vadd.f32 %v3663, %v3649
    %v3665 = vadd.f32 %v3664, %v3650
    %v3666 = vadd.f32 %v3665, %v3651
    %v3667 = vadd.f32 %v3666, %v3652
    %v3668 = vadd.f32 %v3667, %v3653
    %v3669 = vadd.f32 %v3668, %v3654
    %v3670 = vrot.slane %v3669, 4
    %v3671 = vadd.f32 %v3669, %v3670
    %v3672 = vrot.slane %v3671, 2
    %v3673 = vadd.f32 %v3671, %v3672
    %v3674 = vrot.slane %v3673, 1
    %v3675 = vadd.f32 %v3673, %v3674
    %v3676 = vadd.f32 %v3155, %v3675
    %s3677 = scalar_lea.vmem %s1, 896
    %v3678 = vld [vmem:[%s3677] sm:$0xff]
    %v3679 = vld [vmem:[%s3677 + $0x8] sm:$0xff]
    %v3680 = vld [vmem:[%s3677 + $0x10] sm:$0xff]
    %v3681 = vld [vmem:[%s3677 + $0x18] sm:$0xff]
    %v3682 = vld [vmem:[%s3677 + $0x20] sm:$0xff]
    %v3683 = vld [vmem:[%s3677 + $0x28] sm:$0xff]
    %v3684 = vld [vmem:[%s3677 + $0x30] sm:$0xff]
    %v3685 = vld [vmem:[%s3677 + $0x38] sm:$0xff]
    %v3686 = vld [vmem:[%s3677 + $0x40] sm:$0xff]
    %v3687 = vld [vmem:[%s3677 + $0x48] sm:$0xff]
    %v3688 = vld [vmem:[%s3677 + $0x50] sm:$0xff]
    %v3689 = vld [vmem:[%s3677 + $0x58] sm:$0xff]
    %v3690 = vld [vmem:[%s3677 + $0x60] sm:$0xff]
    %v3691 = vld [vmem:[%s3677 + $0x68] sm:$0xff]
    %v3692 = vld [vmem:[%s3677 + $0x70] sm:$0xff]
    %v3693 = vld [vmem:[%s3677 + $0x78] sm:$0xff]
    %s3694 = scalar_lea.vmem %s2, 896
    %v3695 = vld [vmem:[%s3694] sm:$0xff]
    %v3696 = vld [vmem:[%s3694 + $0x8] sm:$0xff]
    %v3697 = vld [vmem:[%s3694 + $0x10] sm:$0xff]
    %v3698 = vld [vmem:[%s3694 + $0x18] sm:$0xff]
    %v3699 = vld [vmem:[%s3694 + $0x20] sm:$0xff]
    %v3700 = vld [vmem:[%s3694 + $0x28] sm:$0xff]
    %v3701 = vld [vmem:[%s3694 + $0x30] sm:$0xff]
    %v3702 = vld [vmem:[%s3694 + $0x38] sm:$0xff]
    %v3703 = vld [vmem:[%s3694 + $0x40] sm:$0xff]
    %v3704 = vld [vmem:[%s3694 + $0x48] sm:$0xff]
    %v3705 = vld [vmem:[%s3694 + $0x50] sm:$0xff]
    %v3706 = vld [vmem:[%s3694 + $0x58] sm:$0xff]
    %v3707 = vld [vmem:[%s3694 + $0x60] sm:$0xff]
    %v3708 = vld [vmem:[%s3694 + $0x68] sm:$0xff]
    %v3709 = vld [vmem:[%s3694 + $0x70] sm:$0xff]
    %v3710 = vld [vmem:[%s3694 + $0x78] sm:$0xff]
    %s3711 = scalar_lea.vmem %s3, 896
    %v3712 = vld [vmem:[%s3711] sm:$0xff]
    %v3713 = vld [vmem:[%s3711 + $0x8] sm:$0xff]
    %v3714 = vld [vmem:[%s3711 + $0x10] sm:$0xff]
    %v3715 = vld [vmem:[%s3711 + $0x18] sm:$0xff]
    %v3716 = vld [vmem:[%s3711 + $0x20] sm:$0xff]
    %v3717 = vld [vmem:[%s3711 + $0x28] sm:$0xff]
    %v3718 = vld [vmem:[%s3711 + $0x30] sm:$0xff]
    %v3719 = vld [vmem:[%s3711 + $0x38] sm:$0xff]
    %v3720 = vld [vmem:[%s3711 + $0x40] sm:$0xff]
    %v3721 = vld [vmem:[%s3711 + $0x48] sm:$0xff]
    %v3722 = vld [vmem:[%s3711 + $0x50] sm:$0xff]
    %v3723 = vld [vmem:[%s3711 + $0x58] sm:$0xff]
    %v3724 = vld [vmem:[%s3711 + $0x60] sm:$0xff]
    %v3725 = vld [vmem:[%s3711 + $0x68] sm:$0xff]
    %v3726 = vld [vmem:[%s3711 + $0x70] sm:$0xff]
    %v3727 = vld [vmem:[%s3711 + $0x78] sm:$0xff]
    %3729 = vset.pattern.permute.xlu0 0
    %3730 = vperm.xlu0 %3729, %v3678
    %v3731 = vpop.permute.xlu0 %3730
    %3734 = vset.pattern.permute.xlu0 0
    %3735 = vperm.xlu0 %3734, %v3679
    %v3736 = vpop.permute.xlu0 %3735
    %3739 = vset.pattern.permute.xlu0 0
    %3740 = vperm.xlu0 %3739, %v3680
    %v3741 = vpop.permute.xlu0 %3740
    %3744 = vset.pattern.permute.xlu0 0
    %3745 = vperm.xlu0 %3744, %v3681
    %v3746 = vpop.permute.xlu0 %3745
    %3749 = vset.pattern.permute.xlu0 0
    %3750 = vperm.xlu0 %3749, %v3682
    %v3751 = vpop.permute.xlu0 %3750
    %3754 = vset.pattern.permute.xlu0 0
    %3755 = vperm.xlu0 %3754, %v3683
    %v3756 = vpop.permute.xlu0 %3755
    %3759 = vset.pattern.permute.xlu0 0
    %3760 = vperm.xlu0 %3759, %v3684
    %v3761 = vpop.permute.xlu0 %3760
    %3764 = vset.pattern.permute.xlu0 0
    %3765 = vperm.xlu0 %3764, %v3685
    %v3766 = vpop.permute.xlu0 %3765
    %3769 = vset.pattern.permute.xlu0 0
    %3770 = vperm.xlu0 %3769, %v3686
    %v3771 = vpop.permute.xlu0 %3770
    %3774 = vset.pattern.permute.xlu0 0
    %3775 = vperm.xlu0 %3774, %v3687
    %v3776 = vpop.permute.xlu0 %3775
    %3779 = vset.pattern.permute.xlu0 0
    %3780 = vperm.xlu0 %3779, %v3688
    %v3781 = vpop.permute.xlu0 %3780
    %3784 = vset.pattern.permute.xlu0 0
    %3785 = vperm.xlu0 %3784, %v3689
    %v3786 = vpop.permute.xlu0 %3785
    %3789 = vset.pattern.permute.xlu0 0
    %3790 = vperm.xlu0 %3789, %v3690
    %v3791 = vpop.permute.xlu0 %3790
    %3794 = vset.pattern.permute.xlu0 0
    %3795 = vperm.xlu0 %3794, %v3691
    %v3796 = vpop.permute.xlu0 %3795
    %3799 = vset.pattern.permute.xlu0 0
    %3800 = vperm.xlu0 %3799, %v3692
    %v3801 = vpop.permute.xlu0 %3800
    %3804 = vset.pattern.permute.xlu0 0
    %3805 = vperm.xlu0 %3804, %v3693
    %v3806 = vpop.permute.xlu0 %3805
    %v3808 = vmul.f32 %v3731, %v156
    %v3809 = vmul.f32 %v3736, %v156
    %v3810 = vmul.f32 %v3741, %v156
    %v3811 = vmul.f32 %v3746, %v156
    %v3812 = vmul.f32 %v3751, %v156
    %v3813 = vmul.f32 %v3756, %v156
    %v3814 = vmul.f32 %v3761, %v156
    %v3815 = vmul.f32 %v3766, %v156
    %v3816 = vmul.f32 %v3771, %v156
    %v3817 = vmul.f32 %v3776, %v156
    %v3818 = vmul.f32 %v3781, %v156
    %v3819 = vmul.f32 %v3786, %v156
    %v3820 = vmul.f32 %v3791, %v156
    %v3821 = vmul.f32 %v3796, %v156
    %v3822 = vmul.f32 %v3801, %v156
    %v3823 = vmul.f32 %v3806, %v156
    %3824 = vset.pattern.permute.xlu0 1
    %3825 = vperm.xlu0 %3824, %v3678
    %v3826 = vpop.permute.xlu0 %3825
    %3828 = vset.pattern.permute.xlu0 1
    %3829 = vperm.xlu0 %3828, %v3679
    %v3830 = vpop.permute.xlu0 %3829
    %3832 = vset.pattern.permute.xlu0 1
    %3833 = vperm.xlu0 %3832, %v3680
    %v3834 = vpop.permute.xlu0 %3833
    %3836 = vset.pattern.permute.xlu0 1
    %3837 = vperm.xlu0 %3836, %v3681
    %v3838 = vpop.permute.xlu0 %3837
    %3840 = vset.pattern.permute.xlu0 1
    %3841 = vperm.xlu0 %3840, %v3682
    %v3842 = vpop.permute.xlu0 %3841
    %3844 = vset.pattern.permute.xlu0 1
    %3845 = vperm.xlu0 %3844, %v3683
    %v3846 = vpop.permute.xlu0 %3845
    %3848 = vset.pattern.permute.xlu0 1
    %3849 = vperm.xlu0 %3848, %v3684
    %v3850 = vpop.permute.xlu0 %3849
    %3852 = vset.pattern.permute.xlu0 1
    %3853 = vperm.xlu0 %3852, %v3685
    %v3854 = vpop.permute.xlu0 %3853
    %3856 = vset.pattern.permute.xlu0 1
    %3857 = vperm.xlu0 %3856, %v3686
    %v3858 = vpop.permute.xlu0 %3857
    %3860 = vset.pattern.permute.xlu0 1
    %3861 = vperm.xlu0 %3860, %v3687
    %v3862 = vpop.permute.xlu0 %3861
    %3864 = vset.pattern.permute.xlu0 1
    %3865 = vperm.xlu0 %3864, %v3688
    %v3866 = vpop.permute.xlu0 %3865
    %3868 = vset.pattern.permute.xlu0 1
    %3869 = vperm.xlu0 %3868, %v3689
    %v3870 = vpop.permute.xlu0 %3869
    %3872 = vset.pattern.permute.xlu0 1
    %3873 = vperm.xlu0 %3872, %v3690
    %v3874 = vpop.permute.xlu0 %3873
    %3876 = vset.pattern.permute.xlu0 1
    %3877 = vperm.xlu0 %3876, %v3691
    %v3878 = vpop.permute.xlu0 %3877
    %3880 = vset.pattern.permute.xlu0 1
    %3881 = vperm.xlu0 %3880, %v3692
    %v3882 = vpop.permute.xlu0 %3881
    %3884 = vset.pattern.permute.xlu0 1
    %3885 = vperm.xlu0 %3884, %v3693
    %v3886 = vpop.permute.xlu0 %3885
    %v3888 = vmul.f32 %v3826, %v240
    %v3889 = vmul.f32 %v3830, %v240
    %v3890 = vmul.f32 %v3834, %v240
    %v3891 = vmul.f32 %v3838, %v240
    %v3892 = vmul.f32 %v3842, %v240
    %v3893 = vmul.f32 %v3846, %v240
    %v3894 = vmul.f32 %v3850, %v240
    %v3895 = vmul.f32 %v3854, %v240
    %v3896 = vmul.f32 %v3858, %v240
    %v3897 = vmul.f32 %v3862, %v240
    %v3898 = vmul.f32 %v3866, %v240
    %v3899 = vmul.f32 %v3870, %v240
    %v3900 = vmul.f32 %v3874, %v240
    %v3901 = vmul.f32 %v3878, %v240
    %v3902 = vmul.f32 %v3882, %v240
    %v3903 = vmul.f32 %v3886, %v240
    %v3904 = vadd.f32 %v3808, %v3888
    %v3905 = vadd.f32 %v3809, %v3889
    %v3906 = vadd.f32 %v3810, %v3890
    %v3907 = vadd.f32 %v3811, %v3891
    %v3908 = vadd.f32 %v3812, %v3892
    %v3909 = vadd.f32 %v3813, %v3893
    %v3910 = vadd.f32 %v3814, %v3894
    %v3911 = vadd.f32 %v3815, %v3895
    %v3912 = vadd.f32 %v3816, %v3896
    %v3913 = vadd.f32 %v3817, %v3897
    %v3914 = vadd.f32 %v3818, %v3898
    %v3915 = vadd.f32 %v3819, %v3899
    %v3916 = vadd.f32 %v3820, %v3900
    %v3917 = vadd.f32 %v3821, %v3901
    %v3918 = vadd.f32 %v3822, %v3902
    %v3919 = vadd.f32 %v3823, %v3903
    %3921 = vset.pattern.permute.xlu0 0
    %3922 = vperm.xlu0 %3921, %v3695
    %v3923 = vpop.permute.xlu0 %3922
    %3926 = vset.pattern.permute.xlu0 0
    %3927 = vperm.xlu0 %3926, %v3696
    %v3928 = vpop.permute.xlu0 %3927
    %3931 = vset.pattern.permute.xlu0 0
    %3932 = vperm.xlu0 %3931, %v3697
    %v3933 = vpop.permute.xlu0 %3932
    %3936 = vset.pattern.permute.xlu0 0
    %3937 = vperm.xlu0 %3936, %v3698
    %v3938 = vpop.permute.xlu0 %3937
    %3941 = vset.pattern.permute.xlu0 0
    %3942 = vperm.xlu0 %3941, %v3699
    %v3943 = vpop.permute.xlu0 %3942
    %3946 = vset.pattern.permute.xlu0 0
    %3947 = vperm.xlu0 %3946, %v3700
    %v3948 = vpop.permute.xlu0 %3947
    %3951 = vset.pattern.permute.xlu0 0
    %3952 = vperm.xlu0 %3951, %v3701
    %v3953 = vpop.permute.xlu0 %3952
    %3956 = vset.pattern.permute.xlu0 0
    %3957 = vperm.xlu0 %3956, %v3702
    %v3958 = vpop.permute.xlu0 %3957
    %3961 = vset.pattern.permute.xlu0 0
    %3962 = vperm.xlu0 %3961, %v3703
    %v3963 = vpop.permute.xlu0 %3962
    %3966 = vset.pattern.permute.xlu0 0
    %3967 = vperm.xlu0 %3966, %v3704
    %v3968 = vpop.permute.xlu0 %3967
    %3971 = vset.pattern.permute.xlu0 0
    %3972 = vperm.xlu0 %3971, %v3705
    %v3973 = vpop.permute.xlu0 %3972
    %3976 = vset.pattern.permute.xlu0 0
    %3977 = vperm.xlu0 %3976, %v3706
    %v3978 = vpop.permute.xlu0 %3977
    %3981 = vset.pattern.permute.xlu0 0
    %3982 = vperm.xlu0 %3981, %v3707
    %v3983 = vpop.permute.xlu0 %3982
    %3986 = vset.pattern.permute.xlu0 0
    %3987 = vperm.xlu0 %3986, %v3708
    %v3988 = vpop.permute.xlu0 %3987
    %3991 = vset.pattern.permute.xlu0 0
    %3992 = vperm.xlu0 %3991, %v3709
    %v3993 = vpop.permute.xlu0 %3992
    %3996 = vset.pattern.permute.xlu0 0
    %3997 = vperm.xlu0 %3996, %v3710
    %v3998 = vpop.permute.xlu0 %3997
    %v4000 = vadd.f32 %v3904, %v3923
    %v4001 = vadd.f32 %v3905, %v3928
    %v4002 = vadd.f32 %v3906, %v3933
    %v4003 = vadd.f32 %v3907, %v3938
    %v4004 = vadd.f32 %v3908, %v3943
    %v4005 = vadd.f32 %v3909, %v3948
    %v4006 = vadd.f32 %v3910, %v3953
    %v4007 = vadd.f32 %v3911, %v3958
    %v4008 = vadd.f32 %v3912, %v3963
    %v4009 = vadd.f32 %v3913, %v3968
    %v4010 = vadd.f32 %v3914, %v3973
    %v4011 = vadd.f32 %v3915, %v3978
    %v4012 = vadd.f32 %v3916, %v3983
    %v4013 = vadd.f32 %v3917, %v3988
    %v4014 = vadd.f32 %v3918, %v3993
    %v4015 = vadd.f32 %v3919, %v3998
    %v4016 = vmul.f32 %v4000, 0.5
    %v4017 = vmul.f32 %v4001, 0.5
    %v4018 = vmul.f32 %v4002, 0.5
    %v4019 = vmul.f32 %v4003, 0.5
    %v4020 = vmul.f32 %v4004, 0.5
    %v4021 = vmul.f32 %v4005, 0.5
    %v4022 = vmul.f32 %v4006, 0.5
    %v4023 = vmul.f32 %v4007, 0.5
    %v4024 = vmul.f32 %v4008, 0.5
    %v4025 = vmul.f32 %v4009, 0.5
    %v4026 = vmul.f32 %v4010, 0.5
    %v4027 = vmul.f32 %v4011, 0.5
    %v4028 = vmul.f32 %v4012, 0.5
    %v4029 = vmul.f32 %v4013, 0.5
    %v4030 = vmul.f32 %v4014, 0.5
    %v4031 = vmul.f32 %v4015, 0.5
    %v4032 = vtanh.pop %v4016
    %v4033 = vtanh.pop %v4017
    %v4034 = vtanh.pop %v4018
    %v4035 = vtanh.pop %v4019
    %v4036 = vtanh.pop %v4020
    %v4037 = vtanh.pop %v4021
    %v4038 = vtanh.pop %v4022
    %v4039 = vtanh.pop %v4023
    %v4040 = vtanh.pop %v4024
    %v4041 = vtanh.pop %v4025
    %v4042 = vtanh.pop %v4026
    %v4043 = vtanh.pop %v4027
    %v4044 = vtanh.pop %v4028
    %v4045 = vtanh.pop %v4029
    %v4046 = vtanh.pop %v4030
    %v4047 = vtanh.pop %v4031
    %v4048 = vmul.f32 %v4032, 0.5
    %v4049 = vmul.f32 %v4033, 0.5
    %v4050 = vmul.f32 %v4034, 0.5
    %v4051 = vmul.f32 %v4035, 0.5
    %v4052 = vmul.f32 %v4036, 0.5
    %v4053 = vmul.f32 %v4037, 0.5
    %v4054 = vmul.f32 %v4038, 0.5
    %v4055 = vmul.f32 %v4039, 0.5
    %v4056 = vmul.f32 %v4040, 0.5
    %v4057 = vmul.f32 %v4041, 0.5
    %v4058 = vmul.f32 %v4042, 0.5
    %v4059 = vmul.f32 %v4043, 0.5
    %v4060 = vmul.f32 %v4044, 0.5
    %v4061 = vmul.f32 %v4045, 0.5
    %v4062 = vmul.f32 %v4046, 0.5
    %v4063 = vmul.f32 %v4047, 0.5
    %v4064 = vadd.f32 %v4048, 0.5
    %v4065 = vadd.f32 %v4049, 0.5
    %v4066 = vadd.f32 %v4050, 0.5
    %v4067 = vadd.f32 %v4051, 0.5
    %v4068 = vadd.f32 %v4052, 0.5
    %v4069 = vadd.f32 %v4053, 0.5
    %v4070 = vadd.f32 %v4054, 0.5
    %v4071 = vadd.f32 %v4055, 0.5
    %v4072 = vadd.f32 %v4056, 0.5
    %v4073 = vadd.f32 %v4057, 0.5
    %v4074 = vadd.f32 %v4058, 0.5
    %v4075 = vadd.f32 %v4059, 0.5
    %v4076 = vadd.f32 %v4060, 0.5
    %v4077 = vadd.f32 %v4061, 0.5
    %v4078 = vadd.f32 %v4062, 0.5
    %v4079 = vadd.f32 %v4063, 0.5
    %4081 = vset.pattern.permute.xlu0 0
    %4082 = vperm.xlu0 %4081, %v3712
    %v4083 = vpop.permute.xlu0 %4082
    %4086 = vset.pattern.permute.xlu0 0
    %4087 = vperm.xlu0 %4086, %v3713
    %v4088 = vpop.permute.xlu0 %4087
    %4091 = vset.pattern.permute.xlu0 0
    %4092 = vperm.xlu0 %4091, %v3714
    %v4093 = vpop.permute.xlu0 %4092
    %4096 = vset.pattern.permute.xlu0 0
    %4097 = vperm.xlu0 %4096, %v3715
    %v4098 = vpop.permute.xlu0 %4097
    %4101 = vset.pattern.permute.xlu0 0
    %4102 = vperm.xlu0 %4101, %v3716
    %v4103 = vpop.permute.xlu0 %4102
    %4106 = vset.pattern.permute.xlu0 0
    %4107 = vperm.xlu0 %4106, %v3717
    %v4108 = vpop.permute.xlu0 %4107
    %4111 = vset.pattern.permute.xlu0 0
    %4112 = vperm.xlu0 %4111, %v3718
    %v4113 = vpop.permute.xlu0 %4112
    %4116 = vset.pattern.permute.xlu0 0
    %4117 = vperm.xlu0 %4116, %v3719
    %v4118 = vpop.permute.xlu0 %4117
    %4121 = vset.pattern.permute.xlu0 0
    %4122 = vperm.xlu0 %4121, %v3720
    %v4123 = vpop.permute.xlu0 %4122
    %4126 = vset.pattern.permute.xlu0 0
    %4127 = vperm.xlu0 %4126, %v3721
    %v4128 = vpop.permute.xlu0 %4127
    %4131 = vset.pattern.permute.xlu0 0
    %4132 = vperm.xlu0 %4131, %v3722
    %v4133 = vpop.permute.xlu0 %4132
    %4136 = vset.pattern.permute.xlu0 0
    %4137 = vperm.xlu0 %4136, %v3723
    %v4138 = vpop.permute.xlu0 %4137
    %4141 = vset.pattern.permute.xlu0 0
    %4142 = vperm.xlu0 %4141, %v3724
    %v4143 = vpop.permute.xlu0 %4142
    %4146 = vset.pattern.permute.xlu0 0
    %4147 = vperm.xlu0 %4146, %v3725
    %v4148 = vpop.permute.xlu0 %4147
    %4151 = vset.pattern.permute.xlu0 0
    %4152 = vperm.xlu0 %4151, %v3726
    %v4153 = vpop.permute.xlu0 %4152
    %4156 = vset.pattern.permute.xlu0 0
    %4157 = vperm.xlu0 %4156, %v3727
    %v4158 = vpop.permute.xlu0 %4157
    %v4160 = vmul.f32 %v4064, %v4083
    %v4161 = vmul.f32 %v4065, %v4088
    %v4162 = vmul.f32 %v4066, %v4093
    %v4163 = vmul.f32 %v4067, %v4098
    %v4164 = vmul.f32 %v4068, %v4103
    %v4165 = vmul.f32 %v4069, %v4108
    %v4166 = vmul.f32 %v4070, %v4113
    %v4167 = vmul.f32 %v4071, %v4118
    %v4168 = vmul.f32 %v4072, %v4123
    %v4169 = vmul.f32 %v4073, %v4128
    %v4170 = vmul.f32 %v4074, %v4133
    %v4171 = vmul.f32 %v4075, %v4138
    %v4172 = vmul.f32 %v4076, %v4143
    %v4173 = vmul.f32 %v4077, %v4148
    %v4174 = vmul.f32 %v4078, %v4153
    %v4175 = vmul.f32 %v4079, %v4158
    %v4176 = vadd.f32 %v4160, %v4161
    %v4177 = vadd.f32 %v4176, %v4162
    %v4178 = vadd.f32 %v4177, %v4163
    %v4179 = vadd.f32 %v4178, %v4164
    %v4180 = vadd.f32 %v4179, %v4165
    %v4181 = vadd.f32 %v4180, %v4166
    %v4182 = vadd.f32 %v4181, %v4167
    %v4183 = vadd.f32 %v4182, %v4168
    %v4184 = vadd.f32 %v4183, %v4169
    %v4185 = vadd.f32 %v4184, %v4170
    %v4186 = vadd.f32 %v4185, %v4171
    %v4187 = vadd.f32 %v4186, %v4172
    %v4188 = vadd.f32 %v4187, %v4173
    %v4189 = vadd.f32 %v4188, %v4174
    %v4190 = vadd.f32 %v4189, %v4175
    %v4191 = vrot.slane %v4190, 4
    %v4192 = vadd.f32 %v4190, %v4191
    %v4193 = vrot.slane %v4192, 2
    %v4194 = vadd.f32 %v4192, %v4193
    %v4195 = vrot.slane %v4194, 1
    %v4196 = vadd.f32 %v4194, %v4195
    %v4197 = vadd.f32 %v3676, %v4196
    %v4198 = vld [vmem:[#allocation2] sm:$0x1]
    %4200 = vset.pattern.permute.xlu0 0
    %4201 = vperm.xlu0 %4200, %v4198
    %v4202 = vpop.permute.xlu0 %4201
    %v4204 = vlaneseq
    %v4205 = vshrl.u32 %v4204, 7
    %v4206 = vsub.s32 0, %v4205
    %v4207 = vrot.slane %v4202, %v4206
    %v4208 = vadd.f32 %v4197, %v4207
    %v4209 = vxor.u32 %v4208, 2147483648
    %v4210 = vmul.f32 %v4209, 1.442695
    %v4211 = vpow.pop %v4210
    %v4212 = vadd.f32 %v4211, 1.0
    %v4213 = vrcp.pop %v4212
    %v4214 = vmul.f32 1.0, %v4213
    %4215 = vst [vmem:[#allocation3] sm:$0x1] %v4214
    // Predicated region
    $region22: #{tpu_custom_call.1} parent=1 // pred_check
      _
    $region23: #{tpu_custom_call.1} parent=1 // pred_check_branch
      %4217 = sbr.rel (0) target = $region25
    $region24: #{tpu_custom_call.1} parent=1 // pred_region
      %s4219 = ssub.s32 16, 16
      %4220 = vsyncadd [#allocation4], %s4219
      %s4222 = sshll.u32 [#allocation3], 4
      %s4223 = int_to_ptr.vmem [resolvable:$true] %s4222
      %4225 = dma.vmem_to_hbm [thread:$0]  %s4223, 16, %s5, [#allocation4]
    $region25: #{tpu_custom_call.1} parent=1 // pred_fallthru
      _
    // Predicated region
    $region26: #{tpu_custom_call.1} parent=1 // pred_check
      _
    $region27: #{tpu_custom_call.1} parent=1 // pred_check_branch
      %4227 = sbr.rel (0) target = $region29
    $region28: #{tpu_custom_call.1} parent=1 // pred_region
      %4228 = dma.done [#allocation4], 16
    $region29: #{tpu_custom_call.1} parent=1 // pred_fallthru
      _
    %4229 = vsyncpa [#allocation4], 1

</llo_original>
